<compile_context>
chip_gen: v7x
topology: tpu7x:2x2x1
jax: 0.10.0
libtpu: 0.0.40
codegen_flags: <defaults>
</compile_context>

<pallas_src>
import functools
import math

import jax
import jax.numpy as jnp
from jax.experimental import pallas as pl
from jax.experimental.pallas import tpu as pltpu


# --------------------------------------------------------------------------- #
# Kernels
# --------------------------------------------------------------------------- #
def _rab_kernel_batched(x_ref, wqkv_ref, wfo_ref, bfo_ref, wfi_ref, bfi_ref,
                        o_ref, *, n_head, d_head, compute_dtype):
    """Head-batched attention + MLP, fully fused in VMEM. One (bb,T,D) block."""
    bb, T, D = x_ref.shape
    x = x_ref[...]                                            # (bb, T, D) f32
    xc = x.reshape(bb * T, D).astype(compute_dtype)

    # ---- QKV projection: one lane-dense (bb*T, D) @ (D, 3D) MXU matmul.
    # wqkv columns are de-interleaved: [Q | K | V], head-major, Q pre-scaled.
    y = jnp.dot(xc, wqkv_ref[...], preferred_element_type=jnp.float32)

    q = y[:, :D].reshape(bb, T, n_head, d_head).astype(compute_dtype)
    k = y[:, D:2 * D].reshape(bb, T, n_head, d_head).astype(compute_dtype)
    v = y[:, 2 * D:].reshape(bb, T, n_head, d_head).astype(compute_dtype)

    # ---- Head-batched attention (no per-head loop, no explicit .T).
    s = jnp.einsum('bthd,bshd->bhts', q, k,
                   preferred_element_type=jnp.float32)        # (bb, H, T, S)
    s = s - jnp.max(s, axis=-1, keepdims=True)
    p = jnp.exp(s)
    p = p * pl.reciprocal(jnp.sum(p, axis=-1, keepdims=True), approx=True)
    attn = jnp.einsum('bhts,bshd->bthd', p.astype(compute_dtype), v,
                      preferred_element_type=jnp.float32)     # (bb, T, H, dh)
    b2 = attn.reshape(bb * T, D).astype(compute_dtype)

    # ---- MLP: fanout -> QuickGELU -> fanin (activation math in f32).
    z = jnp.dot(b2, wfo_ref[...], preferred_element_type=jnp.float32) + bfo_ref[...]
    z = z * jax.nn.sigmoid(1.702 * z)
    z = jnp.dot(z.astype(compute_dtype), wfi_ref[...],
                preferred_element_type=jnp.float32) + bfi_ref[...]

    # ---- residual: single lane-dense store of the whole block.
    o_ref[...] = (x + z.reshape(bb, T, D)).astype(o_ref.dtype)


def _rab_kernel_looped(x_ref, wqkv_ref, wfo_ref, bfo_ref, wfi_ref, bfi_ref,
                       o_ref, attn_scratch, *, n_head, d_head, compute_dtype):
    """Fallback: per-head 2D matmuls (known-good lowering path)."""
    bb, T, D = x_ref.shape
    x = x_ref[...]
    xc = x.reshape(bb * T, D).astype(compute_dtype)
    y = jnp.dot(xc, wqkv_ref[...], preferred_element_type=jnp.float32)
    y = y.reshape(bb, T, 3 * D)
    for b in range(bb):
        yb = y[b]                                             # (T, 3D)
        for h in range(n_head):
            q = yb[:, h * d_head:(h + 1) * d_head].astype(compute_dtype)
            k = yb[:, D + h * d_head:D + (h + 1) * d_head].astype(compute_dtype)
            v = yb[:, 2 * D + h * d_head:2 * D + (h + 1) * d_head].astype(compute_dtype)
            s = jnp.dot(q, k.T, preferred_element_type=jnp.float32)
            s = s - jnp.max(s, axis=-1, keepdims=True)
            p = jnp.exp(s)
            p = p * pl.reciprocal(jnp.sum(p, axis=-1, keepdims=True), approx=True)
            attn_scratch[b, :, h * d_head:(h + 1) * d_head] = jnp.dot(
                p.astype(compute_dtype), v, preferred_element_type=jnp.float32)
    b2 = attn_scratch[...].reshape(bb * T, D).astype(compute_dtype)
    z = jnp.dot(b2, wfo_ref[...], preferred_element_type=jnp.float32) + bfo_ref[...]
    z = z * jax.nn.sigmoid(1.702 * z)
    z = jnp.dot(z.astype(compute_dtype), wfi_ref[...],
                preferred_element_type=jnp.float32) + bfi_ref[...]
    o_ref[...] = (x + z.reshape(bb, T, D)).astype(o_ref.dtype)


# --------------------------------------------------------------------------- #
# Wrapper
# --------------------------------------------------------------------------- #
def _prep_params(params, n_head, compute_dtype):
    """De-interleave wqkv into [Q|K|V] blocks, fold 1/sqrt(dh) into Q, cast."""
    wqkv, wfo, bfo, wfi, bfi = params
    D = wqkv.shape[0]
    d_head = D // n_head
    w = wqkv.reshape(D, n_head, 3, d_head)            # (D, H, {q,k,v}, dh)
    w = jnp.transpose(w, (0, 2, 1, 3))                # (D, {q,k,v}, H, dh)
    scale = jnp.array([1.0 / math.sqrt(d_head), 1.0, 1.0], dtype=wqkv.dtype)
    w = w * scale[None, :, None, None]
    wqkv_d = w.reshape(D, 3 * D).astype(compute_dtype)
    return (wqkv_d,
            wfo.astype(compute_dtype),
            bfo.astype(jnp.float32),
            wfi.astype(compute_dtype),
            bfi.astype(jnp.float32))


def _pick_batch_block(batch, tokens, target_rows=256):
    """Largest divisor of `batch` whose packed row count bb*T stays <= target.

    For realistic BLIP shapes (T >= 197) this returns 1, giving a batch-sized
    parallel grid that also feeds both v7x TensorCores; for tiny T it packs
    several batch rows per step so the MXU M-dimension is not trivially small.
    """
    bb = 1
    for cand in range(1, batch + 1):
        if batch % cand == 0 and cand * tokens <= max(tokens, target_rows):
            bb = cand
    return bb


def residual_attention_block(x, params, n_head, *, compute_dtype=jnp.bfloat16):
    """x: (B, T, D) float32. params = (wqkv, wfo, bfo, wfi, bfi) in (in,out) layout."""
    B, T, D = x.shape
    assert D % n_head == 0
    d_head = D // n_head
    prepped = _prep_params(params, n_head, compute_dtype)

    bb = _pick_batch_block(B, T)
    grid = (B // bb,)

    # Explicit VMEM budget (bytes): blocks (double-buffered), weights, live
    # f32 intermediates; generous headroom, capped well below 128 MiB and
    # sized to also fit v7x's 64 MiB when weights are single-buffered bf16.
    csize = jnp.dtype(compute_dtype).itemsize
    est = (2 * 2 * (bb * T * D * 4)                    # x + out blocks, 2x buffered
           + 2 * (D * 3 * D) * csize                   # wqkv + fanout weights
           + (3 * D * D) * csize                       # fanin weight
           + 4 * (4 * D) * 4                           # biases
           + 2 * (bb * T * 3 * D) * 4                  # y / z intermediates (f32)
           + 2 * (bb * n_head * T * T) * 4             # scores / probs (f32)
           + 2 * (bb * T * D) * 4)                     # attention output / scratch
    vmem_limit = int(min(max(2 * est + (8 << 20), 32 << 20), 112 << 20))

    def build(batched_attn, single_buffer_weights):
        kern = _rab_kernel_batched if batched_attn else _rab_kernel_looped
        kernel = functools.partial(kern, n_head=n_head, d_head=d_head,
                                   compute_dtype=compute_dtype)
        # Grid-invariant weights: request single buffering (index_map is const).
        wkw = {"pipeline_mode": pl.Buffered(1)} if single_buffer_weights else {}
        scratch = [] if batched_attn else [pltpu.VMEM((bb, T, D), jnp.float32)]
        out = pl.pallas_call(
            kernel,
            out_shape=jax.ShapeDtypeStruct((B, T, D), x.dtype),
            grid=grid,
            in_specs=[
                pl.BlockSpec((bb, T, D), lambda i: (i, 0, 0)),         # x block
                pl.BlockSpec((D, 3 * D), lambda i: (0, 0), **wkw),     # wqkv (deint)
                pl.BlockSpec((D, 3 * D), lambda i: (0, 0), **wkw),     # fanout W
                pl.BlockSpec((1, 3 * D), lambda i: (0, 0), **wkw),     # fanout b
                pl.BlockSpec((3 * D, D), lambda i: (0, 0), **wkw),     # fanin W
                pl.BlockSpec((1, D), lambda i: (0, 0), **wkw),         # fanin b
            ],
            out_specs=pl.BlockSpec((bb, T, D), lambda i: (i, 0, 0)),
            scratch_shapes=scratch,
            compiler_params=pltpu.CompilerParams(
                dimension_semantics=("parallel",),
                vmem_limit_bytes=vmem_limit),
        )(x, *prepped)
        return jax.block_until_ready(out)

    last_err = None
    for batched_attn in (True, False):           # prefer head-batched attention
        for single_buf in (True, False):         # prefer single-buffered weights
            try:
                return build(batched_attn, single_buf)
            except Exception as e:               # lowering / API fallback
                last_err = e
    raise last_err


# --------------------------------------------------------------------------- #
# Pure-JAX mirror of the PyTorch forward (correctness reference)
# --------------------------------------------------------------------------- #
def reference(x, params, n_head):
    wqkv, wfo, bfo, wfi, bfi = params
    B, T, D = x.shape
    dh = D // n_head
    y = x @ wqkv                                                    # (B,T,3D)
    y = y.reshape(B, T, n_head, 3 * dh)
    q, k, v = y[..., :dh], y[..., dh:2 * dh], y[..., 2 * dh:]
    a = jnp.einsum('bthd,bshd->btsh', q, k) / math.sqrt(dh)
    a = jax.nn.softmax(a, axis=2)
    b = jnp.einsum('btsh,bshd->bthd', a, v).reshape(B, T, D)
    z = b @ wfo + bfo[0]
    z = z * jax.nn.sigmoid(1.702 * z)
    z = z @ wfi + bfi[0]
    return x + z


if __name__ == "__main__":
    # Small shapes consistent with the module: batch=2, seq=8, d_model=32, heads=4.
    B, T, D, H = 2, 8, 32, 4

    key = jax.random.PRNGKey(0)
    kx, k1, k2, k3, k4, k5 = jax.random.split(key, 6)

    x = jax.random.normal(kx, (B, T, D), dtype=jnp.float32)

    # Deterministic init mimicking nn.Linear default (uniform +- 1/sqrt(fan_in)),
    # init_zeros=False branch. Weights stored as (in, out).
    b1 = 1.0 / math.sqrt(D)
    b2 = 1.0 / math.sqrt(3 * D)
    wqkv = jax.random.uniform(k1, (D, 3 * D), jnp.float32, -b1, b1)   # no bias
    wfo = jax.random.uniform(k2, (D, 3 * D), jnp.float32, -b1, b1)
    bfo = jax.random.uniform(k3, (1, 3 * D), jnp.float32, -b1, b1)
    wfi = jax.random.uniform(k4, (3 * D, D), jnp.float32, -b2, b2)
    bfi = jax.random.uniform(k5, (1, D), jnp.float32, -b2, b2)
    params = (wqkv, wfo, bfo, wfi, bfi)

    ref = reference(x, params, H)

    # f32 MXU-input path: tight-ish check of the restructured math.
    out_f32 = residual_attention_block(x, params, H, compute_dtype=jnp.float32)
    assert out_f32.shape == (B, T, D) and out_f32.dtype == jnp.float32
    assert jnp.allclose(out_f32, ref, atol=2e-2, rtol=2e-2), "f32 mismatch vs reference"

    # bf16 MXU-input path (default): looser tolerance for bf16 rounding.
    out = residual_attention_block(x, params, H)
    assert out.shape == (B, T, D) and out.dtype == jnp.float32
    assert jnp.allclose(out, ref, atol=5e-2, rtol=5e-2), "bf16 mismatch vs reference"

    print("KERNEL_OK")
</pallas_src>

<mosaic_0001>
module attributes {stable_mosaic.version = 11 : i64} {
  func.func @_rab_kernel_looped(%arg0: i32, %arg1: memref<2x8x32xf32, #tpu.memory_space<vmem>>, %arg2: memref<32x96xf32, #tpu.memory_space<vmem>>, %arg3: memref<32x96xf32, #tpu.memory_space<vmem>>, %arg4: memref<1x96xf32, #tpu.memory_space<vmem>>, %arg5: memref<96x32xf32, #tpu.memory_space<vmem>>, %arg6: memref<1x32xf32, #tpu.memory_space<vmem>>, %arg7: memref<2x8x32xf32, #tpu.memory_space<vmem>>, %arg8: memref<2x8x32xf32, #tpu.memory_space<vmem>>) attributes {dimension_semantics = [#tpu.dimension_semantics<parallel>], iteration_bounds = array<i64: 1>, scalar_prefetch = 0 : i64, scratch_operands = 1 : i64, tpu.core_type = #tpu.core_type<tc>, window_params = [{transform_indices = @transform_0, window_bounds = array<i64: 2, 8, 32>}, {pipeline_mode = #tpu.pipeline_mode<synchronous>, transform_indices = @transform_1, window_bounds = array<i64: 32, 96>}, {pipeline_mode = #tpu.pipeline_mode<synchronous>, transform_indices = @transform_2, window_bounds = array<i64: 32, 96>}, {pipeline_mode = #tpu.pipeline_mode<synchronous>, transform_indices = @transform_3, window_bounds = array<i64: 1, 96>}, {pipeline_mode = #tpu.pipeline_mode<synchronous>, transform_indices = @transform_4, window_bounds = array<i64: 96, 32>}, {pipeline_mode = #tpu.pipeline_mode<synchronous>, transform_indices = @transform_5, window_bounds = array<i64: 1, 32>}, {transform_indices = @transform_6, window_bounds = array<i64: 2, 8, 32>}]} {
    %c0 = arith.constant 0 : index
    %c0_0 = arith.constant 0 : index
    %c0_1 = arith.constant 0 : index
    %0 = vector.load %arg1[%c0, %c0_0, %c0_1] : memref<2x8x32xf32, #tpu.memory_space<vmem>>, vector<2x8x32xf32>
    %1 = vector.shape_cast %0 : vector<2x8x32xf32> to vector<16x32xf32>
    %c0_2 = arith.constant 0 : index
    %c0_3 = arith.constant 0 : index
    %2 = vector.load %arg2[%c0_2, %c0_3] : memref<32x96xf32, #tpu.memory_space<vmem>>, vector<32x96xf32>
    %cst = arith.constant dense<0.000000e+00> : vector<16x96xf32>
    %3 = tpu.matmul %1, %2, %cst {dimension_numbers = #tpu.dot_dimension_numbers<[1], [0], [0], [1], [0, 0, 1, 1], [], []>} : vector<16x32xf32>, vector<32x96xf32>, vector<16x96xf32> -> vector<16x96xf32>
    %4 = vector.shape_cast %3 : vector<16x96xf32> to vector<2x8x96xf32>
    %5 = vector.extract_strided_slice %4 {offsets = [0, 0, 0], sizes = [1, 8, 96], strides = [1, 1, 1]} : vector<2x8x96xf32> to vector<1x8x96xf32>
    %6 = vector.shape_cast %5 : vector<1x8x96xf32> to vector<8x96xf32>
    %7 = vector.extract_strided_slice %6 {offsets = [0, 0], sizes = [8, 8], strides = [1, 1]} : vector<8x96xf32> to vector<8x8xf32>
    %8 = vector.extract_strided_slice %6 {offsets = [0, 32], sizes = [8, 8], strides = [1, 1]} : vector<8x96xf32> to vector<8x8xf32>
    %9 = vector.extract_strided_slice %6 {offsets = [0, 64], sizes = [8, 8], strides = [1, 1]} : vector<8x96xf32> to vector<8x8xf32>
    %10 = tpu.transpose %8, [1, 0] : vector<8x8xf32> -> vector<8x8xf32>
    %cst_4 = arith.constant dense<0.000000e+00> : vector<8x8xf32>
    %11 = tpu.matmul %7, %10, %cst_4 {dimension_numbers = #tpu.dot_dimension_numbers<[1], [0], [0], [1], [0, 0, 1, 1], [], []>} : vector<8x8xf32>, vector<8x8xf32>, vector<8x8xf32> -> vector<8x8xf32>
    %cst_5 = arith.constant dense<0xFF800000> : vector<8xf32>
    %12 = vector.multi_reduction <maximumf>, %11, %cst_5 [1] : vector<8x8xf32> to vector<8xf32>
    %13 = vector.shape_cast %12 : vector<8xf32> to vector<8x1xf32>
    %14 = vector.broadcast %13 : vector<8x1xf32> to vector<8x8xf32>
    %15 = arith.subf %11, %14 : vector<8x8xf32>
    %16 = math.exp %15 : vector<8x8xf32>
    %cst_6 = arith.constant dense<0.000000e+00> : vector<8xf32>
    %17 = vector.multi_reduction <add>, %16, %cst_6 [1] : vector<8x8xf32> to vector<8xf32>
    %18 = vector.shape_cast %17 : vector<8xf32> to vector<8x1xf32>
    %19 = tpu.reciprocal %18 {approx = true} : vector<8x1xf32> -> vector<8x1xf32>
    %20 = vector.broadcast %19 : vector<8x1xf32> to vector<8x8xf32>
    %21 = arith.mulf %16, %20 : vector<8x8xf32>
    %cst_7 = arith.constant dense<0.000000e+00> : vector<8x8xf32>
    %22 = tpu.matmul %21, %9, %cst_7 {dimension_numbers = #tpu.dot_dimension_numbers<[1], [0], [0], [1], [0, 0, 1, 1], [], []>} : vector<8x8xf32>, vector<8x8xf32>, vector<8x8xf32> -> vector<8x8xf32>
    %c0_8 = arith.constant 0 : index
    %c0_9 = arith.constant 0 : index
    %c0_10 = arith.constant 0 : index
    %23 = vector.load %arg8[%c0_8, %c0_9, %c0_10] : memref<2x8x32xf32, #tpu.memory_space<vmem>>, vector<1x8x8xf32>
    %24 = vector.shape_cast %23 : vector<1x8x8xf32> to vector<8x8xf32>
    %25 = vector.shape_cast %22 : vector<8x8xf32> to vector<1x8x8xf32>
    tpu.vector_store %arg8[%c0_8, %c0_9, %c0_10], %25 {strides = array<i32>} : memref<2x8x32xf32, #tpu.memory_space<vmem>>, vector<1x8x8xf32>,
    %26 = vector.extract_strided_slice %6 {offsets = [0, 8], sizes = [8, 8], strides = [1, 1]} : vector<8x96xf32> to vector<8x8xf32>
    %27 = vector.extract_strided_slice %6 {offsets = [0, 40], sizes = [8, 8], strides = [1, 1]} : vector<8x96xf32> to vector<8x8xf32>
    %28 = vector.extract_strided_slice %6 {offsets = [0, 72], sizes = [8, 8], strides = [1, 1]} : vector<8x96xf32> to vector<8x8xf32>
    %29 = tpu.transpose %27, [1, 0] : vector<8x8xf32> -> vector<8x8xf32>
    %cst_11 = arith.constant dense<0.000000e+00> : vector<8x8xf32>
    %30 = tpu.matmul %26, %29, %cst_11 {dimension_numbers = #tpu.dot_dimension_numbers<[1], [0], [0], [1], [0, 0, 1, 1], [], []>} : vector<8x8xf32>, vector<8x8xf32>, vector<8x8xf32> -> vector<8x8xf32>
    %cst_12 = arith.constant dense<0xFF800000> : vector<8xf32>
    %31 = vector.multi_reduction <maximumf>, %30, %cst_12 [1] : vector<8x8xf32> to vector<8xf32>
    %32 = vector.shape_cast %31 : vector<8xf32> to vector<8x1xf32>
    %33 = vector.broadcast %32 : vector<8x1xf32> to vector<8x8xf32>
    %34 = arith.subf %30, %33 : vector<8x8xf32>
    %35 = math.exp %34 : vector<8x8xf32>
    %cst_13 = arith.constant dense<0.000000e+00> : vector<8xf32>
    %36 = vector.multi_reduction <add>, %35, %cst_13 [1] : vector<8x8xf32> to vector<8xf32>
    %37 = vector.shape_cast %36 : vector<8xf32> to vector<8x1xf32>
    %38 = tpu.reciprocal %37 {approx = true} : vector<8x1xf32> -> vector<8x1xf32>
    %39 = vector.broadcast %38 : vector<8x1xf32> to vector<8x8xf32>
    %40 = arith.mulf %35, %39 : vector<8x8xf32>
    %cst_14 = arith.constant dense<0.000000e+00> : vector<8x8xf32>
    %41 = tpu.matmul %40, %28, %cst_14 {dimension_numbers = #tpu.dot_dimension_numbers<[1], [0], [0], [1], [0, 0, 1, 1], [], []>} : vector<8x8xf32>, vector<8x8xf32>, vector<8x8xf32> -> vector<8x8xf32>
    %c0_15 = arith.constant 0 : index
    %c0_16 = arith.constant 0 : index
    %c8 = arith.constant 8 : index
    %42 = vector.load %arg8[%c0_15, %c0_16, %c8] : memref<2x8x32xf32, #tpu.memory_space<vmem>>, vector<1x8x8xf32>
    %43 = vector.shape_cast %42 : vector<1x8x8xf32> to vector<8x8xf32>
    %44 = vector.shape_cast %41 : vector<8x8xf32> to vector<1x8x8xf32>
    tpu.vector_store %arg8[%c0_15, %c0_16, %c8], %44 {strides = array<i32>} : memref<2x8x32xf32, #tpu.memory_space<vmem>>, vector<1x8x8xf32>,
    %45 = vector.extract_strided_slice %6 {offsets = [0, 16], sizes = [8, 8], strides = [1, 1]} : vector<8x96xf32> to vector<8x8xf32>
    %46 = vector.extract_strided_slice %6 {offsets = [0, 48], sizes = [8, 8], strides = [1, 1]} : vector<8x96xf32> to vector<8x8xf32>
    %47 = vector.extract_strided_slice %6 {offsets = [0, 80], sizes = [8, 8], strides = [1, 1]} : vector<8x96xf32> to vector<8x8xf32>
    %48 = tpu.transpose %46, [1, 0] : vector<8x8xf32> -> vector<8x8xf32>
    %cst_17 = arith.constant dense<0.000000e+00> : vector<8x8xf32>
    %49 = tpu.matmul %45, %48, %cst_17 {dimension_numbers = #tpu.dot_dimension_numbers<[1], [0], [0], [1], [0, 0, 1, 1], [], []>} : vector<8x8xf32>, vector<8x8xf32>, vector<8x8xf32> -> vector<8x8xf32>
    %cst_18 = arith.constant dense<0xFF800000> : vector<8xf32>
    %50 = vector.multi_reduction <maximumf>, %49, %cst_18 [1] : vector<8x8xf32> to vector<8xf32>
    %51 = vector.shape_cast %50 : vector<8xf32> to vector<8x1xf32>
    %52 = vector.broadcast %51 : vector<8x1xf32> to vector<8x8xf32>
    %53 = arith.subf %49, %52 : vector<8x8xf32>
    %54 = math.exp %53 : vector<8x8xf32>
    %cst_19 = arith.constant dense<0.000000e+00> : vector<8xf32>
    %55 = vector.multi_reduction <add>, %54, %cst_19 [1] : vector<8x8xf32> to vector<8xf32>
    %56 = vector.shape_cast %55 : vector<8xf32> to vector<8x1xf32>
    %57 = tpu.reciprocal %56 {approx = true} : vector<8x1xf32> -> vector<8x1xf32>
    %58 = vector.broadcast %57 : vector<8x1xf32> to vector<8x8xf32>
    %59 = arith.mulf %54, %58 : vector<8x8xf32>
    %cst_20 = arith.constant dense<0.000000e+00> : vector<8x8xf32>
    %60 = tpu.matmul %59, %47, %cst_20 {dimension_numbers = #tpu.dot_dimension_numbers<[1], [0], [0], [1], [0, 0, 1, 1], [], []>} : vector<8x8xf32>, vector<8x8xf32>, vector<8x8xf32> -> vector<8x8xf32>
    %c0_21 = arith.constant 0 : index
    %c0_22 = arith.constant 0 : index
    %c16 = arith.constant 16 : index
    %61 = vector.load %arg8[%c0_21, %c0_22, %c16] : memref<2x8x32xf32, #tpu.memory_space<vmem>>, vector<1x8x8xf32>
    %62 = vector.shape_cast %61 : vector<1x8x8xf32> to vector<8x8xf32>
    %63 = vector.shape_cast %60 : vector<8x8xf32> to vector<1x8x8xf32>
    tpu.vector_store %arg8[%c0_21, %c0_22, %c16], %63 {strides = array<i32>} : memref<2x8x32xf32, #tpu.memory_space<vmem>>, vector<1x8x8xf32>,
    %64 = vector.extract_strided_slice %6 {offsets = [0, 24], sizes = [8, 8], strides = [1, 1]} : vector<8x96xf32> to vector<8x8xf32>
    %65 = vector.extract_strided_slice %6 {offsets = [0, 56], sizes = [8, 8], strides = [1, 1]} : vector<8x96xf32> to vector<8x8xf32>
    %66 = vector.extract_strided_slice %6 {offsets = [0, 88], sizes = [8, 8], strides = [1, 1]} : vector<8x96xf32> to vector<8x8xf32>
    %67 = tpu.transpose %65, [1, 0] : vector<8x8xf32> -> vector<8x8xf32>
    %cst_23 = arith.constant dense<0.000000e+00> : vector<8x8xf32>
    %68 = tpu.matmul %64, %67, %cst_23 {dimension_numbers = #tpu.dot_dimension_numbers<[1], [0], [0], [1], [0, 0, 1, 1], [], []>} : vector<8x8xf32>, vector<8x8xf32>, vector<8x8xf32> -> vector<8x8xf32>
    %cst_24 = arith.constant dense<0xFF800000> : vector<8xf32>
    %69 = vector.multi_reduction <maximumf>, %68, %cst_24 [1] : vector<8x8xf32> to vector<8xf32>
    %70 = vector.shape_cast %69 : vector<8xf32> to vector<8x1xf32>
    %71 = vector.broadcast %70 : vector<8x1xf32> to vector<8x8xf32>
    %72 = arith.subf %68, %71 : vector<8x8xf32>
    %73 = math.exp %72 : vector<8x8xf32>
    %cst_25 = arith.constant dense<0.000000e+00> : vector<8xf32>
    %74 = vector.multi_reduction <add>, %73, %cst_25 [1] : vector<8x8xf32> to vector<8xf32>
    %75 = vector.shape_cast %74 : vector<8xf32> to vector<8x1xf32>
    %76 = tpu.reciprocal %75 {approx = true} : vector<8x1xf32> -> vector<8x1xf32>
    %77 = vector.broadcast %76 : vector<8x1xf32> to vector<8x8xf32>
    %78 = arith.mulf %73, %77 : vector<8x8xf32>
    %cst_26 = arith.constant dense<0.000000e+00> : vector<8x8xf32>
    %79 = tpu.matmul %78, %66, %cst_26 {dimension_numbers = #tpu.dot_dimension_numbers<[1], [0], [0], [1], [0, 0, 1, 1], [], []>} : vector<8x8xf32>, vector<8x8xf32>, vector<8x8xf32> -> vector<8x8xf32>
    %c0_27 = arith.constant 0 : index
    %c0_28 = arith.constant 0 : index
    %c24 = arith.constant 24 : index
    %80 = vector.load %arg8[%c0_27, %c0_28, %c24] : memref<2x8x32xf32, #tpu.memory_space<vmem>>, vector<1x8x8xf32>
    %81 = vector.shape_cast %80 : vector<1x8x8xf32> to vector<8x8xf32>
    %82 = vector.shape_cast %79 : vector<8x8xf32> to vector<1x8x8xf32>
    tpu.vector_store %arg8[%c0_27, %c0_28, %c24], %82 {strides = array<i32>} : memref<2x8x32xf32, #tpu.memory_space<vmem>>, vector<1x8x8xf32>,
    %83 = vector.extract_strided_slice %4 {offsets = [1, 0, 0], sizes = [1, 8, 96], strides = [1, 1, 1]} : vector<2x8x96xf32> to vector<1x8x96xf32>
    %84 = vector.shape_cast %83 : vector<1x8x96xf32> to vector<8x96xf32>
    %85 = vector.extract_strided_slice %84 {offsets = [0, 0], sizes = [8, 8], strides = [1, 1]} : vector<8x96xf32> to vector<8x8xf32>
    %86 = vector.extract_strided_slice %84 {offsets = [0, 32], sizes = [8, 8], strides = [1, 1]} : vector<8x96xf32> to vector<8x8xf32>
    %87 = vector.extract_strided_slice %84 {offsets = [0, 64], sizes = [8, 8], strides = [1, 1]} : vector<8x96xf32> to vector<8x8xf32>
    %88 = tpu.transpose %86, [1, 0] : vector<8x8xf32> -> vector<8x8xf32>
    %cst_29 = arith.constant dense<0.000000e+00> : vector<8x8xf32>
    %89 = tpu.matmul %85, %88, %cst_29 {dimension_numbers = #tpu.dot_dimension_numbers<[1], [0], [0], [1], [0, 0, 1, 1], [], []>} : vector<8x8xf32>, vector<8x8xf32>, vector<8x8xf32> -> vector<8x8xf32>
    %cst_30 = arith.constant dense<0xFF800000> : vector<8xf32>
    %90 = vector.multi_reduction <maximumf>, %89, %cst_30 [1] : vector<8x8xf32> to vector<8xf32>
    %91 = vector.shape_cast %90 : vector<8xf32> to vector<8x1xf32>
    %92 = vector.broadcast %91 : vector<8x1xf32> to vector<8x8xf32>
    %93 = arith.subf %89, %92 : vector<8x8xf32>
    %94 = math.exp %93 : vector<8x8xf32>
    %cst_31 = arith.constant dense<0.000000e+00> : vector<8xf32>
    %95 = vector.multi_reduction <add>, %94, %cst_31 [1] : vector<8x8xf32> to vector<8xf32>
    %96 = vector.shape_cast %95 : vector<8xf32> to vector<8x1xf32>
    %97 = tpu.reciprocal %96 {approx = true} : vector<8x1xf32> -> vector<8x1xf32>
    %98 = vector.broadcast %97 : vector<8x1xf32> to vector<8x8xf32>
    %99 = arith.mulf %94, %98 : vector<8x8xf32>
    %cst_32 = arith.constant dense<0.000000e+00> : vector<8x8xf32>
    %100 = tpu.matmul %99, %87, %cst_32 {dimension_numbers = #tpu.dot_dimension_numbers<[1], [0], [0], [1], [0, 0, 1, 1], [], []>} : vector<8x8xf32>, vector<8x8xf32>, vector<8x8xf32> -> vector<8x8xf32>
    %c1 = arith.constant 1 : index
    %c0_33 = arith.constant 0 : index
    %c0_34 = arith.constant 0 : index
    %101 = vector.load %arg8[%c1, %c0_33, %c0_34] : memref<2x8x32xf32, #tpu.memory_space<vmem>>, vector<1x8x8xf32>
    %102 = vector.shape_cast %101 : vector<1x8x8xf32> to vector<8x8xf32>
    %103 = vector.shape_cast %100 : vector<8x8xf32> to vector<1x8x8xf32>
    tpu.vector_store %arg8[%c1, %c0_33, %c0_34], %103 {strides = array<i32>} : memref<2x8x32xf32, #tpu.memory_space<vmem>>, vector<1x8x8xf32>,
    %104 = vector.extract_strided_slice %84 {offsets = [0, 8], sizes = [8, 8], strides = [1, 1]} : vector<8x96xf32> to vector<8x8xf32>
    %105 = vector.extract_strided_slice %84 {offsets = [0, 40], sizes = [8, 8], strides = [1, 1]} : vector<8x96xf32> to vector<8x8xf32>
    %106 = vector.extract_strided_slice %84 {offsets = [0, 72], sizes = [8, 8], strides = [1, 1]} : vector<8x96xf32> to vector<8x8xf32>
    %107 = tpu.transpose %105, [1, 0] : vector<8x8xf32> -> vector<8x8xf32>
    %cst_35 = arith.constant dense<0.000000e+00> : vector<8x8xf32>
    %108 = tpu.matmul %104, %107, %cst_35 {dimension_numbers = #tpu.dot_dimension_numbers<[1], [0], [0], [1], [0, 0, 1, 1], [], []>} : vector<8x8xf32>, vector<8x8xf32>, vector<8x8xf32> -> vector<8x8xf32>
    %cst_36 = arith.constant dense<0xFF800000> : vector<8xf32>
    %109 = vector.multi_reduction <maximumf>, %108, %cst_36 [1] : vector<8x8xf32> to vector<8xf32>
    %110 = vector.shape_cast %109 : vector<8xf32> to vector<8x1xf32>
    %111 = vector.broadcast %110 : vector<8x1xf32> to vector<8x8xf32>
    %112 = arith.subf %108, %111 : vector<8x8xf32>
    %113 = math.exp %112 : vector<8x8xf32>
    %cst_37 = arith.constant dense<0.000000e+00> : vector<8xf32>
    %114 = vector.multi_reduction <add>, %113, %cst_37 [1] : vector<8x8xf32> to vector<8xf32>
    %115 = vector.shape_cast %114 : vector<8xf32> to vector<8x1xf32>
    %116 = tpu.reciprocal %115 {approx = true} : vector<8x1xf32> -> vector<8x1xf32>
    %117 = vector.broadcast %116 : vector<8x1xf32> to vector<8x8xf32>
    %118 = arith.mulf %113, %117 : vector<8x8xf32>
    %cst_38 = arith.constant dense<0.000000e+00> : vector<8x8xf32>
    %119 = tpu.matmul %118, %106, %cst_38 {dimension_numbers = #tpu.dot_dimension_numbers<[1], [0], [0], [1], [0, 0, 1, 1], [], []>} : vector<8x8xf32>, vector<8x8xf32>, vector<8x8xf32> -> vector<8x8xf32>
    %c1_39 = arith.constant 1 : index
    %c0_40 = arith.constant 0 : index
    %c8_41 = arith.constant 8 : index
    %120 = vector.load %arg8[%c1_39, %c0_40, %c8_41] : memref<2x8x32xf32, #tpu.memory_space<vmem>>, vector<1x8x8xf32>
    %121 = vector.shape_cast %120 : vector<1x8x8xf32> to vector<8x8xf32>
    %122 = vector.shape_cast %119 : vector<8x8xf32> to vector<1x8x8xf32>
    tpu.vector_store %arg8[%c1_39, %c0_40, %c8_41], %122 {strides = array<i32>} : memref<2x8x32xf32, #tpu.memory_space<vmem>>, vector<1x8x8xf32>,
    %123 = vector.extract_strided_slice %84 {offsets = [0, 16], sizes = [8, 8], strides = [1, 1]} : vector<8x96xf32> to vector<8x8xf32>
    %124 = vector.extract_strided_slice %84 {offsets = [0, 48], sizes = [8, 8], strides = [1, 1]} : vector<8x96xf32> to vector<8x8xf32>
    %125 = vector.extract_strided_slice %84 {offsets = [0, 80], sizes = [8, 8], strides = [1, 1]} : vector<8x96xf32> to vector<8x8xf32>
    %126 = tpu.transpose %124, [1, 0] : vector<8x8xf32> -> vector<8x8xf32>
    %cst_42 = arith.constant dense<0.000000e+00> : vector<8x8xf32>
    %127 = tpu.matmul %123, %126, %cst_42 {dimension_numbers = #tpu.dot_dimension_numbers<[1], [0], [0], [1], [0, 0, 1, 1], [], []>} : vector<8x8xf32>, vector<8x8xf32>, vector<8x8xf32> -> vector<8x8xf32>
    %cst_43 = arith.constant dense<0xFF800000> : vector<8xf32>
    %128 = vector.multi_reduction <maximumf>, %127, %cst_43 [1] : vector<8x8xf32> to vector<8xf32>
    %129 = vector.shape_cast %128 : vector<8xf32> to vector<8x1xf32>
    %130 = vector.broadcast %129 : vector<8x1xf32> to vector<8x8xf32>
    %131 = arith.subf %127, %130 : vector<8x8xf32>
    %132 = math.exp %131 : vector<8x8xf32>
    %cst_44 = arith.constant dense<0.000000e+00> : vector<8xf32>
    %133 = vector.multi_reduction <add>, %132, %cst_44 [1] : vector<8x8xf32> to vector<8xf32>
    %134 = vector.shape_cast %133 : vector<8xf32> to vector<8x1xf32>
    %135 = tpu.reciprocal %134 {approx = true} : vector<8x1xf32> -> vector<8x1xf32>
    %136 = vector.broadcast %135 : vector<8x1xf32> to vector<8x8xf32>
    %137 = arith.mulf %132, %136 : vector<8x8xf32>
    %cst_45 = arith.constant dense<0.000000e+00> : vector<8x8xf32>
    %138 = tpu.matmul %137, %125, %cst_45 {dimension_numbers = #tpu.dot_dimension_numbers<[1], [0], [0], [1], [0, 0, 1, 1], [], []>} : vector<8x8xf32>, vector<8x8xf32>, vector<8x8xf32> -> vector<8x8xf32>
    %c1_46 = arith.constant 1 : index
    %c0_47 = arith.constant 0 : index
    %c16_48 = arith.constant 16 : index
    %139 = vector.load %arg8[%c1_46, %c0_47, %c16_48] : memref<2x8x32xf32, #tpu.memory_space<vmem>>, vector<1x8x8xf32>
    %140 = vector.shape_cast %139 : vector<1x8x8xf32> to vector<8x8xf32>
    %141 = vector.shape_cast %138 : vector<8x8xf32> to vector<1x8x8xf32>
    tpu.vector_store %arg8[%c1_46, %c0_47, %c16_48], %141 {strides = array<i32>} : memref<2x8x32xf32, #tpu.memory_space<vmem>>, vector<1x8x8xf32>,
    %142 = vector.extract_strided_slice %84 {offsets = [0, 24], sizes = [8, 8], strides = [1, 1]} : vector<8x96xf32> to vector<8x8xf32>
    %143 = vector.extract_strided_slice %84 {offsets = [0, 56], sizes = [8, 8], strides = [1, 1]} : vector<8x96xf32> to vector<8x8xf32>
    %144 = vector.extract_strided_slice %84 {offsets = [0, 88], sizes = [8, 8], strides = [1, 1]} : vector<8x96xf32> to vector<8x8xf32>
    %145 = tpu.transpose %143, [1, 0] : vector<8x8xf32> -> vector<8x8xf32>
    %cst_49 = arith.constant dense<0.000000e+00> : vector<8x8xf32>
    %146 = tpu.matmul %142, %145, %cst_49 {dimension_numbers = #tpu.dot_dimension_numbers<[1], [0], [0], [1], [0, 0, 1, 1], [], []>} : vector<8x8xf32>, vector<8x8xf32>, vector<8x8xf32> -> vector<8x8xf32>
    %cst_50 = arith.constant dense<0xFF800000> : vector<8xf32>
    %147 = vector.multi_reduction <maximumf>, %146, %cst_50 [1] : vector<8x8xf32> to vector<8xf32>
    %148 = vector.shape_cast %147 : vector<8xf32> to vector<8x1xf32>
    %149 = vector.broadcast %148 : vector<8x1xf32> to vector<8x8xf32>
    %150 = arith.subf %146, %149 : vector<8x8xf32>
    %151 = math.exp %150 : vector<8x8xf32>
    %cst_51 = arith.constant dense<0.000000e+00> : vector<8xf32>
    %152 = vector.multi_reduction <add>, %151, %cst_51 [1] : vector<8x8xf32> to vector<8xf32>
    %153 = vector.shape_cast %152 : vector<8xf32> to vector<8x1xf32>
    %154 = tpu.reciprocal %153 {approx = true} : vector<8x1xf32> -> vector<8x1xf32>
    %155 = vector.broadcast %154 : vector<8x1xf32> to vector<8x8xf32>
    %156 = arith.mulf %151, %155 : vector<8x8xf32>
    %cst_52 = arith.constant dense<0.000000e+00> : vector<8x8xf32>
    %157 = tpu.matmul %156, %144, %cst_52 {dimension_numbers = #tpu.dot_dimension_numbers<[1], [0], [0], [1], [0, 0, 1, 1], [], []>} : vector<8x8xf32>, vector<8x8xf32>, vector<8x8xf32> -> vector<8x8xf32>
    %c1_53 = arith.constant 1 : index
    %c0_54 = arith.constant 0 : index
    %c24_55 = arith.constant 24 : index
    %158 = vector.load %arg8[%c1_53, %c0_54, %c24_55] : memref<2x8x32xf32, #tpu.memory_space<vmem>>, vector<1x8x8xf32>
    %159 = vector.shape_cast %158 : vector<1x8x8xf32> to vector<8x8xf32>
    %160 = vector.shape_cast %157 : vector<8x8xf32> to vector<1x8x8xf32>
    tpu.vector_store %arg8[%c1_53, %c0_54, %c24_55], %160 {strides = array<i32>} : memref<2x8x32xf32, #tpu.memory_space<vmem>>, vector<1x8x8xf32>,
    %c0_56 = arith.constant 0 : index
    %c0_57 = arith.constant 0 : index
    %c0_58 = arith.constant 0 : index
    %161 = vector.load %arg8[%c0_56, %c0_57, %c0_58] : memref<2x8x32xf32, #tpu.memory_space<vmem>>, vector<2x8x32xf32>
    %162 = vector.shape_cast %161 : vector<2x8x32xf32> to vector<16x32xf32>
    %c0_59 = arith.constant 0 : index
    %c0_60 = arith.constant 0 : index
    %163 = vector.load %arg3[%c0_59, %c0_60] : memref<32x96xf32, #tpu.memory_space<vmem>>, vector<32x96xf32>
    %cst_61 = arith.constant dense<0.000000e+00> : vector<16x96xf32>
    %164 = tpu.matmul %162, %163, %cst_61 {dimension_numbers = #tpu.dot_dimension_numbers<[1], [0], [0], [1], [0, 0, 1, 1], [], []>} : vector<16x32xf32>, vector<32x96xf32>, vector<16x96xf32> -> vector<16x96xf32>
    %c0_62 = arith.constant 0 : index
    %c0_63 = arith.constant 0 : index
    %165 = vector.load %arg4[%c0_62, %c0_63] : memref<1x96xf32, #tpu.memory_space<vmem>>, vector<1x96xf32>
    %166 = vector.broadcast %165 : vector<1x96xf32> to vector<16x96xf32>
    %167 = arith.addf %164, %166 : vector<16x96xf32>
    %cst_64 = arith.constant 1.702000e+00 : f32
    %168 = vector.broadcast %cst_64 : f32 to vector<16x96xf32>
    %169 = arith.mulf %168, %167 : vector<16x96xf32>
    %170 = arith.negf %169 : vector<16x96xf32>
    %171 = math.exp %170 : vector<16x96xf32>
    %cst_65 = arith.constant 1.000000e+00 : f32
    %172 = vector.broadcast %cst_65 : f32 to vector<16x96xf32>
    %173 = arith.addf %172, %171 : vector<16x96xf32>
    %174 = arith.divf %172, %173 : vector<16x96xf32>
    %175 = arith.mulf %167, %174 : vector<16x96xf32>
    %c0_66 = arith.constant 0 : index
    %c0_67 = arith.constant 0 : index
    %176 = vector.load %arg5[%c0_66, %c0_67] : memref<96x32xf32, #tpu.memory_space<vmem>>, vector<96x32xf32>
    %cst_68 = arith.constant dense<0.000000e+00> : vector<16x32xf32>
    %177 = tpu.matmul %175, %176, %cst_68 {dimension_numbers = #tpu.dot_dimension_numbers<[1], [0], [0], [1], [0, 0, 1, 1], [], []>} : vector<16x96xf32>, vector<96x32xf32>, vector<16x32xf32> -> vector<16x32xf32>
    %c0_69 = arith.constant 0 : index
    %c0_70 = arith.constant 0 : index
    %178 = vector.load %arg6[%c0_69, %c0_70] : memref<1x32xf32, #tpu.memory_space<vmem>>, vector<1x32xf32>
    %179 = vector.broadcast %178 : vector<1x32xf32> to vector<16x32xf32>
    %180 = arith.addf %177, %179 : vector<16x32xf32>
    %181 = vector.shape_cast %180 : vector<16x32xf32> to vector<2x8x32xf32>
    %182 = arith.addf %0, %181 : vector<2x8x32xf32>
    %c0_71 = arith.constant 0 : index
    %c0_72 = arith.constant 0 : index
    %c0_73 = arith.constant 0 : index
    %183 = vector.load %arg7[%c0_71, %c0_72, %c0_73] : memref<2x8x32xf32, #tpu.memory_space<vmem>>, vector<2x8x32xf32>
    tpu.vector_store %arg7[%c0_71, %c0_72, %c0_73], %182 {strides = array<i32>} : memref<2x8x32xf32, #tpu.memory_space<vmem>>, vector<2x8x32xf32>,
    return
  }
  func.func @transform_0(%arg0: i32) -> (i32, i32, i32) {
    %c0_i32 = arith.constant 0 : i32
    %c0_i32_0 = arith.constant 0 : i32
    %c0_i32_1 = arith.constant 0 : i32
    return %arg0, %c0_i32, %c0_i32_0 : i32, i32, i32
  }
  func.func @transform_1(%arg0: i32) -> (i32, i32) {
    %c0_i32 = arith.constant 0 : i32
    %c0_i32_0 = arith.constant 0 : i32
    %c0_i32_1 = arith.constant 0 : i32
    return %c0_i32, %c0_i32_0 : i32, i32
  }
  func.func @transform_2(%arg0: i32) -> (i32, i32) {
    %c0_i32 = arith.constant 0 : i32
    %c0_i32_0 = arith.constant 0 : i32
    %c0_i32_1 = arith.constant 0 : i32
    return %c0_i32, %c0_i32_0 : i32, i32
  }
  func.func @transform_3(%arg0: i32) -> (i32, i32) {
    %c0_i32 = arith.constant 0 : i32
    %c0_i32_0 = arith.constant 0 : i32
    %c0_i32_1 = arith.constant 0 : i32
    return %c0_i32, %c0_i32_0 : i32, i32
  }
  func.func @transform_4(%arg0: i32) -> (i32, i32) {
    %c0_i32 = arith.constant 0 : i32
    %c0_i32_0 = arith.constant 0 : i32
    %c0_i32_1 = arith.constant 0 : i32
    return %c0_i32, %c0_i32_0 : i32, i32
  }
  func.func @transform_5(%arg0: i32) -> (i32, i32) {
    %c0_i32 = arith.constant 0 : i32
    %c0_i32_0 = arith.constant 0 : i32
    %c0_i32_1 = arith.constant 0 : i32
    return %c0_i32, %c0_i32_0 : i32, i32
  }
  func.func @transform_6(%arg0: i32) -> (i32, i32, i32) {
    %c0_i32 = arith.constant 0 : i32
    %c0_i32_0 = arith.constant 0 : i32
    %c0_i32_1 = arith.constant 0 : i32
    return %arg0, %c0_i32, %c0_i32_0 : i32, i32, i32
  }
}

module attributes {stable_mosaic.version = 11 : i64} {
  func.func @_rab_kernel_looped(%arg0: i32, %arg1: memref<2x8x32xf32, #tpu.memory_space<vmem>>, %arg2: memref<32x96xf32, #tpu.memory_space<vmem>>, %arg3: memref<32x96xf32, #tpu.memory_space<vmem>>, %arg4: memref<1x96xf32, #tpu.memory_space<vmem>>, %arg5: memref<96x32xf32, #tpu.memory_space<vmem>>, %arg6: memref<1x32xf32, #tpu.memory_space<vmem>>, %arg7: memref<2x8x32xf32, #tpu.memory_space<vmem>>, %arg8: memref<2x8x32xf32, #tpu.memory_space<vmem>>) attributes {dimension_semantics = [#tpu.dimension_semantics<parallel>], iteration_bounds = array<i64: 1>, scalar_prefetch = 0 : i64, scratch_operands = 1 : i64, tpu.core_type = #tpu.core_type<tc>, window_params = [{transform_indices = @transform_0, window_bounds = array<i64: 2, 8, 32>}, {pipeline_mode = #tpu.pipeline_mode<synchronous>, transform_indices = @transform_1, window_bounds = array<i64: 32, 96>}, {pipeline_mode = #tpu.pipeline_mode<synchronous>, transform_indices = @transform_2, window_bounds = array<i64: 32, 96>}, {pipeline_mode = #tpu.pipeline_mode<synchronous>, transform_indices = @transform_3, window_bounds = array<i64: 1, 96>}, {pipeline_mode = #tpu.pipeline_mode<synchronous>, transform_indices = @transform_4, window_bounds = array<i64: 96, 32>}, {pipeline_mode = #tpu.pipeline_mode<synchronous>, transform_indices = @transform_5, window_bounds = array<i64: 1, 32>}, {transform_indices = @transform_6, window_bounds = array<i64: 2, 8, 32>}]} {
    %c0 = arith.constant 0 : index
    %c0_0 = arith.constant 0 : index
    %c0_1 = arith.constant 0 : index
    %0 = vector.load %arg1[%c0, %c0_0, %c0_1] : memref<2x8x32xf32, #tpu.memory_space<vmem>>, vector<2x8x32xf32>
    %1 = vector.shape_cast %0 : vector<2x8x32xf32> to vector<16x32xf32>
    %c0_2 = arith.constant 0 : index
    %c0_3 = arith.constant 0 : index
    %2 = vector.load %arg2[%c0_2, %c0_3] : memref<32x96xf32, #tpu.memory_space<vmem>>, vector<32x96xf32>
    %cst = arith.constant dense<0.000000e+00> : vector<16x96xf32>
    %3 = tpu.matmul %1, %2, %cst {dimension_numbers = #tpu.dot_dimension_numbers<[1], [0], [0], [1], [0, 0, 1, 1], [], []>} : vector<16x32xf32>, vector<32x96xf32>, vector<16x96xf32> -> vector<16x96xf32>
    %4 = vector.shape_cast %3 : vector<16x96xf32> to vector<2x8x96xf32>
    %5 = vector.extract_strided_slice %4 {offsets = [0, 0, 0], sizes = [1, 8, 96], strides = [1, 1, 1]} : vector<2x8x96xf32> to vector<1x8x96xf32>
    %6 = vector.shape_cast %5 : vector<1x8x96xf32> to vector<8x96xf32>
    %7 = vector.extract_strided_slice %6 {offsets = [0, 0], sizes = [8, 8], strides = [1, 1]} : vector<8x96xf32> to vector<8x8xf32>
    %8 = vector.extract_strided_slice %6 {offsets = [0, 32], sizes = [8, 8], strides = [1, 1]} : vector<8x96xf32> to vector<8x8xf32>
    %9 = vector.extract_strided_slice %6 {offsets = [0, 64], sizes = [8, 8], strides = [1, 1]} : vector<8x96xf32> to vector<8x8xf32>
    %10 = tpu.transpose %8, [1, 0] : vector<8x8xf32> -> vector<8x8xf32>
    %cst_4 = arith.constant dense<0.000000e+00> : vector<8x8xf32>
    %11 = tpu.matmul %7, %10, %cst_4 {dimension_numbers = #tpu.dot_dimension_numbers<[1], [0], [0], [1], [0, 0, 1, 1], [], []>} : vector<8x8xf32>, vector<8x8xf32>, vector<8x8xf32> -> vector<8x8xf32>
    %cst_5 = arith.constant dense<0xFF800000> : vector<8xf32>
    %12 = vector.multi_reduction <maximumf>, %11, %cst_5 [1] : vector<8x8xf32> to vector<8xf32>
    %13 = vector.shape_cast %12 : vector<8xf32> to vector<8x1xf32>
    %14 = vector.broadcast %13 : vector<8x1xf32> to vector<8x8xf32>
    %15 = arith.subf %11, %14 : vector<8x8xf32>
    %16 = math.exp %15 : vector<8x8xf32>
    %cst_6 = arith.constant dense<0.000000e+00> : vector<8xf32>
    %17 = vector.multi_reduction <add>, %16, %cst_6 [1] : vector<8x8xf32> to vector<8xf32>
    %18 = vector.shape_cast %17 : vector<8xf32> to vector<8x1xf32>
    %19 = tpu.reciprocal %18 {approx = true} : vector<8x1xf32> -> vector<8x1xf32>
    %20 = vector.broadcast %19 : vector<8x1xf32> to vector<8x8xf32>
    %21 = arith.mulf %16, %20 : vector<8x8xf32>
    %cst_7 = arith.constant dense<0.000000e+00> : vector<8x8xf32>
    %22 = tpu.matmul %21, %9, %cst_7 {dimension_numbers = #tpu.dot_dimension_numbers<[1], [0], [0], [1], [0, 0, 1, 1], [], []>} : vector<8x8xf32>, vector<8x8xf32>, vector<8x8xf32> -> vector<8x8xf32>
    %c0_8 = arith.constant 0 : index
    %c0_9 = arith.constant 0 : index
    %c0_10 = arith.constant 0 : index
    %23 = vector.load %arg8[%c0_8, %c0_9, %c0_10] : memref<2x8x32xf32, #tpu.memory_space<vmem>>, vector<1x8x8xf32>
    %24 = vector.shape_cast %23 : vector<1x8x8xf32> to vector<8x8xf32>
    %25 = vector.shape_cast %22 : vector<8x8xf32> to vector<1x8x8xf32>
    tpu.vector_store %arg8[%c0_8, %c0_9, %c0_10], %25 {strides = array<i32>} : memref<2x8x32xf32, #tpu.memory_space<vmem>>, vector<1x8x8xf32>,
    %26 = vector.extract_strided_slice %6 {offsets = [0, 8], sizes = [8, 8], strides = [1, 1]} : vector<8x96xf32> to vector<8x8xf32>
    %27 = vector.extract_strided_slice %6 {offsets = [0, 40], sizes = [8, 8], strides = [1, 1]} : vector<8x96xf32> to vector<8x8xf32>
    %28 = vector.extract_strided_slice %6 {offsets = [0, 72], sizes = [8, 8], strides = [1, 1]} : vector<8x96xf32> to vector<8x8xf32>
    %29 = tpu.transpose %27, [1, 0] : vector<8x8xf32> -> vector<8x8xf32>
    %cst_11 = arith.constant dense<0.000000e+00> : vector<8x8xf32>
    %30 = tpu.matmul %26, %29, %cst_11 {dimension_numbers = #tpu.dot_dimension_numbers<[1], [0], [0], [1], [0, 0, 1, 1], [], []>} : vector<8x8xf32>, vector<8x8xf32>, vector<8x8xf32> -> vector<8x8xf32>
    %cst_12 = arith.constant dense<0xFF800000> : vector<8xf32>
    %31 = vector.multi_reduction <maximumf>, %30, %cst_12 [1] : vector<8x8xf32> to vector<8xf32>
    %32 = vector.shape_cast %31 : vector<8xf32> to vector<8x1xf32>
    %33 = vector.broadcast %32 : vector<8x1xf32> to vector<8x8xf32>
    %34 = arith.subf %30, %33 : vector<8x8xf32>
    %35 = math.exp %34 : vector<8x8xf32>
    %cst_13 = arith.constant dense<0.000000e+00> : vector<8xf32>
    %36 = vector.multi_reduction <add>, %35, %cst_13 [1] : vector<8x8xf32> to vector<8xf32>
    %37 = vector.shape_cast %36 : vector<8xf32> to vector<8x1xf32>
    %38 = tpu.reciprocal %37 {approx = true} : vector<8x1xf32> -> vector<8x1xf32>
    %39 = vector.broadcast %38 : vector<8x1xf32> to vector<8x8xf32>
    %40 = arith.mulf %35, %39 : vector<8x8xf32>
    %cst_14 = arith.constant dense<0.000000e+00> : vector<8x8xf32>
    %41 = tpu.matmul %40, %28, %cst_14 {dimension_numbers = #tpu.dot_dimension_numbers<[1], [0], [0], [1], [0, 0, 1, 1], [], []>} : vector<8x8xf32>, vector<8x8xf32>, vector<8x8xf32> -> vector<8x8xf32>
    %c0_15 = arith.constant 0 : index
    %c0_16 = arith.constant 0 : index
    %c8 = arith.constant 8 : index
    %42 = vector.load %arg8[%c0_15, %c0_16, %c8] : memref<2x8x32xf32, #tpu.memory_space<vmem>>, vector<1x8x8xf32>
    %43 = vector.shape_cast %42 : vector<1x8x8xf32> to vector<8x8xf32>
    %44 = vector.shape_cast %41 : vector<8x8xf32> to vector<1x8x8xf32>
    tpu.vector_store %arg8[%c0_15, %c0_16, %c8], %44 {strides = array<i32>} : memref<2x8x32xf32, #tpu.memory_space<vmem>>, vector<1x8x8xf32>,
    %45 = vector.extract_strided_slice %6 {offsets = [0, 16], sizes = [8, 8], strides = [1, 1]} : vector<8x96xf32> to vector<8x8xf32>
    %46 = vector.extract_strided_slice %6 {offsets = [0, 48], sizes = [8, 8], strides = [1, 1]} : vector<8x96xf32> to vector<8x8xf32>
    %47 = vector.extract_strided_slice %6 {offsets = [0, 80], sizes = [8, 8], strides = [1, 1]} : vector<8x96xf32> to vector<8x8xf32>
    %48 = tpu.transpose %46, [1, 0] : vector<8x8xf32> -> vector<8x8xf32>
    %cst_17 = arith.constant dense<0.000000e+00> : vector<8x8xf32>
    %49 = tpu.matmul %45, %48, %cst_17 {dimension_numbers = #tpu.dot_dimension_numbers<[1], [0], [0], [1], [0, 0, 1, 1], [], []>} : vector<8x8xf32>, vector<8x8xf32>, vector<8x8xf32> -> vector<8x8xf32>
    %cst_18 = arith.constant dense<0xFF800000> : vector<8xf32>
    %50 = vector.multi_reduction <maximumf>, %49, %cst_18 [1] : vector<8x8xf32> to vector<8xf32>
    %51 = vector.shape_cast %50 : vector<8xf32> to vector<8x1xf32>
    %52 = vector.broadcast %51 : vector<8x1xf32> to vector<8x8xf32>
    %53 = arith.subf %49, %52 : vector<8x8xf32>
    %54 = math.exp %53 : vector<8x8xf32>
    %cst_19 = arith.constant dense<0.000000e+00> : vector<8xf32>
    %55 = vector.multi_reduction <add>, %54, %cst_19 [1] : vector<8x8xf32> to vector<8xf32>
    %56 = vector.shape_cast %55 : vector<8xf32> to vector<8x1xf32>
    %57 = tpu.reciprocal %56 {approx = true} : vector<8x1xf32> -> vector<8x1xf32>
    %58 = vector.broadcast %57 : vector<8x1xf32> to vector<8x8xf32>
    %59 = arith.mulf %54, %58 : vector<8x8xf32>
    %cst_20 = arith.constant dense<0.000000e+00> : vector<8x8xf32>
    %60 = tpu.matmul %59, %47, %cst_20 {dimension_numbers = #tpu.dot_dimension_numbers<[1], [0], [0], [1], [0, 0, 1, 1], [], []>} : vector<8x8xf32>, vector<8x8xf32>, vector<8x8xf32> -> vector<8x8xf32>
    %c0_21 = arith.constant 0 : index
    %c0_22 = arith.constant 0 : index
    %c16 = arith.constant 16 : index
    %61 = vector.load %arg8[%c0_21, %c0_22, %c16] : memref<2x8x32xf32, #tpu.memory_space<vmem>>, vector<1x8x8xf32>
    %62 = vector.shape_cast %61 : vector<1x8x8xf32> to vector<8x8xf32>
    %63 = vector.shape_cast %60 : vector<8x8xf32> to vector<1x8x8xf32>
    tpu.vector_store %arg8[%c0_21, %c0_22, %c16], %63 {strides = array<i32>} : memref<2x8x32xf32, #tpu.memory_space<vmem>>, vector<1x8x8xf32>,
    %64 = vector.extract_strided_slice %6 {offsets = [0, 24], sizes = [8, 8], strides = [1, 1]} : vector<8x96xf32> to vector<8x8xf32>
    %65 = vector.extract_strided_slice %6 {offsets = [0, 56], sizes = [8, 8], strides = [1, 1]} : vector<8x96xf32> to vector<8x8xf32>
    %66 = vector.extract_strided_slice %6 {offsets = [0, 88], sizes = [8, 8], strides = [1, 1]} : vector<8x96xf32> to vector<8x8xf32>
    %67 = tpu.transpose %65, [1, 0] : vector<8x8xf32> -> vector<8x8xf32>
    %cst_23 = arith.constant dense<0.000000e+00> : vector<8x8xf32>
    %68 = tpu.matmul %64, %67, %cst_23 {dimension_numbers = #tpu.dot_dimension_numbers<[1], [0], [0], [1], [0, 0, 1, 1], [], []>} : vector<8x8xf32>, vector<8x8xf32>, vector<8x8xf32> -> vector<8x8xf32>
    %cst_24 = arith.constant dense<0xFF800000> : vector<8xf32>
    %69 = vector.multi_reduction <maximumf>, %68, %cst_24 [1] : vector<8x8xf32> to vector<8xf32>
    %70 = vector.shape_cast %69 : vector<8xf32> to vector<8x1xf32>
    %71 = vector.broadcast %70 : vector<8x1xf32> to vector<8x8xf32>
    %72 = arith.subf %68, %71 : vector<8x8xf32>
    %73 = math.exp %72 : vector<8x8xf32>
    %cst_25 = arith.constant dense<0.000000e+00> : vector<8xf32>
    %74 = vector.multi_reduction <add>, %73, %cst_25 [1] : vector<8x8xf32> to vector<8xf32>
    %75 = vector.shape_cast %74 : vector<8xf32> to vector<8x1xf32>
    %76 = tpu.reciprocal %75 {approx = true} : vector<8x1xf32> -> vector<8x1xf32>
    %77 = vector.broadcast %76 : vector<8x1xf32> to vector<8x8xf32>
    %78 = arith.mulf %73, %77 : vector<8x8xf32>
    %cst_26 = arith.constant dense<0.000000e+00> : vector<8x8xf32>
    %79 = tpu.matmul %78, %66, %cst_26 {dimension_numbers = #tpu.dot_dimension_numbers<[1], [0], [0], [1], [0, 0, 1, 1], [], []>} : vector<8x8xf32>, vector<8x8xf32>, vector<8x8xf32> -> vector<8x8xf32>
    %c0_27 = arith.constant 0 : index
    %c0_28 = arith.constant 0 : index
    %c24 = arith.constant 24 : index
    %80 = vector.load %arg8[%c0_27, %c0_28, %c24] : memref<2x8x32xf32, #tpu.memory_space<vmem>>, vector<1x8x8xf32>
    %81 = vector.shape_cast %80 : vector<1x8x8xf32> to vector<8x8xf32>
    %82 = vector.shape_cast %79 : vector<8x8xf32> to vector<1x8x8xf32>
    tpu.vector_store %arg8[%c0_27, %c0_28, %c24], %82 {strides = array<i32>} : memref<2x8x32xf32, #tpu.memory_space<vmem>>, vector<1x8x8xf32>,
    %83 = vector.extract_strided_slice %4 {offsets = [1, 0, 0], sizes = [1, 8, 96], strides = [1, 1, 1]} : vector<2x8x96xf32> to vector<1x8x96xf32>
    %84 = vector.shape_cast %83 : vector<1x8x96xf32> to vector<8x96xf32>
    %85 = vector.extract_strided_slice %84 {offsets = [0, 0], sizes = [8, 8], strides = [1, 1]} : vector<8x96xf32> to vector<8x8xf32>
    %86 = vector.extract_strided_slice %84 {offsets = [0, 32], sizes = [8, 8], strides = [1, 1]} : vector<8x96xf32> to vector<8x8xf32>
    %87 = vector.extract_strided_slice %84 {offsets = [0, 64], sizes = [8, 8], strides = [1, 1]} : vector<8x96xf32> to vector<8x8xf32>
    %88 = tpu.transpose %86, [1, 0] : vector<8x8xf32> -> vector<8x8xf32>
    %cst_29 = arith.constant dense<0.000000e+00> : vector<8x8xf32>
    %89 = tpu.matmul %85, %88, %cst_29 {dimension_numbers = #tpu.dot_dimension_numbers<[1], [0], [0], [1], [0, 0, 1, 1], [], []>} : vector<8x8xf32>, vector<8x8xf32>, vector<8x8xf32> -> vector<8x8xf32>
    %cst_30 = arith.constant dense<0xFF800000> : vector<8xf32>
    %90 = vector.multi_reduction <maximumf>, %89, %cst_30 [1] : vector<8x8xf32> to vector<8xf32>
    %91 = vector.shape_cast %90 : vector<8xf32> to vector<8x1xf32>
    %92 = vector.broadcast %91 : vector<8x1xf32> to vector<8x8xf32>
    %93 = arith.subf %89, %92 : vector<8x8xf32>
    %94 = math.exp %93 : vector<8x8xf32>
    %cst_31 = arith.constant dense<0.000000e+00> : vector<8xf32>
    %95 = vector.multi_reduction <add>, %94, %cst_31 [1] : vector<8x8xf32> to vector<8xf32>
    %96 = vector.shape_cast %95 : vector<8xf32> to vector<8x1xf32>
    %97 = tpu.reciprocal %96 {approx = true} : vector<8x1xf32> -> vector<8x1xf32>
    %98 = vector.broadcast %97 : vector<8x1xf32> to vector<8x8xf32>
    %99 = arith.mulf %94, %98 : vector<8x8xf32>
    %cst_32 = arith.constant dense<0.000000e+00> : vector<8x8xf32>
    %100 = tpu.matmul %99, %87, %cst_32 {dimension_numbers = #tpu.dot_dimension_numbers<[1], [0], [0], [1], [0, 0, 1, 1], [], []>} : vector<8x8xf32>, vector<8x8xf32>, vector<8x8xf32> -> vector<8x8xf32>
    %c1 = arith.constant 1 : index
    %c0_33 = arith.constant 0 : index
    %c0_34 = arith.constant 0 : index
    %101 = vector.load %arg8[%c1, %c0_33, %c0_34] : memref<2x8x32xf32, #tpu.memory_space<vmem>>, vector<1x8x8xf32>
    %102 = vector.shape_cast %101 : vector<1x8x8xf32> to vector<8x8xf32>
    %103 = vector.shape_cast %100 : vector<8x8xf32> to vector<1x8x8xf32>
    tpu.vector_store %arg8[%c1, %c0_33, %c0_34], %103 {strides = array<i32>} : memref<2x8x32xf32, #tpu.memory_space<vmem>>, vector<1x8x8xf32>,
    %104 = vector.extract_strided_slice %84 {offsets = [0, 8], sizes = [8, 8], strides = [1, 1]} : vector<8x96xf32> to vector<8x8xf32>
    %105 = vector.extract_strided_slice %84 {offsets = [0, 40], sizes = [8, 8], strides = [1, 1]} : vector<8x96xf32> to vector<8x8xf32>
    %106 = vector.extract_strided_slice %84 {offsets = [0, 72], sizes = [8, 8], strides = [1, 1]} : vector<8x96xf32> to vector<8x8xf32>
    %107 = tpu.transpose %105, [1, 0] : vector<8x8xf32> -> vector<8x8xf32>
    %cst_35 = arith.constant dense<0.000000e+00> : vector<8x8xf32>
    %108 = tpu.matmul %104, %107, %cst_35 {dimension_numbers = #tpu.dot_dimension_numbers<[1], [0], [0], [1], [0, 0, 1, 1], [], []>} : vector<8x8xf32>, vector<8x8xf32>, vector<8x8xf32> -> vector<8x8xf32>
    %cst_36 = arith.constant dense<0xFF800000> : vector<8xf32>
    %109 = vector.multi_reduction <maximumf>, %108, %cst_36 [1] : vector<8x8xf32> to vector<8xf32>
    %110 = vector.shape_cast %109 : vector<8xf32> to vector<8x1xf32>
    %111 = vector.broadcast %110 : vector<8x1xf32> to vector<8x8xf32>
    %112 = arith.subf %108, %111 : vector<8x8xf32>
    %113 = math.exp %112 : vector<8x8xf32>
    %cst_37 = arith.constant dense<0.000000e+00> : vector<8xf32>
    %114 = vector.multi_reduction <add>, %113, %cst_37 [1] : vector<8x8xf32> to vector<8xf32>
    %115 = vector.shape_cast %114 : vector<8xf32> to vector<8x1xf32>
    %116 = tpu.reciprocal %115 {approx = true} : vector<8x1xf32> -> vector<8x1xf32>
    %117 = vector.broadcast %116 : vector<8x1xf32> to vector<8x8xf32>
    %118 = arith.mulf %113, %117 : vector<8x8xf32>
    %cst_38 = arith.constant dense<0.000000e+00> : vector<8x8xf32>
    %119 = tpu.matmul %118, %106, %cst_38 {dimension_numbers = #tpu.dot_dimension_numbers<[1], [0], [0], [1], [0, 0, 1, 1], [], []>} : vector<8x8xf32>, vector<8x8xf32>, vector<8x8xf32> -> vector<8x8xf32>
    %c1_39 = arith.constant 1 : index
    %c0_40 = arith.constant 0 : index
    %c8_41 = arith.constant 8 : index
    %120 = vector.load %arg8[%c1_39, %c0_40, %c8_41] : memref<2x8x32xf32, #tpu.memory_space<vmem>>, vector<1x8x8xf32>
    %121 = vector.shape_cast %120 : vector<1x8x8xf32> to vector<8x8xf32>
    %122 = vector.shape_cast %119 : vector<8x8xf32> to vector<1x8x8xf32>
    tpu.vector_store %arg8[%c1_39, %c0_40, %c8_41], %122 {strides = array<i32>} : memref<2x8x32xf32, #tpu.memory_space<vmem>>, vector<1x8x8xf32>,
    %123 = vector.extract_strided_slice %84 {offsets = [0, 16], sizes = [8, 8], strides = [1, 1]} : vector<8x96xf32> to vector<8x8xf32>
    %124 = vector.extract_strided_slice %84 {offsets = [0, 48], sizes = [8, 8], strides = [1, 1]} : vector<8x96xf32> to vector<8x8xf32>
    %125 = vector.extract_strided_slice %84 {offsets = [0, 80], sizes = [8, 8], strides = [1, 1]} : vector<8x96xf32> to vector<8x8xf32>
    %126 = tpu.transpose %124, [1, 0] : vector<8x8xf32> -> vector<8x8xf32>
    %cst_42 = arith.constant dense<0.000000e+00> : vector<8x8xf32>
    %127 = tpu.matmul %123, %126, %cst_42 {dimension_numbers = #tpu.dot_dimension_numbers<[1], [0], [0], [1], [0, 0, 1, 1], [], []>} : vector<8x8xf32>, vector<8x8xf32>, vector<8x8xf32> -> vector<8x8xf32>
    %cst_43 = arith.constant dense<0xFF800000> : vector<8xf32>
    %128 = vector.multi_reduction <maximumf>, %127, %cst_43 [1] : vector<8x8xf32> to vector<8xf32>
    %129 = vector.shape_cast %128 : vector<8xf32> to vector<8x1xf32>
    %130 = vector.broadcast %129 : vector<8x1xf32> to vector<8x8xf32>
    %131 = arith.subf %127, %130 : vector<8x8xf32>
    %132 = math.exp %131 : vector<8x8xf32>
    %cst_44 = arith.constant dense<0.000000e+00> : vector<8xf32>
    %133 = vector.multi_reduction <add>, %132, %cst_44 [1] : vector<8x8xf32> to vector<8xf32>
    %134 = vector.shape_cast %133 : vector<8xf32> to vector<8x1xf32>
    %135 = tpu.reciprocal %134 {approx = true} : vector<8x1xf32> -> vector<8x1xf32>
    %136 = vector.broadcast %135 : vector<8x1xf32> to vector<8x8xf32>
    %137 = arith.mulf %132, %136 : vector<8x8xf32>
    %cst_45 = arith.constant dense<0.000000e+00> : vector<8x8xf32>
    %138 = tpu.matmul %137, %125, %cst_45 {dimension_numbers = #tpu.dot_dimension_numbers<[1], [0], [0], [1], [0, 0, 1, 1], [], []>} : vector<8x8xf32>, vector<8x8xf32>, vector<8x8xf32> -> vector<8x8xf32>
    %c1_46 = arith.constant 1 : index
    %c0_47 = arith.constant 0 : index
    %c16_48 = arith.constant 16 : index
    %139 = vector.load %arg8[%c1_46, %c0_47, %c16_48] : memref<2x8x32xf32, #tpu.memory_space<vmem>>, vector<1x8x8xf32>
    %140 = vector.shape_cast %139 : vector<1x8x8xf32> to vector<8x8xf32>
    %141 = vector.shape_cast %138 : vector<8x8xf32> to vector<1x8x8xf32>
    tpu.vector_store %arg8[%c1_46, %c0_47, %c16_48], %141 {strides = array<i32>} : memref<2x8x32xf32, #tpu.memory_space<vmem>>, vector<1x8x8xf32>,
    %142 = vector.extract_strided_slice %84 {offsets = [0, 24], sizes = [8, 8], strides = [1, 1]} : vector<8x96xf32> to vector<8x8xf32>
    %143 = vector.extract_strided_slice %84 {offsets = [0, 56], sizes = [8, 8], strides = [1, 1]} : vector<8x96xf32> to vector<8x8xf32>
    %144 = vector.extract_strided_slice %84 {offsets = [0, 88], sizes = [8, 8], strides = [1, 1]} : vector<8x96xf32> to vector<8x8xf32>
    %145 = tpu.transpose %143, [1, 0] : vector<8x8xf32> -> vector<8x8xf32>
    %cst_49 = arith.constant dense<0.000000e+00> : vector<8x8xf32>
    %146 = tpu.matmul %142, %145, %cst_49 {dimension_numbers = #tpu.dot_dimension_numbers<[1], [0], [0], [1], [0, 0, 1, 1], [], []>} : vector<8x8xf32>, vector<8x8xf32>, vector<8x8xf32> -> vector<8x8xf32>
    %cst_50 = arith.constant dense<0xFF800000> : vector<8xf32>
    %147 = vector.multi_reduction <maximumf>, %146, %cst_50 [1] : vector<8x8xf32> to vector<8xf32>
    %148 = vector.shape_cast %147 : vector<8xf32> to vector<8x1xf32>
    %149 = vector.broadcast %148 : vector<8x1xf32> to vector<8x8xf32>
    %150 = arith.subf %146, %149 : vector<8x8xf32>
    %151 = math.exp %150 : vector<8x8xf32>
    %cst_51 = arith.constant dense<0.000000e+00> : vector<8xf32>
    %152 = vector.multi_reduction <add>, %151, %cst_51 [1] : vector<8x8xf32> to vector<8xf32>
    %153 = vector.shape_cast %152 : vector<8xf32> to vector<8x1xf32>
    %154 = tpu.reciprocal %153 {approx = true} : vector<8x1xf32> -> vector<8x1xf32>
    %155 = vector.broadcast %154 : vector<8x1xf32> to vector<8x8xf32>
    %156 = arith.mulf %151, %155 : vector<8x8xf32>
    %cst_52 = arith.constant dense<0.000000e+00> : vector<8x8xf32>
    %157 = tpu.matmul %156, %144, %cst_52 {dimension_numbers = #tpu.dot_dimension_numbers<[1], [0], [0], [1], [0, 0, 1, 1], [], []>} : vector<8x8xf32>, vector<8x8xf32>, vector<8x8xf32> -> vector<8x8xf32>
    %c1_53 = arith.constant 1 : index
    %c0_54 = arith.constant 0 : index
    %c24_55 = arith.constant 24 : index
    %158 = vector.load %arg8[%c1_53, %c0_54, %c24_55] : memref<2x8x32xf32, #tpu.memory_space<vmem>>, vector<1x8x8xf32>
    %159 = vector.shape_cast %158 : vector<1x8x8xf32> to vector<8x8xf32>
    %160 = vector.shape_cast %157 : vector<8x8xf32> to vector<1x8x8xf32>
    tpu.vector_store %arg8[%c1_53, %c0_54, %c24_55], %160 {strides = array<i32>} : memref<2x8x32xf32, #tpu.memory_space<vmem>>, vector<1x8x8xf32>,
    %c0_56 = arith.constant 0 : index
    %c0_57 = arith.constant 0 : index
    %c0_58 = arith.constant 0 : index
    %161 = vector.load %arg8[%c0_56, %c0_57, %c0_58] : memref<2x8x32xf32, #tpu.memory_space<vmem>>, vector<2x8x32xf32>
    %162 = vector.shape_cast %161 : vector<2x8x32xf32> to vector<16x32xf32>
    %c0_59 = arith.constant 0 : index
    %c0_60 = arith.constant 0 : index
    %163 = vector.load %arg3[%c0_59, %c0_60] : memref<32x96xf32, #tpu.memory_space<vmem>>, vector<32x96xf32>
    %cst_61 = arith.constant dense<0.000000e+00> : vector<16x96xf32>
    %164 = tpu.matmul %162, %163, %cst_61 {dimension_numbers = #tpu.dot_dimension_numbers<[1], [0], [0], [1], [0, 0, 1, 1], [], []>} : vector<16x32xf32>, vector<32x96xf32>, vector<16x96xf32> -> vector<16x96xf32>
    %c0_62 = arith.constant 0 : index
    %c0_63 = arith.constant 0 : index
    %165 = vector.load %arg4[%c0_62, %c0_63] : memref<1x96xf32, #tpu.memory_space<vmem>>, vector<1x96xf32>
    %166 = vector.broadcast %165 : vector<1x96xf32> to vector<16x96xf32>
    %167 = arith.addf %164, %166 : vector<16x96xf32>
    %cst_64 = arith.constant 1.702000e+00 : f32
    %168 = vector.broadcast %cst_64 : f32 to vector<16x96xf32>
    %169 = arith.mulf %168, %167 : vector<16x96xf32>
    %170 = arith.negf %169 : vector<16x96xf32>
    %171 = math.exp %170 : vector<16x96xf32>
    %cst_65 = arith.constant 1.000000e+00 : f32
    %172 = vector.broadcast %cst_65 : f32 to vector<16x96xf32>
    %173 = arith.addf %172, %171 : vector<16x96xf32>
    %174 = arith.divf %172, %173 : vector<16x96xf32>
    %175 = arith.mulf %167, %174 : vector<16x96xf32>
    %c0_66 = arith.constant 0 : index
    %c0_67 = arith.constant 0 : index
    %176 = vector.load %arg5[%c0_66, %c0_67] : memref<96x32xf32, #tpu.memory_space<vmem>>, vector<96x32xf32>
    %cst_68 = arith.constant dense<0.000000e+00> : vector<16x32xf32>
    %177 = tpu.matmul %175, %176, %cst_68 {dimension_numbers = #tpu.dot_dimension_numbers<[1], [0], [0], [1], [0, 0, 1, 1], [], []>} : vector<16x96xf32>, vector<96x32xf32>, vector<16x32xf32> -> vector<16x32xf32>
    %c0_69 = arith.constant 0 : index
    %c0_70 = arith.constant 0 : index
    %178 = vector.load %arg6[%c0_69, %c0_70] : memref<1x32xf32, #tpu.memory_space<vmem>>, vector<1x32xf32>
    %179 = vector.broadcast %178 : vector<1x32xf32> to vector<16x32xf32>
    %180 = arith.addf %177, %179 : vector<16x32xf32>
    %181 = vector.shape_cast %180 : vector<16x32xf32> to vector<2x8x32xf32>
    %182 = arith.addf %0, %181 : vector<2x8x32xf32>
    %c0_71 = arith.constant 0 : index
    %c0_72 = arith.constant 0 : index
    %c0_73 = arith.constant 0 : index
    %183 = vector.load %arg7[%c0_71, %c0_72, %c0_73] : memref<2x8x32xf32, #tpu.memory_space<vmem>>, vector<2x8x32xf32>
    tpu.vector_store %arg7[%c0_71, %c0_72, %c0_73], %182 {strides = array<i32>} : memref<2x8x32xf32, #tpu.memory_space<vmem>>, vector<2x8x32xf32>,
    return
  }
  func.func @transform_0(%arg0: i32) -> (i32, i32, i32) {
    %c0_i32 = arith.constant 0 : i32
    %c0_i32_0 = arith.constant 0 : i32
    %c0_i32_1 = arith.constant 0 : i32
    return %arg0, %c0_i32, %c0_i32_0 : i32, i32, i32
  }
  func.func @transform_1(%arg0: i32) -> (i32, i32) {
    %c0_i32 = arith.constant 0 : i32
    %c0_i32_0 = arith.constant 0 : i32
    %c0_i32_1 = arith.constant 0 : i32
    return %c0_i32, %c0_i32_0 : i32, i32
  }
  func.func @transform_2(%arg0: i32) -> (i32, i32) {
    %c0_i32 = arith.constant 0 : i32
    %c0_i32_0 = arith.constant 0 : i32
    %c0_i32_1 = arith.constant 0 : i32
    return %c0_i32, %c0_i32_0 : i32, i32
  }
  func.func @transform_3(%arg0: i32) -> (i32, i32) {
    %c0_i32 = arith.constant 0 : i32
    %c0_i32_0 = arith.constant 0 : i32
    %c0_i32_1 = arith.constant 0 : i32
    return %c0_i32, %c0_i32_0 : i32, i32
  }
  func.func @transform_4(%arg0: i32) -> (i32, i32) {
    %c0_i32 = arith.constant 0 : i32
    %c0_i32_0 = arith.constant 0 : i32
    %c0_i32_1 = arith.constant 0 : i32
    return %c0_i32, %c0_i32_0 : i32, i32
  }
  func.func @transform_5(%arg0: i32) -> (i32, i32) {
    %c0_i32 = arith.constant 0 : i32
    %c0_i32_0 = arith.constant 0 : i32
    %c0_i32_1 = arith.constant 0 : i32
    return %c0_i32, %c0_i32_0 : i32, i32
  }
  func.func @transform_6(%arg0: i32) -> (i32, i32, i32) {
    %c0_i32 = arith.constant 0 : i32
    %c0_i32_0 = arith.constant 0 : i32
    %c0_i32_1 = arith.constant 0 : i32
    return %arg0, %c0_i32, %c0_i32_0 : i32, i32, i32
  }
}

</mosaic_0001>

<llo_original>
// kernel: tpu_custom_call.1
$region0: #{tpu_custom_call.1}
  #allocation0 [shape = 'u32[]', space=smem, size = 0x4, offset = 0x4, fixed_abs, tag = 'smem constant byte address 0x4 - core index']
  #allocation1 [shape = 'u32[144,128]{1,0:T(1,128)}', space=vmem, size = 0x12000, scoped, tag = 'internal scratch']
  #allocation2 [shape = 'f32[2,8,32]{2,1,0:T(8,128)}', space=vmem, size = 0x2000, scoped, tag = 'scratch operand']
  %s0 = inlined_call_operand.vmem [shape: f32[2,8,32], index: 0, kind: input, shape index: {}]
  %s1 = inlined_call_operand.vmem [shape: f32[32,96], index: 1, kind: input, shape index: {}]
  %s2 = inlined_call_operand.vmem [shape: f32[32,96], index: 2, kind: input, shape index: {}]
  %s3 = inlined_call_operand.vmem [shape: f32[1,96], index: 3, kind: input, shape index: {}]
  %s4 = inlined_call_operand.vmem [shape: f32[96,32], index: 4, kind: input, shape index: {}]
  %s5 = inlined_call_operand.vmem [shape: f32[1,32], index: 5, kind: input, shape index: {}]
  %s6 = inlined_call_operand.hbm [shape: f32[2,8,32], index: 6, kind: output, shape index: {}]
  %s7 = sld [smem:[#allocation0]]
  $region34: #{tpu_custom_call.1} parent=0
    _
  %s9 = ssub.s32 1, %s7
  %s10 = scalar_select 0, %s9, %s7
  $region1: #{tpu_custom_call.1} parent=0
    #allocation3 [shape = 'u8[8192]{0}', space=vmem, size = 0x2000, scoped, tag = 'output window, operand 0, single buffered']
    #allocation4 [shape = 's32[1]{0}', space=sflag, size = 0x4, scoped, tag = 'scoped memory for tpu_custom_call.1']
    %11 = vsyncpa [#allocation4], 0
    // Predicated region
    $region2: #{tpu_custom_call.1} parent=1 // pred_check
      _
    $region3: #{tpu_custom_call.1} parent=1 // pred_check_branch
      %13 = sbr.rel (0) target = $region5
    $region4: #{tpu_custom_call.1} parent=1 // pred_region
      _
    $region5: #{tpu_custom_call.1} parent=1 // pred_fallthru
      _
    // Predicated region
    $region6: #{tpu_custom_call.1} parent=1 // pred_check
      _
    $region7: #{tpu_custom_call.1} parent=1 // pred_check_branch
      %15 = sbr.rel (0) target = $region9
    $region8: #{tpu_custom_call.1} parent=1 // pred_region
      _
    $region9: #{tpu_custom_call.1} parent=1 // pred_fallthru
      _
    // Predicated region
    $region10: #{tpu_custom_call.1} parent=1 // pred_check
      _
    $region11: #{tpu_custom_call.1} parent=1 // pred_check_branch
      %17 = sbr.rel (0) target = $region13
    $region12: #{tpu_custom_call.1} parent=1 // pred_region
      _
    $region13: #{tpu_custom_call.1} parent=1 // pred_fallthru
      _
    // Predicated region
    $region14: #{tpu_custom_call.1} parent=1 // pred_check
      _
    $region15: #{tpu_custom_call.1} parent=1 // pred_check_branch
      %19 = sbr.rel (0) target = $region17
    $region16: #{tpu_custom_call.1} parent=1 // pred_region
      _
    $region17: #{tpu_custom_call.1} parent=1 // pred_fallthru
      _
    // Predicated region
    $region18: #{tpu_custom_call.1} parent=1 // pred_check
      _
    $region19: #{tpu_custom_call.1} parent=1 // pred_check_branch
      %21 = sbr.rel (0) target = $region21
    $region20: #{tpu_custom_call.1} parent=1 // pred_region
      _
    $region21: #{tpu_custom_call.1} parent=1 // pred_fallthru
      _
    // Predicated region
    $region22: #{tpu_custom_call.1} parent=1 // pred_check
      _
    $region23: #{tpu_custom_call.1} parent=1 // pred_check_branch
      %23 = sbr.rel (0) target = $region25
    $region24: #{tpu_custom_call.1} parent=1 // pred_region
      _
    $region25: #{tpu_custom_call.1} parent=1 // pred_fallthru
      _
    %v24 = vld [vmem:[%s0] sm:$0xff]
    %v25 = vld [vmem:[%s0 + $0x8] sm:$0xff]
    %v26 = vld [vmem:[%s1] sm:$0xff]
    %v27 = vld [vmem:[%s1 + $0x8] sm:$0xff]
    %v28 = vld [vmem:[%s1 + $0x10] sm:$0xff]
    %v29 = vld [vmem:[%s1 + $0x18] sm:$0xff]
    %vm30 = vcmask 261120
    %v32 = vsel %vm30, %v24, 0
    %v35 = vsel %vm30, %v25, 0
    %37 = vmatprep.subr.mxu0 0.0
    %38 = vmatpush1.msra.mxu0 %v26
    %39 = vmatprep.subr.mxu0 0.0
    %40 = vmatpush1.msra.mxu0 %v27
    %41 = vmatprep.subr.mxu0 0.0
    %42 = vmatpush1.msra.mxu0 %v28
    %43 = vmatprep.subr.mxu0 0.0
    %44 = vmatpush1.msra.mxu0 %v29
    %45 = vmatprep.subr.mxu0 0.0
    %46 = vmatpush1.msra.mxu0 0.0
    %47 = vmatprep.subr.mxu0 0.0
    %48 = vmatpush1.msra.mxu0 0.0
    %49 = vmatprep.subr.mxu0 0.0
    %50 = vmatpush1.msra.mxu0 0.0
    %51 = vmatprep.subr.mxu0 0.0
    %52 = vmatpush1.msra.mxu0 0.0
    %53 = vmatprep.subr.mxu0 0.0
    %54 = vmatpush1.msra.mxu0 0.0
    %55 = vmatprep.subr.mxu0 0.0
    %56 = vmatpush1.msra.mxu0 0.0
    %57 = vmatprep.subr.mxu0 0.0
    %58 = vmatpush1.msra.mxu0 0.0
    %59 = vmatprep.subr.mxu0 0.0
    %60 = vmatpush1.msra.mxu0 0.0
    %61 = vmatprep.subr.mxu0 0.0
    %62 = vmatpush1.msra.mxu0 0.0
    %63 = vmatprep.subr.mxu0 0.0
    %64 = vmatpush1.msra.mxu0 0.0
    %65 = vmatprep.subr.mxu0 0.0
    %66 = vmatpush1.msra.mxu0 0.0
    %67 = vmatprep.subr.mxu0 0.0
    %68 = vmatpush1.msra.mxu0 0.0
    %69 = vmatprep.subr.mxu0 0.0
    %70 = vmatpush1.msra.mxu0 0.0
    %71 = vmatprep.subr.mxu0 0.0
    %72 = vmatpush1.msra.mxu0 0.0
    %73 = vmatprep.subr.mxu0 0.0
    %74 = vmatpush1.msra.mxu0 0.0
    %75 = vmatprep.subr.mxu0 0.0
    %76 = vmatpush1.msra.mxu0 0.0
    %77 = vmatprep.subr.mxu0 0.0
    %78 = vmatpush1.msra.mxu0 0.0
    %79 = vmatprep.subr.mxu0 0.0
    %80 = vmatpush1.msra.mxu0 0.0
    %81 = vmatprep.subr.mxu0 0.0
    %82 = vmatpush1.msra.mxu0 0.0
    %83 = vmatprep.subr.mxu0 0.0
    %84 = vmatpush1.msra.mxu0 0.0
    %85 = vmatprep.subr.mxu0 0.0
    %86 = vmatpush1.msra.mxu0 0.0
    %87 = vmatprep.subr.mxu0 0.0
    %88 = vmatpush1.msra.mxu0 0.0
    %89 = vmatprep.subr.mxu0 0.0
    %90 = vmatpush1.msra.mxu0 0.0
    %91 = vmatprep.subr.mxu0 0.0
    %92 = vmatpush1.msra.mxu0 0.0
    %93 = vmatprep.subr.mxu0 0.0
    %94 = vmatpush1.msra.mxu0 0.0
    %95 = vmatprep.subr.mxu0 0.0
    %96 = vmatpush1.msra.mxu0 0.0
    %97 = vmatprep.subr.mxu0 0.0
    %98 = vmatpush1.msra.mxu0 0.0
    %99 = vmatprep.subr.mxu0 0.0
    %100 = vmatpush1.msra.mxu0 0.0
    %101 = vmatprep.mubr.f32.mxu0 0.0
    %102 = vmatmul.mubr.f32.gmra.mrb[0].mxu0 %v32
    %v103 = vpop.f32.mrb[0].mxu0
    %v104 = vadd.f32 0.0, %v103
    %v105 = vpop.f32.mrb[0].mxu0
    %106 = vmatprep.mubr.f32.mxu0 0.0
    %107 = vmatmul.mubr.f32.gmra.mrb[0].mxu0 %v35
    %v108 = vpop.f32.mrb[0].mxu0
    %v109 = vadd.f32 0.0, %v108
    %v110 = vpop.f32.mrb[0].mxu0
    %111 = vdwg.mxu0
    %113 = vrot.lane.b32.xlu0 %v104, 96
    %v114 = vpop.permute.xlu0 %113
    %vm115 = vcmask 64512
    %v116 = vsel %vm115, %v104, 0
    %v118 = vsel %vm115, %v114, 0
    %120 = vmatprep.subr.mxu0 0.0
    %121 = vmatpush1.xpose.msra.mxu0 %v118
    %122 = vmatprep.subr.mxu0 0.0
    %123 = vmatpush1.xpose.msra.mxu0 0.0
    %124 = vmatprep.subr.mxu0 0.0
    %125 = vmatpush1.xpose.msra.mxu0 0.0
    %126 = vmatprep.subr.mxu0 0.0
    %127 = vmatpush1.xpose.msra.mxu0 0.0
    %128 = vmatprep.subr.mxu0 0.0
    %129 = vmatpush1.xpose.msra.mxu0 0.0
    %130 = vmatprep.subr.mxu0 0.0
    %131 = vmatpush1.xpose.msra.mxu0 0.0
    %132 = vmatprep.subr.mxu0 0.0
    %133 = vmatpush1.xpose.msra.mxu0 0.0
    %134 = vmatprep.subr.mxu0 0.0
    %135 = vmatpush1.xpose.msra.mxu0 0.0
    %136 = vmatprep.subr.mxu0 0.0
    %137 = vmatpush1.xpose.msra.mxu0 0.0
    %138 = vmatprep.subr.mxu0 0.0
    %139 = vmatpush1.xpose.msra.mxu0 0.0
    %140 = vmatprep.subr.mxu0 0.0
    %141 = vmatpush1.xpose.msra.mxu0 0.0
    %142 = vmatprep.subr.mxu0 0.0
    %143 = vmatpush1.xpose.msra.mxu0 0.0
    %144 = vmatprep.subr.mxu0 0.0
    %145 = vmatpush1.xpose.msra.mxu0 0.0
    %146 = vmatprep.subr.mxu0 0.0
    %147 = vmatpush1.xpose.msra.mxu0 0.0
    %148 = vmatprep.subr.mxu0 0.0
    %149 = vmatpush1.xpose.msra.mxu0 0.0
    %150 = vmatprep.subr.mxu0 0.0
    %151 = vmatpush1.xpose.msra.mxu0 0.0
    %152 = vmatprep.subr.mxu0 0.0
    %153 = vmatpush1.xpose.msra.mxu0 0.0
    %154 = vmatprep.subr.mxu0 0.0
    %155 = vmatpush1.xpose.msra.mxu0 0.0
    %156 = vmatprep.subr.mxu0 0.0
    %157 = vmatpush1.xpose.msra.mxu0 0.0
    %158 = vmatprep.subr.mxu0 0.0
    %159 = vmatpush1.xpose.msra.mxu0 0.0
    %160 = vmatprep.subr.mxu0 0.0
    %161 = vmatpush1.xpose.msra.mxu0 0.0
    %162 = vmatprep.subr.mxu0 0.0
    %163 = vmatpush1.xpose.msra.mxu0 0.0
    %164 = vmatprep.subr.mxu0 0.0
    %165 = vmatpush1.xpose.msra.mxu0 0.0
    %166 = vmatprep.subr.mxu0 0.0
    %167 = vmatpush1.xpose.msra.mxu0 0.0
    %168 = vmatprep.subr.mxu0 0.0
    %169 = vmatpush1.xpose.msra.mxu0 0.0
    %170 = vmatprep.subr.mxu0 0.0
    %171 = vmatpush1.xpose.msra.mxu0 0.0
    %172 = vmatprep.subr.mxu0 0.0
    %173 = vmatpush1.xpose.msra.mxu0 0.0
    %174 = vmatprep.subr.mxu0 0.0
    %175 = vmatpush1.xpose.msra.mxu0 0.0
    %176 = vmatprep.subr.mxu0 0.0
    %177 = vmatpush1.xpose.msra.mxu0 0.0
    %178 = vmatprep.subr.mxu0 0.0
    %179 = vmatpush1.xpose.msra.mxu0 0.0
    %180 = vmatprep.subr.mxu0 0.0
    %181 = vmatpush1.xpose.msra.mxu0 0.0
    %182 = vmatprep.subr.mxu0 0.0
    %183 = vmatpush1.xpose.msra.mxu0 0.0
    %184 = vmatprep.mubr.f32.mxu0 0.0
    %185 = vmatmul.mubr.f32.gmra.mrb[0].mxu0 %v116
    %v186 = vpop.f32.mrb[0].mxu0
    %v187 = vadd.f32 0.0, %v186
    %v188 = vpop.f32.mrb[0].mxu0
    %189 = vdwg.mxu0
    %v190 = vsel %vm115, %v187, -inf
    %191 = vmax.xlane.f32.xlu0 %v190
    %v192 = vpop.xlane.xlu0 %191
    %v193 = vsub.f32 %v187, %v192
    %v194 = vmul.f32 %v193, 1.442695
    %v195 = vpow.pop %v194
    %v196 = vsel %vm115, %v195, 0.0
    %197 = vadd.xlane.f32.xlu0 %v196
    %v198 = vpop.xlane.xlu0 %197
    %v199 = vrcp.pop %v198
    %v200 = vmul.f32 %v195, %v199
    %201 = vrot.lane.b32.xlu0 %v104, 64
    %v202 = vpop.permute.xlu0 %201
    %v205 = vsel %vm115, %v200, 0
    %207 = vmatprep.subr.mxu0 0.0
    %208 = vmatpush1.msra.mxu0 %v202
    %209 = vmatprep.subr.mxu0 0.0
    %210 = vmatpush1.msra.mxu0 0.0
    %211 = vmatprep.subr.mxu0 0.0
    %212 = vmatpush1.msra.mxu0 0.0
    %213 = vmatprep.subr.mxu0 0.0
    %214 = vmatpush1.msra.mxu0 0.0
    %215 = vmatprep.subr.mxu0 0.0
    %216 = vmatpush1.msra.mxu0 0.0
    %217 = vmatprep.subr.mxu0 0.0
    %218 = vmatpush1.msra.mxu0 0.0
    %219 = vmatprep.subr.mxu0 0.0
    %220 = vmatpush1.msra.mxu0 0.0
    %221 = vmatprep.subr.mxu0 0.0
    %222 = vmatpush1.msra.mxu0 0.0
    %223 = vmatprep.subr.mxu0 0.0
    %224 = vmatpush1.msra.mxu0 0.0
    %225 = vmatprep.subr.mxu0 0.0
    %226 = vmatpush1.msra.mxu0 0.0
    %227 = vmatprep.subr.mxu0 0.0
    %228 = vmatpush1.msra.mxu0 0.0
    %229 = vmatprep.subr.mxu0 0.0
    %230 = vmatpush1.msra.mxu0 0.0
    %231 = vmatprep.subr.mxu0 0.0
    %232 = vmatpush1.msra.mxu0 0.0
    %233 = vmatprep.subr.mxu0 0.0
    %234 = vmatpush1.msra.mxu0 0.0
    %235 = vmatprep.subr.mxu0 0.0
    %236 = vmatpush1.msra.mxu0 0.0
    %237 = vmatprep.subr.mxu0 0.0
    %238 = vmatpush1.msra.mxu0 0.0
    %239 = vmatprep.subr.mxu0 0.0
    %240 = vmatpush1.msra.mxu0 0.0
    %241 = vmatprep.subr.mxu0 0.0
    %242 = vmatpush1.msra.mxu0 0.0
    %243 = vmatprep.subr.mxu0 0.0
    %244 = vmatpush1.msra.mxu0 0.0
    %245 = vmatprep.subr.mxu0 0.0
    %246 = vmatpush1.msra.mxu0 0.0
    %247 = vmatprep.subr.mxu0 0.0
    %248 = vmatpush1.msra.mxu0 0.0
    %249 = vmatprep.subr.mxu0 0.0
    %250 = vmatpush1.msra.mxu0 0.0
    %251 = vmatprep.subr.mxu0 0.0
    %252 = vmatpush1.msra.mxu0 0.0
    %253 = vmatprep.subr.mxu0 0.0
    %254 = vmatpush1.msra.mxu0 0.0
    %255 = vmatprep.subr.mxu0 0.0
    %256 = vmatpush1.msra.mxu0 0.0
    %257 = vmatprep.subr.mxu0 0.0
    %258 = vmatpush1.msra.mxu0 0.0
    %259 = vmatprep.subr.mxu0 0.0
    %260 = vmatpush1.msra.mxu0 0.0
    %261 = vmatprep.subr.mxu0 0.0
    %262 = vmatpush1.msra.mxu0 0.0
    %263 = vmatprep.subr.mxu0 0.0
    %264 = vmatpush1.msra.mxu0 0.0
    %265 = vmatprep.subr.mxu0 0.0
    %266 = vmatpush1.msra.mxu0 0.0
    %267 = vmatprep.subr.mxu0 0.0
    %268 = vmatpush1.msra.mxu0 0.0
    %269 = vmatprep.subr.mxu0 0.0
    %270 = vmatpush1.msra.mxu0 0.0
    %271 = vmatprep.mubr.f32.mxu0 0.0
    %272 = vmatmul.mubr.f32.gmra.mrb[0].mxu0 %v205
    %v273 = vpop.f32.mrb[0].mxu0
    %v274 = vadd.f32 0.0, %v273
    %v275 = vpop.f32.mrb[0].mxu0
    %276 = vdwg.mxu0
    %277 = vst.msk [vmem:[#allocation2] sm:$0xff] %vm115, %v274
    %278 = vrot.lane.b32.xlu0 %v104, 120
    %v279 = vpop.permute.xlu0 %278
    %280 = vrot.lane.b32.xlu0 %v104, 88
    %v281 = vpop.permute.xlu0 %280
    %v282 = vsel %vm115, %v279, 0
    %v284 = vsel %vm115, %v281, 0
    %286 = vmatprep.subr.mxu0 0.0
    %287 = vmatpush1.xpose.msra.mxu0 %v284
    %288 = vmatprep.subr.mxu0 0.0
    %289 = vmatpush1.xpose.msra.mxu0 0.0
    %290 = vmatprep.subr.mxu0 0.0
    %291 = vmatpush1.xpose.msra.mxu0 0.0
    %292 = vmatprep.subr.mxu0 0.0
    %293 = vmatpush1.xpose.msra.mxu0 0.0
    %294 = vmatprep.subr.mxu0 0.0
    %295 = vmatpush1.xpose.msra.mxu0 0.0
    %296 = vmatprep.subr.mxu0 0.0
    %297 = vmatpush1.xpose.msra.mxu0 0.0
    %298 = vmatprep.subr.mxu0 0.0
    %299 = vmatpush1.xpose.msra.mxu0 0.0
    %300 = vmatprep.subr.mxu0 0.0
    %301 = vmatpush1.xpose.msra.mxu0 0.0
    %302 = vmatprep.subr.mxu0 0.0
    %303 = vmatpush1.xpose.msra.mxu0 0.0
    %304 = vmatprep.subr.mxu0 0.0
    %305 = vmatpush1.xpose.msra.mxu0 0.0
    %306 = vmatprep.subr.mxu0 0.0
    %307 = vmatpush1.xpose.msra.mxu0 0.0
    %308 = vmatprep.subr.mxu0 0.0
    %309 = vmatpush1.xpose.msra.mxu0 0.0
    %310 = vmatprep.subr.mxu0 0.0
    %311 = vmatpush1.xpose.msra.mxu0 0.0
    %312 = vmatprep.subr.mxu0 0.0
    %313 = vmatpush1.xpose.msra.mxu0 0.0
    %314 = vmatprep.subr.mxu0 0.0
    %315 = vmatpush1.xpose.msra.mxu0 0.0
    %316 = vmatprep.subr.mxu0 0.0
    %317 = vmatpush1.xpose.msra.mxu0 0.0
    %318 = vmatprep.subr.mxu0 0.0
    %319 = vmatpush1.xpose.msra.mxu0 0.0
    %320 = vmatprep.subr.mxu0 0.0
    %321 = vmatpush1.xpose.msra.mxu0 0.0
    %322 = vmatprep.subr.mxu0 0.0
    %323 = vmatpush1.xpose.msra.mxu0 0.0
    %324 = vmatprep.subr.mxu0 0.0
    %325 = vmatpush1.xpose.msra.mxu0 0.0
    %326 = vmatprep.subr.mxu0 0.0
    %327 = vmatpush1.xpose.msra.mxu0 0.0
    %328 = vmatprep.subr.mxu0 0.0
    %329 = vmatpush1.xpose.msra.mxu0 0.0
    %330 = vmatprep.subr.mxu0 0.0
    %331 = vmatpush1.xpose.msra.mxu0 0.0
    %332 = vmatprep.subr.mxu0 0.0
    %333 = vmatpush1.xpose.msra.mxu0 0.0
    %334 = vmatprep.subr.mxu0 0.0
    %335 = vmatpush1.xpose.msra.mxu0 0.0
    %336 = vmatprep.subr.mxu0 0.0
    %337 = vmatpush1.xpose.msra.mxu0 0.0
    %338 = vmatprep.subr.mxu0 0.0
    %339 = vmatpush1.xpose.msra.mxu0 0.0
    %340 = vmatprep.subr.mxu0 0.0
    %341 = vmatpush1.xpose.msra.mxu0 0.0
    %342 = vmatprep.subr.mxu0 0.0
    %343 = vmatpush1.xpose.msra.mxu0 0.0
    %344 = vmatprep.subr.mxu0 0.0
    %345 = vmatpush1.xpose.msra.mxu0 0.0
    %346 = vmatprep.subr.mxu0 0.0
    %347 = vmatpush1.xpose.msra.mxu0 0.0
    %348 = vmatprep.subr.mxu0 0.0
    %349 = vmatpush1.xpose.msra.mxu0 0.0
    %350 = vmatprep.mubr.f32.mxu0 0.0
    %351 = vmatmul.mubr.f32.gmra.mrb[0].mxu0 %v282
    %v352 = vpop.f32.mrb[0].mxu0
    %v353 = vadd.f32 0.0, %v352
    %v354 = vpop.f32.mrb[0].mxu0
    %355 = vdwg.mxu0
    %v356 = vsel %vm115, %v353, -inf
    %357 = vmax.xlane.f32.xlu0 %v356
    %v358 = vpop.xlane.xlu0 %357
    %v359 = vsub.f32 %v353, %v358
    %v360 = vmul.f32 %v359, 1.442695
    %v361 = vpow.pop %v360
    %v362 = vsel %vm115, %v361, 0.0
    %363 = vadd.xlane.f32.xlu0 %v362
    %v364 = vpop.xlane.xlu0 %363
    %v365 = vrcp.pop %v364
    %v366 = vmul.f32 %v361, %v365
    %367 = vrot.lane.b32.xlu0 %v104, 56
    %v368 = vpop.permute.xlu0 %367
    %v371 = vsel %vm115, %v366, 0
    %373 = vmatprep.subr.mxu0 0.0
    %374 = vmatpush1.msra.mxu0 %v368
    %375 = vmatprep.subr.mxu0 0.0
    %376 = vmatpush1.msra.mxu0 0.0
    %377 = vmatprep.subr.mxu0 0.0
    %378 = vmatpush1.msra.mxu0 0.0
    %379 = vmatprep.subr.mxu0 0.0
    %380 = vmatpush1.msra.mxu0 0.0
    %381 = vmatprep.subr.mxu0 0.0
    %382 = vmatpush1.msra.mxu0 0.0
    %383 = vmatprep.subr.mxu0 0.0
    %384 = vmatpush1.msra.mxu0 0.0
    %385 = vmatprep.subr.mxu0 0.0
    %386 = vmatpush1.msra.mxu0 0.0
    %387 = vmatprep.subr.mxu0 0.0
    %388 = vmatpush1.msra.mxu0 0.0
    %389 = vmatprep.subr.mxu0 0.0
    %390 = vmatpush1.msra.mxu0 0.0
    %391 = vmatprep.subr.mxu0 0.0
    %392 = vmatpush1.msra.mxu0 0.0
    %393 = vmatprep.subr.mxu0 0.0
    %394 = vmatpush1.msra.mxu0 0.0
    %395 = vmatprep.subr.mxu0 0.0
    %396 = vmatpush1.msra.mxu0 0.0
    %397 = vmatprep.subr.mxu0 0.0
    %398 = vmatpush1.msra.mxu0 0.0
    %399 = vmatprep.subr.mxu0 0.0
    %400 = vmatpush1.msra.mxu0 0.0
    %401 = vmatprep.subr.mxu0 0.0
    %402 = vmatpush1.msra.mxu0 0.0
    %403 = vmatprep.subr.mxu0 0.0
    %404 = vmatpush1.msra.mxu0 0.0
    %405 = vmatprep.subr.mxu0 0.0
    %406 = vmatpush1.msra.mxu0 0.0
    %407 = vmatprep.subr.mxu0 0.0
    %408 = vmatpush1.msra.mxu0 0.0
    %409 = vmatprep.subr.mxu0 0.0
    %410 = vmatpush1.msra.mxu0 0.0
    %411 = vmatprep.subr.mxu0 0.0
    %412 = vmatpush1.msra.mxu0 0.0
    %413 = vmatprep.subr.mxu0 0.0
    %414 = vmatpush1.msra.mxu0 0.0
    %415 = vmatprep.subr.mxu0 0.0
    %416 = vmatpush1.msra.mxu0 0.0
    %417 = vmatprep.subr.mxu0 0.0
    %418 = vmatpush1.msra.mxu0 0.0
    %419 = vmatprep.subr.mxu0 0.0
    %420 = vmatpush1.msra.mxu0 0.0
    %421 = vmatprep.subr.mxu0 0.0
    %422 = vmatpush1.msra.mxu0 0.0
    %423 = vmatprep.subr.mxu0 0.0
    %424 = vmatpush1.msra.mxu0 0.0
    %425 = vmatprep.subr.mxu0 0.0
    %426 = vmatpush1.msra.mxu0 0.0
    %427 = vmatprep.subr.mxu0 0.0
    %428 = vmatpush1.msra.mxu0 0.0
    %429 = vmatprep.subr.mxu0 0.0
    %430 = vmatpush1.msra.mxu0 0.0
    %431 = vmatprep.subr.mxu0 0.0
    %432 = vmatpush1.msra.mxu0 0.0
    %433 = vmatprep.subr.mxu0 0.0
    %434 = vmatpush1.msra.mxu0 0.0
    %435 = vmatprep.subr.mxu0 0.0
    %436 = vmatpush1.msra.mxu0 0.0
    %437 = vmatprep.mubr.f32.mxu0 0.0
    %438 = vmatmul.mubr.f32.gmra.mrb[0].mxu0 %v371
    %v439 = vpop.f32.mrb[0].mxu0
    %v440 = vadd.f32 0.0, %v439
    %v441 = vpop.f32.mrb[0].mxu0
    %442 = vdwg.mxu0
    %444 = vrot.lane.b32.xlu0 %v440, 8
    %v445 = vpop.permute.xlu0 %444
    %vm447 = vcmask 130112
    %448 = vst.msk [vmem:[#allocation2] sm:$0xff] %vm447, %v445
    %449 = vrot.lane.b32.xlu0 %v104, 112
    %v450 = vpop.permute.xlu0 %449
    %451 = vrot.lane.b32.xlu0 %v104, 80
    %v452 = vpop.permute.xlu0 %451
    %v453 = vsel %vm115, %v450, 0
    %v455 = vsel %vm115, %v452, 0
    %457 = vmatprep.subr.mxu0 0.0
    %458 = vmatpush1.xpose.msra.mxu0 %v455
    %459 = vmatprep.subr.mxu0 0.0
    %460 = vmatpush1.xpose.msra.mxu0 0.0
    %461 = vmatprep.subr.mxu0 0.0
    %462 = vmatpush1.xpose.msra.mxu0 0.0
    %463 = vmatprep.subr.mxu0 0.0
    %464 = vmatpush1.xpose.msra.mxu0 0.0
    %465 = vmatprep.subr.mxu0 0.0
    %466 = vmatpush1.xpose.msra.mxu0 0.0
    %467 = vmatprep.subr.mxu0 0.0
    %468 = vmatpush1.xpose.msra.mxu0 0.0
    %469 = vmatprep.subr.mxu0 0.0
    %470 = vmatpush1.xpose.msra.mxu0 0.0
    %471 = vmatprep.subr.mxu0 0.0
    %472 = vmatpush1.xpose.msra.mxu0 0.0
    %473 = vmatprep.subr.mxu0 0.0
    %474 = vmatpush1.xpose.msra.mxu0 0.0
    %475 = vmatprep.subr.mxu0 0.0
    %476 = vmatpush1.xpose.msra.mxu0 0.0
    %477 = vmatprep.subr.mxu0 0.0
    %478 = vmatpush1.xpose.msra.mxu0 0.0
    %479 = vmatprep.subr.mxu0 0.0
    %480 = vmatpush1.xpose.msra.mxu0 0.0
    %481 = vmatprep.subr.mxu0 0.0
    %482 = vmatpush1.xpose.msra.mxu0 0.0
    %483 = vmatprep.subr.mxu0 0.0
    %484 = vmatpush1.xpose.msra.mxu0 0.0
    %485 = vmatprep.subr.mxu0 0.0
    %486 = vmatpush1.xpose.msra.mxu0 0.0
    %487 = vmatprep.subr.mxu0 0.0
    %488 = vmatpush1.xpose.msra.mxu0 0.0
    %489 = vmatprep.subr.mxu0 0.0
    %490 = vmatpush1.xpose.msra.mxu0 0.0
    %491 = vmatprep.subr.mxu0 0.0
    %492 = vmatpush1.xpose.msra.mxu0 0.0
    %493 = vmatprep.subr.mxu0 0.0
    %494 = vmatpush1.xpose.msra.mxu0 0.0
    %495 = vmatprep.subr.mxu0 0.0
    %496 = vmatpush1.xpose.msra.mxu0 0.0
    %497 = vmatprep.subr.mxu0 0.0
    %498 = vmatpush1.xpose.msra.mxu0 0.0
    %499 = vmatprep.subr.mxu0 0.0
    %500 = vmatpush1.xpose.msra.mxu0 0.0
    %501 = vmatprep.subr.mxu0 0.0
    %502 = vmatpush1.xpose.msra.mxu0 0.0
    %503 = vmatprep.subr.mxu0 0.0
    %504 = vmatpush1.xpose.msra.mxu0 0.0
    %505 = vmatprep.subr.mxu0 0.0
    %506 = vmatpush1.xpose.msra.mxu0 0.0
    %507 = vmatprep.subr.mxu0 0.0
    %508 = vmatpush1.xpose.msra.mxu0 0.0
    %509 = vmatprep.subr.mxu0 0.0
    %510 = vmatpush1.xpose.msra.mxu0 0.0
    %511 = vmatprep.subr.mxu0 0.0
    %512 = vmatpush1.xpose.msra.mxu0 0.0
    %513 = vmatprep.subr.mxu0 0.0
    %514 = vmatpush1.xpose.msra.mxu0 0.0
    %515 = vmatprep.subr.mxu0 0.0
    %516 = vmatpush1.xpose.msra.mxu0 0.0
    %517 = vmatprep.subr.mxu0 0.0
    %518 = vmatpush1.xpose.msra.mxu0 0.0
    %519 = vmatprep.subr.mxu0 0.0
    %520 = vmatpush1.xpose.msra.mxu0 0.0
    %521 = vmatprep.mubr.f32.mxu0 0.0
    %522 = vmatmul.mubr.f32.gmra.mrb[0].mxu0 %v453
    %v523 = vpop.f32.mrb[0].mxu0
    %v524 = vadd.f32 0.0, %v523
    %v525 = vpop.f32.mrb[0].mxu0
    %526 = vdwg.mxu0
    %v527 = vsel %vm115, %v524, -inf
    %528 = vmax.xlane.f32.xlu0 %v527
    %v529 = vpop.xlane.xlu0 %528
    %v530 = vsub.f32 %v524, %v529
    %v531 = vmul.f32 %v530, 1.442695
    %v532 = vpow.pop %v531
    %v533 = vsel %vm115, %v532, 0.0
    %534 = vadd.xlane.f32.xlu0 %v533
    %v535 = vpop.xlane.xlu0 %534
    %v536 = vrcp.pop %v535
    %v537 = vmul.f32 %v532, %v536
    %538 = vrot.lane.b32.xlu0 %v104, 48
    %v539 = vpop.permute.xlu0 %538
    %v542 = vsel %vm115, %v537, 0
    %544 = vmatprep.subr.mxu0 0.0
    %545 = vmatpush1.msra.mxu0 %v539
    %546 = vmatprep.subr.mxu0 0.0
    %547 = vmatpush1.msra.mxu0 0.0
    %548 = vmatprep.subr.mxu0 0.0
    %549 = vmatpush1.msra.mxu0 0.0
    %550 = vmatprep.subr.mxu0 0.0
    %551 = vmatpush1.msra.mxu0 0.0
    %552 = vmatprep.subr.mxu0 0.0
    %553 = vmatpush1.msra.mxu0 0.0
    %554 = vmatprep.subr.mxu0 0.0
    %555 = vmatpush1.msra.mxu0 0.0
    %556 = vmatprep.subr.mxu0 0.0
    %557 = vmatpush1.msra.mxu0 0.0
    %558 = vmatprep.subr.mxu0 0.0
    %559 = vmatpush1.msra.mxu0 0.0
    %560 = vmatprep.subr.mxu0 0.0
    %561 = vmatpush1.msra.mxu0 0.0
    %562 = vmatprep.subr.mxu0 0.0
    %563 = vmatpush1.msra.mxu0 0.0
    %564 = vmatprep.subr.mxu0 0.0
    %565 = vmatpush1.msra.mxu0 0.0
    %566 = vmatprep.subr.mxu0 0.0
    %567 = vmatpush1.msra.mxu0 0.0
    %568 = vmatprep.subr.mxu0 0.0
    %569 = vmatpush1.msra.mxu0 0.0
    %570 = vmatprep.subr.mxu0 0.0
    %571 = vmatpush1.msra.mxu0 0.0
    %572 = vmatprep.subr.mxu0 0.0
    %573 = vmatpush1.msra.mxu0 0.0
    %574 = vmatprep.subr.mxu0 0.0
    %575 = vmatpush1.msra.mxu0 0.0
    %576 = vmatprep.subr.mxu0 0.0
    %577 = vmatpush1.msra.mxu0 0.0
    %578 = vmatprep.subr.mxu0 0.0
    %579 = vmatpush1.msra.mxu0 0.0
    %580 = vmatprep.subr.mxu0 0.0
    %581 = vmatpush1.msra.mxu0 0.0
    %582 = vmatprep.subr.mxu0 0.0
    %583 = vmatpush1.msra.mxu0 0.0
    %584 = vmatprep.subr.mxu0 0.0
    %585 = vmatpush1.msra.mxu0 0.0
    %586 = vmatprep.subr.mxu0 0.0
    %587 = vmatpush1.msra.mxu0 0.0
    %588 = vmatprep.subr.mxu0 0.0
    %589 = vmatpush1.msra.mxu0 0.0
    %590 = vmatprep.subr.mxu0 0.0
    %591 = vmatpush1.msra.mxu0 0.0
    %592 = vmatprep.subr.mxu0 0.0
    %593 = vmatpush1.msra.mxu0 0.0
    %594 = vmatprep.subr.mxu0 0.0
    %595 = vmatpush1.msra.mxu0 0.0
    %596 = vmatprep.subr.mxu0 0.0
    %597 = vmatpush1.msra.mxu0 0.0
    %598 = vmatprep.subr.mxu0 0.0
    %599 = vmatpush1.msra.mxu0 0.0
    %600 = vmatprep.subr.mxu0 0.0
    %601 = vmatpush1.msra.mxu0 0.0
    %602 = vmatprep.subr.mxu0 0.0
    %603 = vmatpush1.msra.mxu0 0.0
    %604 = vmatprep.subr.mxu0 0.0
    %605 = vmatpush1.msra.mxu0 0.0
    %606 = vmatprep.subr.mxu0 0.0
    %607 = vmatpush1.msra.mxu0 0.0
    %608 = vmatprep.mubr.f32.mxu0 0.0
    %609 = vmatmul.mubr.f32.gmra.mrb[0].mxu0 %v542
    %v610 = vpop.f32.mrb[0].mxu0
    %v611 = vadd.f32 0.0, %v610
    %v612 = vpop.f32.mrb[0].mxu0
    %613 = vdwg.mxu0
    %615 = vrot.lane.b32.xlu0 %v611, 16
    %v616 = vpop.permute.xlu0 %615
    %vm618 = vcmask 195712
    %619 = vst.msk [vmem:[#allocation2] sm:$0xff] %vm618, %v616
    %620 = vrot.lane.b32.xlu0 %v104, 104
    %v621 = vpop.permute.xlu0 %620
    %622 = vrot.lane.b32.xlu0 %v104, 72
    %v623 = vpop.permute.xlu0 %622
    %v624 = vsel %vm115, %v621, 0
    %v626 = vsel %vm115, %v623, 0
    %628 = vmatprep.subr.mxu0 0.0
    %629 = vmatpush1.xpose.msra.mxu0 %v626
    %630 = vmatprep.subr.mxu0 0.0
    %631 = vmatpush1.xpose.msra.mxu0 0.0
    %632 = vmatprep.subr.mxu0 0.0
    %633 = vmatpush1.xpose.msra.mxu0 0.0
    %634 = vmatprep.subr.mxu0 0.0
    %635 = vmatpush1.xpose.msra.mxu0 0.0
    %636 = vmatprep.subr.mxu0 0.0
    %637 = vmatpush1.xpose.msra.mxu0 0.0
    %638 = vmatprep.subr.mxu0 0.0
    %639 = vmatpush1.xpose.msra.mxu0 0.0
    %640 = vmatprep.subr.mxu0 0.0
    %641 = vmatpush1.xpose.msra.mxu0 0.0
    %642 = vmatprep.subr.mxu0 0.0
    %643 = vmatpush1.xpose.msra.mxu0 0.0
    %644 = vmatprep.subr.mxu0 0.0
    %645 = vmatpush1.xpose.msra.mxu0 0.0
    %646 = vmatprep.subr.mxu0 0.0
    %647 = vmatpush1.xpose.msra.mxu0 0.0
    %648 = vmatprep.subr.mxu0 0.0
    %649 = vmatpush1.xpose.msra.mxu0 0.0
    %650 = vmatprep.subr.mxu0 0.0
    %651 = vmatpush1.xpose.msra.mxu0 0.0
    %652 = vmatprep.subr.mxu0 0.0
    %653 = vmatpush1.xpose.msra.mxu0 0.0
    %654 = vmatprep.subr.mxu0 0.0
    %655 = vmatpush1.xpose.msra.mxu0 0.0
    %656 = vmatprep.subr.mxu0 0.0
    %657 = vmatpush1.xpose.msra.mxu0 0.0
    %658 = vmatprep.subr.mxu0 0.0
    %659 = vmatpush1.xpose.msra.mxu0 0.0
    %660 = vmatprep.subr.mxu0 0.0
    %661 = vmatpush1.xpose.msra.mxu0 0.0
    %662 = vmatprep.subr.mxu0 0.0
    %663 = vmatpush1.xpose.msra.mxu0 0.0
    %664 = vmatprep.subr.mxu0 0.0
    %665 = vmatpush1.xpose.msra.mxu0 0.0
    %666 = vmatprep.subr.mxu0 0.0
    %667 = vmatpush1.xpose.msra.mxu0 0.0
    %668 = vmatprep.subr.mxu0 0.0
    %669 = vmatpush1.xpose.msra.mxu0 0.0
    %670 = vmatprep.subr.mxu0 0.0
    %671 = vmatpush1.xpose.msra.mxu0 0.0
    %672 = vmatprep.subr.mxu0 0.0
    %673 = vmatpush1.xpose.msra.mxu0 0.0
    %674 = vmatprep.subr.mxu0 0.0
    %675 = vmatpush1.xpose.msra.mxu0 0.0
    %676 = vmatprep.subr.mxu0 0.0
    %677 = vmatpush1.xpose.msra.mxu0 0.0
    %678 = vmatprep.subr.mxu0 0.0
    %679 = vmatpush1.xpose.msra.mxu0 0.0
    %680 = vmatprep.subr.mxu0 0.0
    %681 = vmatpush1.xpose.msra.mxu0 0.0
    %682 = vmatprep.subr.mxu0 0.0
    %683 = vmatpush1.xpose.msra.mxu0 0.0
    %684 = vmatprep.subr.mxu0 0.0
    %685 = vmatpush1.xpose.msra.mxu0 0.0
    %686 = vmatprep.subr.mxu0 0.0
    %687 = vmatpush1.xpose.msra.mxu0 0.0
    %688 = vmatprep.subr.mxu0 0.0
    %689 = vmatpush1.xpose.msra.mxu0 0.0
    %690 = vmatprep.subr.mxu0 0.0
    %691 = vmatpush1.xpose.msra.mxu0 0.0
    %692 = vmatprep.mubr.f32.mxu0 0.0
    %693 = vmatmul.mubr.f32.gmra.mrb[0].mxu0 %v624
    %v694 = vpop.f32.mrb[0].mxu0
    %v695 = vadd.f32 0.0, %v694
    %v696 = vpop.f32.mrb[0].mxu0
    %697 = vdwg.mxu0
    %v698 = vsel %vm115, %v695, -inf
    %699 = vmax.xlane.f32.xlu0 %v698
    %v700 = vpop.xlane.xlu0 %699
    %v701 = vsub.f32 %v695, %v700
    %v702 = vmul.f32 %v701, 1.442695
    %v703 = vpow.pop %v702
    %v704 = vsel %vm115, %v703, 0.0
    %705 = vadd.xlane.f32.xlu0 %v704
    %v706 = vpop.xlane.xlu0 %705
    %v707 = vrcp.pop %v706
    %v708 = vmul.f32 %v703, %v707
    %709 = vrot.lane.b32.xlu0 %v104, 40
    %v710 = vpop.permute.xlu0 %709
    %v713 = vsel %vm115, %v708, 0
    %715 = vmatprep.subr.mxu0 0.0
    %716 = vmatpush1.msra.mxu0 %v710
    %717 = vmatprep.subr.mxu0 0.0
    %718 = vmatpush1.msra.mxu0 0.0
    %719 = vmatprep.subr.mxu0 0.0
    %720 = vmatpush1.msra.mxu0 0.0
    %721 = vmatprep.subr.mxu0 0.0
    %722 = vmatpush1.msra.mxu0 0.0
    %723 = vmatprep.subr.mxu0 0.0
    %724 = vmatpush1.msra.mxu0 0.0
    %725 = vmatprep.subr.mxu0 0.0
    %726 = vmatpush1.msra.mxu0 0.0
    %727 = vmatprep.subr.mxu0 0.0
    %728 = vmatpush1.msra.mxu0 0.0
    %729 = vmatprep.subr.mxu0 0.0
    %730 = vmatpush1.msra.mxu0 0.0
    %731 = vmatprep.subr.mxu0 0.0
    %732 = vmatpush1.msra.mxu0 0.0
    %733 = vmatprep.subr.mxu0 0.0
    %734 = vmatpush1.msra.mxu0 0.0
    %735 = vmatprep.subr.mxu0 0.0
    %736 = vmatpush1.msra.mxu0 0.0
    %737 = vmatprep.subr.mxu0 0.0
    %738 = vmatpush1.msra.mxu0 0.0
    %739 = vmatprep.subr.mxu0 0.0
    %740 = vmatpush1.msra.mxu0 0.0
    %741 = vmatprep.subr.mxu0 0.0
    %742 = vmatpush1.msra.mxu0 0.0
    %743 = vmatprep.subr.mxu0 0.0
    %744 = vmatpush1.msra.mxu0 0.0
    %745 = vmatprep.subr.mxu0 0.0
    %746 = vmatpush1.msra.mxu0 0.0
    %747 = vmatprep.subr.mxu0 0.0
    %748 = vmatpush1.msra.mxu0 0.0
    %749 = vmatprep.subr.mxu0 0.0
    %750 = vmatpush1.msra.mxu0 0.0
    %751 = vmatprep.subr.mxu0 0.0
    %752 = vmatpush1.msra.mxu0 0.0
    %753 = vmatprep.subr.mxu0 0.0
    %754 = vmatpush1.msra.mxu0 0.0
    %755 = vmatprep.subr.mxu0 0.0
    %756 = vmatpush1.msra.mxu0 0.0
    %757 = vmatprep.subr.mxu0 0.0
    %758 = vmatpush1.msra.mxu0 0.0
    %759 = vmatprep.subr.mxu0 0.0
    %760 = vmatpush1.msra.mxu0 0.0
    %761 = vmatprep.subr.mxu0 0.0
    %762 = vmatpush1.msra.mxu0 0.0
    %763 = vmatprep.subr.mxu0 0.0
    %764 = vmatpush1.msra.mxu0 0.0
    %765 = vmatprep.subr.mxu0 0.0
    %766 = vmatpush1.msra.mxu0 0.0
    %767 = vmatprep.subr.mxu0 0.0
    %768 = vmatpush1.msra.mxu0 0.0
    %769 = vmatprep.subr.mxu0 0.0
    %770 = vmatpush1.msra.mxu0 0.0
    %771 = vmatprep.subr.mxu0 0.0
    %772 = vmatpush1.msra.mxu0 0.0
    %773 = vmatprep.subr.mxu0 0.0
    %774 = vmatpush1.msra.mxu0 0.0
    %775 = vmatprep.subr.mxu0 0.0
    %776 = vmatpush1.msra.mxu0 0.0
    %777 = vmatprep.subr.mxu0 0.0
    %778 = vmatpush1.msra.mxu0 0.0
    %779 = vmatprep.mubr.f32.mxu0 0.0
    %780 = vmatmul.mubr.f32.gmra.mrb[0].mxu0 %v713
    %v781 = vpop.f32.mrb[0].mxu0
    %v782 = vadd.f32 0.0, %v781
    %v783 = vpop.f32.mrb[0].mxu0
    %784 = vdwg.mxu0
    %786 = vrot.lane.b32.xlu0 %v782, 24
    %v787 = vpop.permute.xlu0 %786
    %vm789 = vcmask 261312
    %790 = vst.msk [vmem:[#allocation2] sm:$0xff] %vm789, %v787
    %792 = vrot.lane.b32.xlu0 %v109, 96
    %v793 = vpop.permute.xlu0 %792
    %v794 = vsel %vm115, %v109, 0
    %v796 = vsel %vm115, %v793, 0
    %798 = vmatprep.subr.mxu0 0.0
    %799 = vmatpush1.xpose.msra.mxu0 %v796
    %800 = vmatprep.subr.mxu0 0.0
    %801 = vmatpush1.xpose.msra.mxu0 0.0
    %802 = vmatprep.subr.mxu0 0.0
    %803 = vmatpush1.xpose.msra.mxu0 0.0
    %804 = vmatprep.subr.mxu0 0.0
    %805 = vmatpush1.xpose.msra.mxu0 0.0
    %806 = vmatprep.subr.mxu0 0.0
    %807 = vmatpush1.xpose.msra.mxu0 0.0
    %808 = vmatprep.subr.mxu0 0.0
    %809 = vmatpush1.xpose.msra.mxu0 0.0
    %810 = vmatprep.subr.mxu0 0.0
    %811 = vmatpush1.xpose.msra.mxu0 0.0
    %812 = vmatprep.subr.mxu0 0.0
    %813 = vmatpush1.xpose.msra.mxu0 0.0
    %814 = vmatprep.subr.mxu0 0.0
    %815 = vmatpush1.xpose.msra.mxu0 0.0
    %816 = vmatprep.subr.mxu0 0.0
    %817 = vmatpush1.xpose.msra.mxu0 0.0
    %818 = vmatprep.subr.mxu0 0.0
    %819 = vmatpush1.xpose.msra.mxu0 0.0
    %820 = vmatprep.subr.mxu0 0.0
    %821 = vmatpush1.xpose.msra.mxu0 0.0
    %822 = vmatprep.subr.mxu0 0.0
    %823 = vmatpush1.xpose.msra.mxu0 0.0
    %824 = vmatprep.subr.mxu0 0.0
    %825 = vmatpush1.xpose.msra.mxu0 0.0
    %826 = vmatprep.subr.mxu0 0.0
    %827 = vmatpush1.xpose.msra.mxu0 0.0
    %828 = vmatprep.subr.mxu0 0.0
    %829 = vmatpush1.xpose.msra.mxu0 0.0
    %830 = vmatprep.subr.mxu0 0.0
    %831 = vmatpush1.xpose.msra.mxu0 0.0
    %832 = vmatprep.subr.mxu0 0.0
    %833 = vmatpush1.xpose.msra.mxu0 0.0
    %834 = vmatprep.subr.mxu0 0.0
    %835 = vmatpush1.xpose.msra.mxu0 0.0
    %836 = vmatprep.subr.mxu0 0.0
    %837 = vmatpush1.xpose.msra.mxu0 0.0
    %838 = vmatprep.subr.mxu0 0.0
    %839 = vmatpush1.xpose.msra.mxu0 0.0
    %840 = vmatprep.subr.mxu0 0.0
    %841 = vmatpush1.xpose.msra.mxu0 0.0
    %842 = vmatprep.subr.mxu0 0.0
    %843 = vmatpush1.xpose.msra.mxu0 0.0
    %844 = vmatprep.subr.mxu0 0.0
    %845 = vmatpush1.xpose.msra.mxu0 0.0
    %846 = vmatprep.subr.mxu0 0.0
    %847 = vmatpush1.xpose.msra.mxu0 0.0
    %848 = vmatprep.subr.mxu0 0.0
    %849 = vmatpush1.xpose.msra.mxu0 0.0
    %850 = vmatprep.subr.mxu0 0.0
    %851 = vmatpush1.xpose.msra.mxu0 0.0
    %852 = vmatprep.subr.mxu0 0.0
    %853 = vmatpush1.xpose.msra.mxu0 0.0
    %854 = vmatprep.subr.mxu0 0.0
    %855 = vmatpush1.xpose.msra.mxu0 0.0
    %856 = vmatprep.subr.mxu0 0.0
    %857 = vmatpush1.xpose.msra.mxu0 0.0
    %858 = vmatprep.subr.mxu0 0.0
    %859 = vmatpush1.xpose.msra.mxu0 0.0
    %860 = vmatprep.subr.mxu0 0.0
    %861 = vmatpush1.xpose.msra.mxu0 0.0
    %862 = vmatprep.mubr.f32.mxu0 0.0
    %863 = vmatmul.mubr.f32.gmra.mrb[0].mxu0 %v794
    %v864 = vpop.f32.mrb[0].mxu0
    %v865 = vadd.f32 0.0, %v864
    %v866 = vpop.f32.mrb[0].mxu0
    %867 = vdwg.mxu0
    %v868 = vsel %vm115, %v865, -inf
    %869 = vmax.xlane.f32.xlu0 %v868
    %v870 = vpop.xlane.xlu0 %869
    %v871 = vsub.f32 %v865, %v870
    %v872 = vmul.f32 %v871, 1.442695
    %v873 = vpow.pop %v872
    %v874 = vsel %vm115, %v873, 0.0
    %875 = vadd.xlane.f32.xlu0 %v874
    %v876 = vpop.xlane.xlu0 %875
    %v877 = vrcp.pop %v876
    %v878 = vmul.f32 %v873, %v877
    %879 = vrot.lane.b32.xlu0 %v109, 64
    %v880 = vpop.permute.xlu0 %879
    %v883 = vsel %vm115, %v878, 0
    %885 = vmatprep.subr.mxu0 0.0
    %886 = vmatpush1.msra.mxu0 %v880
    %887 = vmatprep.subr.mxu0 0.0
    %888 = vmatpush1.msra.mxu0 0.0
    %889 = vmatprep.subr.mxu0 0.0
    %890 = vmatpush1.msra.mxu0 0.0
    %891 = vmatprep.subr.mxu0 0.0
    %892 = vmatpush1.msra.mxu0 0.0
    %893 = vmatprep.subr.mxu0 0.0
    %894 = vmatpush1.msra.mxu0 0.0
    %895 = vmatprep.subr.mxu0 0.0
    %896 = vmatpush1.msra.mxu0 0.0
    %897 = vmatprep.subr.mxu0 0.0
    %898 = vmatpush1.msra.mxu0 0.0
    %899 = vmatprep.subr.mxu0 0.0
    %900 = vmatpush1.msra.mxu0 0.0
    %901 = vmatprep.subr.mxu0 0.0
    %902 = vmatpush1.msra.mxu0 0.0
    %903 = vmatprep.subr.mxu0 0.0
    %904 = vmatpush1.msra.mxu0 0.0
    %905 = vmatprep.subr.mxu0 0.0
    %906 = vmatpush1.msra.mxu0 0.0
    %907 = vmatprep.subr.mxu0 0.0
    %908 = vmatpush1.msra.mxu0 0.0
    %909 = vmatprep.subr.mxu0 0.0
    %910 = vmatpush1.msra.mxu0 0.0
    %911 = vmatprep.subr.mxu0 0.0
    %912 = vmatpush1.msra.mxu0 0.0
    %913 = vmatprep.subr.mxu0 0.0
    %914 = vmatpush1.msra.mxu0 0.0
    %915 = vmatprep.subr.mxu0 0.0
    %916 = vmatpush1.msra.mxu0 0.0
    %917 = vmatprep.subr.mxu0 0.0
    %918 = vmatpush1.msra.mxu0 0.0
    %919 = vmatprep.subr.mxu0 0.0
    %920 = vmatpush1.msra.mxu0 0.0
    %921 = vmatprep.subr.mxu0 0.0
    %922 = vmatpush1.msra.mxu0 0.0
    %923 = vmatprep.subr.mxu0 0.0
    %924 = vmatpush1.msra.mxu0 0.0
    %925 = vmatprep.subr.mxu0 0.0
    %926 = vmatpush1.msra.mxu0 0.0
    %927 = vmatprep.subr.mxu0 0.0
    %928 = vmatpush1.msra.mxu0 0.0
    %929 = vmatprep.subr.mxu0 0.0
    %930 = vmatpush1.msra.mxu0 0.0
    %931 = vmatprep.subr.mxu0 0.0
    %932 = vmatpush1.msra.mxu0 0.0
    %933 = vmatprep.subr.mxu0 0.0
    %934 = vmatpush1.msra.mxu0 0.0
    %935 = vmatprep.subr.mxu0 0.0
    %936 = vmatpush1.msra.mxu0 0.0
    %937 = vmatprep.subr.mxu0 0.0
    %938 = vmatpush1.msra.mxu0 0.0
    %939 = vmatprep.subr.mxu0 0.0
    %940 = vmatpush1.msra.mxu0 0.0
    %941 = vmatprep.subr.mxu0 0.0
    %942 = vmatpush1.msra.mxu0 0.0
    %943 = vmatprep.subr.mxu0 0.0
    %944 = vmatpush1.msra.mxu0 0.0
    %945 = vmatprep.subr.mxu0 0.0
    %946 = vmatpush1.msra.mxu0 0.0
    %947 = vmatprep.subr.mxu0 0.0
    %948 = vmatpush1.msra.mxu0 0.0
    %949 = vmatprep.mubr.f32.mxu0 0.0
    %950 = vmatmul.mubr.f32.gmra.mrb[0].mxu0 %v883
    %v951 = vpop.f32.mrb[0].mxu0
    %v952 = vadd.f32 0.0, %v951
    %v953 = vpop.f32.mrb[0].mxu0
    %954 = vdwg.mxu0
    %s955 = scalar_lea.vmem [#allocation2], 8
    %956 = vst.msk [vmem:[%s955] sm:$0xff] %vm115, %v952
    %957 = vrot.lane.b32.xlu0 %v109, 120
    %v958 = vpop.permute.xlu0 %957
    %959 = vrot.lane.b32.xlu0 %v109, 88
    %v960 = vpop.permute.xlu0 %959
    %v961 = vsel %vm115, %v958, 0
    %v963 = vsel %vm115, %v960, 0
    %965 = vmatprep.subr.mxu0 0.0
    %966 = vmatpush1.xpose.msra.mxu0 %v963
    %967 = vmatprep.subr.mxu0 0.0
    %968 = vmatpush1.xpose.msra.mxu0 0.0
    %969 = vmatprep.subr.mxu0 0.0
    %970 = vmatpush1.xpose.msra.mxu0 0.0
    %971 = vmatprep.subr.mxu0 0.0
    %972 = vmatpush1.xpose.msra.mxu0 0.0
    %973 = vmatprep.subr.mxu0 0.0
    %974 = vmatpush1.xpose.msra.mxu0 0.0
    %975 = vmatprep.subr.mxu0 0.0
    %976 = vmatpush1.xpose.msra.mxu0 0.0
    %977 = vmatprep.subr.mxu0 0.0
    %978 = vmatpush1.xpose.msra.mxu0 0.0
    %979 = vmatprep.subr.mxu0 0.0
    %980 = vmatpush1.xpose.msra.mxu0 0.0
    %981 = vmatprep.subr.mxu0 0.0
    %982 = vmatpush1.xpose.msra.mxu0 0.0
    %983 = vmatprep.subr.mxu0 0.0
    %984 = vmatpush1.xpose.msra.mxu0 0.0
    %985 = vmatprep.subr.mxu0 0.0
    %986 = vmatpush1.xpose.msra.mxu0 0.0
    %987 = vmatprep.subr.mxu0 0.0
    %988 = vmatpush1.xpose.msra.mxu0 0.0
    %989 = vmatprep.subr.mxu0 0.0
    %990 = vmatpush1.xpose.msra.mxu0 0.0
    %991 = vmatprep.subr.mxu0 0.0
    %992 = vmatpush1.xpose.msra.mxu0 0.0
    %993 = vmatprep.subr.mxu0 0.0
    %994 = vmatpush1.xpose.msra.mxu0 0.0
    %995 = vmatprep.subr.mxu0 0.0
    %996 = vmatpush1.xpose.msra.mxu0 0.0
    %997 = vmatprep.subr.mxu0 0.0
    %998 = vmatpush1.xpose.msra.mxu0 0.0
    %999 = vmatprep.subr.mxu0 0.0
    %1000 = vmatpush1.xpose.msra.mxu0 0.0
    %1001 = vmatprep.subr.mxu0 0.0
    %1002 = vmatpush1.xpose.msra.mxu0 0.0
    %1003 = vmatprep.subr.mxu0 0.0
    %1004 = vmatpush1.xpose.msra.mxu0 0.0
    %1005 = vmatprep.subr.mxu0 0.0
    %1006 = vmatpush1.xpose.msra.mxu0 0.0
    %1007 = vmatprep.subr.mxu0 0.0
    %1008 = vmatpush1.xpose.msra.mxu0 0.0
    %1009 = vmatprep.subr.mxu0 0.0
    %1010 = vmatpush1.xpose.msra.mxu0 0.0
    %1011 = vmatprep.subr.mxu0 0.0
    %1012 = vmatpush1.xpose.msra.mxu0 0.0
    %1013 = vmatprep.subr.mxu0 0.0
    %1014 = vmatpush1.xpose.msra.mxu0 0.0
    %1015 = vmatprep.subr.mxu0 0.0
    %1016 = vmatpush1.xpose.msra.mxu0 0.0
    %1017 = vmatprep.subr.mxu0 0.0
    %1018 = vmatpush1.xpose.msra.mxu0 0.0
    %1019 = vmatprep.subr.mxu0 0.0
    %1020 = vmatpush1.xpose.msra.mxu0 0.0
    %1021 = vmatprep.subr.mxu0 0.0
    %1022 = vmatpush1.xpose.msra.mxu0 0.0
    %1023 = vmatprep.subr.mxu0 0.0
    %1024 = vmatpush1.xpose.msra.mxu0 0.0
    %1025 = vmatprep.subr.mxu0 0.0
    %1026 = vmatpush1.xpose.msra.mxu0 0.0
    %1027 = vmatprep.subr.mxu0 0.0
    %1028 = vmatpush1.xpose.msra.mxu0 0.0
    %1029 = vmatprep.mubr.f32.mxu0 0.0
    %1030 = vmatmul.mubr.f32.gmra.mrb[0].mxu0 %v961
    %v1031 = vpop.f32.mrb[0].mxu0
    %v1032 = vadd.f32 0.0, %v1031
    %v1033 = vpop.f32.mrb[0].mxu0
    %1034 = vdwg.mxu0
    %v1035 = vsel %vm115, %v1032, -inf
    %1036 = vmax.xlane.f32.xlu0 %v1035
    %v1037 = vpop.xlane.xlu0 %1036
    %v1038 = vsub.f32 %v1032, %v1037
    %v1039 = vmul.f32 %v1038, 1.442695
    %v1040 = vpow.pop %v1039
    %v1041 = vsel %vm115, %v1040, 0.0
    %1042 = vadd.xlane.f32.xlu0 %v1041
    %v1043 = vpop.xlane.xlu0 %1042
    %v1044 = vrcp.pop %v1043
    %v1045 = vmul.f32 %v1040, %v1044
    %1046 = vrot.lane.b32.xlu0 %v109, 56
    %v1047 = vpop.permute.xlu0 %1046
    %v1050 = vsel %vm115, %v1045, 0
    %1052 = vmatprep.subr.mxu0 0.0
    %1053 = vmatpush1.msra.mxu0 %v1047
    %1054 = vmatprep.subr.mxu0 0.0
    %1055 = vmatpush1.msra.mxu0 0.0
    %1056 = vmatprep.subr.mxu0 0.0
    %1057 = vmatpush1.msra.mxu0 0.0
    %1058 = vmatprep.subr.mxu0 0.0
    %1059 = vmatpush1.msra.mxu0 0.0
    %1060 = vmatprep.subr.mxu0 0.0
    %1061 = vmatpush1.msra.mxu0 0.0
    %1062 = vmatprep.subr.mxu0 0.0
    %1063 = vmatpush1.msra.mxu0 0.0
    %1064 = vmatprep.subr.mxu0 0.0
    %1065 = vmatpush1.msra.mxu0 0.0
    %1066 = vmatprep.subr.mxu0 0.0
    %1067 = vmatpush1.msra.mxu0 0.0
    %1068 = vmatprep.subr.mxu0 0.0
    %1069 = vmatpush1.msra.mxu0 0.0
    %1070 = vmatprep.subr.mxu0 0.0
    %1071 = vmatpush1.msra.mxu0 0.0
    %1072 = vmatprep.subr.mxu0 0.0
    %1073 = vmatpush1.msra.mxu0 0.0
    %1074 = vmatprep.subr.mxu0 0.0
    %1075 = vmatpush1.msra.mxu0 0.0
    %1076 = vmatprep.subr.mxu0 0.0
    %1077 = vmatpush1.msra.mxu0 0.0
    %1078 = vmatprep.subr.mxu0 0.0
    %1079 = vmatpush1.msra.mxu0 0.0
    %1080 = vmatprep.subr.mxu0 0.0
    %1081 = vmatpush1.msra.mxu0 0.0
    %1082 = vmatprep.subr.mxu0 0.0
    %1083 = vmatpush1.msra.mxu0 0.0
    %1084 = vmatprep.subr.mxu0 0.0
    %1085 = vmatpush1.msra.mxu0 0.0
    %1086 = vmatprep.subr.mxu0 0.0
    %1087 = vmatpush1.msra.mxu0 0.0
    %1088 = vmatprep.subr.mxu0 0.0
    %1089 = vmatpush1.msra.mxu0 0.0
    %1090 = vmatprep.subr.mxu0 0.0
    %1091 = vmatpush1.msra.mxu0 0.0
    %1092 = vmatprep.subr.mxu0 0.0
    %1093 = vmatpush1.msra.mxu0 0.0
    %1094 = vmatprep.subr.mxu0 0.0
    %1095 = vmatpush1.msra.mxu0 0.0
    %1096 = vmatprep.subr.mxu0 0.0
    %1097 = vmatpush1.msra.mxu0 0.0
    %1098 = vmatprep.subr.mxu0 0.0
    %1099 = vmatpush1.msra.mxu0 0.0
    %1100 = vmatprep.subr.mxu0 0.0
    %1101 = vmatpush1.msra.mxu0 0.0
    %1102 = vmatprep.subr.mxu0 0.0
    %1103 = vmatpush1.msra.mxu0 0.0
    %1104 = vmatprep.subr.mxu0 0.0
    %1105 = vmatpush1.msra.mxu0 0.0
    %1106 = vmatprep.subr.mxu0 0.0
    %1107 = vmatpush1.msra.mxu0 0.0
    %1108 = vmatprep.subr.mxu0 0.0
    %1109 = vmatpush1.msra.mxu0 0.0
    %1110 = vmatprep.subr.mxu0 0.0
    %1111 = vmatpush1.msra.mxu0 0.0
    %1112 = vmatprep.subr.mxu0 0.0
    %1113 = vmatpush1.msra.mxu0 0.0
    %1114 = vmatprep.subr.mxu0 0.0
    %1115 = vmatpush1.msra.mxu0 0.0
    %1116 = vmatprep.mubr.f32.mxu0 0.0
    %1117 = vmatmul.mubr.f32.gmra.mrb[0].mxu0 %v1050
    %v1118 = vpop.f32.mrb[0].mxu0
    %v1119 = vadd.f32 0.0, %v1118
    %v1120 = vpop.f32.mrb[0].mxu0
    %1121 = vdwg.mxu0
    %1123 = vrot.lane.b32.xlu0 %v1119, 8
    %v1124 = vpop.permute.xlu0 %1123
    %1126 = vst.msk [vmem:[%s955] sm:$0xff] %vm447, %v1124
    %1127 = vrot.lane.b32.xlu0 %v109, 112
    %v1128 = vpop.permute.xlu0 %1127
    %1129 = vrot.lane.b32.xlu0 %v109, 80
    %v1130 = vpop.permute.xlu0 %1129
    %v1131 = vsel %vm115, %v1128, 0
    %v1133 = vsel %vm115, %v1130, 0
    %1135 = vmatprep.subr.mxu0 0.0
    %1136 = vmatpush1.xpose.msra.mxu0 %v1133
    %1137 = vmatprep.subr.mxu0 0.0
    %1138 = vmatpush1.xpose.msra.mxu0 0.0
    %1139 = vmatprep.subr.mxu0 0.0
    %1140 = vmatpush1.xpose.msra.mxu0 0.0
    %1141 = vmatprep.subr.mxu0 0.0
    %1142 = vmatpush1.xpose.msra.mxu0 0.0
    %1143 = vmatprep.subr.mxu0 0.0
    %1144 = vmatpush1.xpose.msra.mxu0 0.0
    %1145 = vmatprep.subr.mxu0 0.0
    %1146 = vmatpush1.xpose.msra.mxu0 0.0
    %1147 = vmatprep.subr.mxu0 0.0
    %1148 = vmatpush1.xpose.msra.mxu0 0.0
    %1149 = vmatprep.subr.mxu0 0.0
    %1150 = vmatpush1.xpose.msra.mxu0 0.0
    %1151 = vmatprep.subr.mxu0 0.0
    %1152 = vmatpush1.xpose.msra.mxu0 0.0
    %1153 = vmatprep.subr.mxu0 0.0
    %1154 = vmatpush1.xpose.msra.mxu0 0.0
    %1155 = vmatprep.subr.mxu0 0.0
    %1156 = vmatpush1.xpose.msra.mxu0 0.0
    %1157 = vmatprep.subr.mxu0 0.0
    %1158 = vmatpush1.xpose.msra.mxu0 0.0
    %1159 = vmatprep.subr.mxu0 0.0
    %1160 = vmatpush1.xpose.msra.mxu0 0.0
    %1161 = vmatprep.subr.mxu0 0.0
    %1162 = vmatpush1.xpose.msra.mxu0 0.0
    %1163 = vmatprep.subr.mxu0 0.0
    %1164 = vmatpush1.xpose.msra.mxu0 0.0
    %1165 = vmatprep.subr.mxu0 0.0
    %1166 = vmatpush1.xpose.msra.mxu0 0.0
    %1167 = vmatprep.subr.mxu0 0.0
    %1168 = vmatpush1.xpose.msra.mxu0 0.0
    %1169 = vmatprep.subr.mxu0 0.0
    %1170 = vmatpush1.xpose.msra.mxu0 0.0
    %1171 = vmatprep.subr.mxu0 0.0
    %1172 = vmatpush1.xpose.msra.mxu0 0.0
    %1173 = vmatprep.subr.mxu0 0.0
    %1174 = vmatpush1.xpose.msra.mxu0 0.0
    %1175 = vmatprep.subr.mxu0 0.0
    %1176 = vmatpush1.xpose.msra.mxu0 0.0
    %1177 = vmatprep.subr.mxu0 0.0
    %1178 = vmatpush1.xpose.msra.mxu0 0.0
    %1179 = vmatprep.subr.mxu0 0.0
    %1180 = vmatpush1.xpose.msra.mxu0 0.0
    %1181 = vmatprep.subr.mxu0 0.0
    %1182 = vmatpush1.xpose.msra.mxu0 0.0
    %1183 = vmatprep.subr.mxu0 0.0
    %1184 = vmatpush1.xpose.msra.mxu0 0.0
    %1185 = vmatprep.subr.mxu0 0.0
    %1186 = vmatpush1.xpose.msra.mxu0 0.0
    %1187 = vmatprep.subr.mxu0 0.0
    %1188 = vmatpush1.xpose.msra.mxu0 0.0
    %1189 = vmatprep.subr.mxu0 0.0
    %1190 = vmatpush1.xpose.msra.mxu0 0.0
    %1191 = vmatprep.subr.mxu0 0.0
    %1192 = vmatpush1.xpose.msra.mxu0 0.0
    %1193 = vmatprep.subr.mxu0 0.0
    %1194 = vmatpush1.xpose.msra.mxu0 0.0
    %1195 = vmatprep.subr.mxu0 0.0
    %1196 = vmatpush1.xpose.msra.mxu0 0.0
    %1197 = vmatprep.subr.mxu0 0.0
    %1198 = vmatpush1.xpose.msra.mxu0 0.0
    %1199 = vmatprep.mubr.f32.mxu0 0.0
    %1200 = vmatmul.mubr.f32.gmra.mrb[0].mxu0 %v1131
    %v1201 = vpop.f32.mrb[0].mxu0
    %v1202 = vadd.f32 0.0, %v1201
    %v1203 = vpop.f32.mrb[0].mxu0
    %1204 = vdwg.mxu0
    %v1205 = vsel %vm115, %v1202, -inf
    %1206 = vmax.xlane.f32.xlu0 %v1205
    %v1207 = vpop.xlane.xlu0 %1206
    %v1208 = vsub.f32 %v1202, %v1207
    %v1209 = vmul.f32 %v1208, 1.442695
    %v1210 = vpow.pop %v1209
    %v1211 = vsel %vm115, %v1210, 0.0
    %1212 = vadd.xlane.f32.xlu0 %v1211
    %v1213 = vpop.xlane.xlu0 %1212
    %v1214 = vrcp.pop %v1213
    %v1215 = vmul.f32 %v1210, %v1214
    %1216 = vrot.lane.b32.xlu0 %v109, 48
    %v1217 = vpop.permute.xlu0 %1216
    %v1220 = vsel %vm115, %v1215, 0
    %1222 = vmatprep.subr.mxu0 0.0
    %1223 = vmatpush1.msra.mxu0 %v1217
    %1224 = vmatprep.subr.mxu0 0.0
    %1225 = vmatpush1.msra.mxu0 0.0
    %1226 = vmatprep.subr.mxu0 0.0
    %1227 = vmatpush1.msra.mxu0 0.0
    %1228 = vmatprep.subr.mxu0 0.0
    %1229 = vmatpush1.msra.mxu0 0.0
    %1230 = vmatprep.subr.mxu0 0.0
    %1231 = vmatpush1.msra.mxu0 0.0
    %1232 = vmatprep.subr.mxu0 0.0
    %1233 = vmatpush1.msra.mxu0 0.0
    %1234 = vmatprep.subr.mxu0 0.0
    %1235 = vmatpush1.msra.mxu0 0.0
    %1236 = vmatprep.subr.mxu0 0.0
    %1237 = vmatpush1.msra.mxu0 0.0
    %1238 = vmatprep.subr.mxu0 0.0
    %1239 = vmatpush1.msra.mxu0 0.0
    %1240 = vmatprep.subr.mxu0 0.0
    %1241 = vmatpush1.msra.mxu0 0.0
    %1242 = vmatprep.subr.mxu0 0.0
    %1243 = vmatpush1.msra.mxu0 0.0
    %1244 = vmatprep.subr.mxu0 0.0
    %1245 = vmatpush1.msra.mxu0 0.0
    %1246 = vmatprep.subr.mxu0 0.0
    %1247 = vmatpush1.msra.mxu0 0.0
    %1248 = vmatprep.subr.mxu0 0.0
    %1249 = vmatpush1.msra.mxu0 0.0
    %1250 = vmatprep.subr.mxu0 0.0
    %1251 = vmatpush1.msra.mxu0 0.0
    %1252 = vmatprep.subr.mxu0 0.0
    %1253 = vmatpush1.msra.mxu0 0.0
    %1254 = vmatprep.subr.mxu0 0.0
    %1255 = vmatpush1.msra.mxu0 0.0
    %1256 = vmatprep.subr.mxu0 0.0
    %1257 = vmatpush1.msra.mxu0 0.0
    %1258 = vmatprep.subr.mxu0 0.0
    %1259 = vmatpush1.msra.mxu0 0.0
    %1260 = vmatprep.subr.mxu0 0.0
    %1261 = vmatpush1.msra.mxu0 0.0
    %1262 = vmatprep.subr.mxu0 0.0
    %1263 = vmatpush1.msra.mxu0 0.0
    %1264 = vmatprep.subr.mxu0 0.0
    %1265 = vmatpush1.msra.mxu0 0.0
    %1266 = vmatprep.subr.mxu0 0.0
    %1267 = vmatpush1.msra.mxu0 0.0
    %1268 = vmatprep.subr.mxu0 0.0
    %1269 = vmatpush1.msra.mxu0 0.0
    %1270 = vmatprep.subr.mxu0 0.0
    %1271 = vmatpush1.msra.mxu0 0.0
    %1272 = vmatprep.subr.mxu0 0.0
    %1273 = vmatpush1.msra.mxu0 0.0
    %1274 = vmatprep.subr.mxu0 0.0
    %1275 = vmatpush1.msra.mxu0 0.0
    %1276 = vmatprep.subr.mxu0 0.0
    %1277 = vmatpush1.msra.mxu0 0.0
    %1278 = vmatprep.subr.mxu0 0.0
    %1279 = vmatpush1.msra.mxu0 0.0
    %1280 = vmatprep.subr.mxu0 0.0
    %1281 = vmatpush1.msra.mxu0 0.0
    %1282 = vmatprep.subr.mxu0 0.0
    %1283 = vmatpush1.msra.mxu0 0.0
    %1284 = vmatprep.subr.mxu0 0.0
    %1285 = vmatpush1.msra.mxu0 0.0
    %1286 = vmatprep.mubr.f32.mxu0 0.0
    %1287 = vmatmul.mubr.f32.gmra.mrb[0].mxu0 %v1220
    %v1288 = vpop.f32.mrb[0].mxu0
    %v1289 = vadd.f32 0.0, %v1288
    %v1290 = vpop.f32.mrb[0].mxu0
    %1291 = vdwg.mxu0
    %1293 = vrot.lane.b32.xlu0 %v1289, 16
    %v1294 = vpop.permute.xlu0 %1293
    %1296 = vst.msk [vmem:[%s955] sm:$0xff] %vm618, %v1294
    %1297 = vrot.lane.b32.xlu0 %v109, 104
    %v1298 = vpop.permute.xlu0 %1297
    %1299 = vrot.lane.b32.xlu0 %v109, 72
    %v1300 = vpop.permute.xlu0 %1299
    %v1301 = vsel %vm115, %v1298, 0
    %v1303 = vsel %vm115, %v1300, 0
    %1305 = vmatprep.subr.mxu0 0.0
    %1306 = vmatpush1.xpose.msra.mxu0 %v1303
    %1307 = vmatprep.subr.mxu0 0.0
    %1308 = vmatpush1.xpose.msra.mxu0 0.0
    %1309 = vmatprep.subr.mxu0 0.0
    %1310 = vmatpush1.xpose.msra.mxu0 0.0
    %1311 = vmatprep.subr.mxu0 0.0
    %1312 = vmatpush1.xpose.msra.mxu0 0.0
    %1313 = vmatprep.subr.mxu0 0.0
    %1314 = vmatpush1.xpose.msra.mxu0 0.0
    %1315 = vmatprep.subr.mxu0 0.0
    %1316 = vmatpush1.xpose.msra.mxu0 0.0
    %1317 = vmatprep.subr.mxu0 0.0
    %1318 = vmatpush1.xpose.msra.mxu0 0.0
    %1319 = vmatprep.subr.mxu0 0.0
    %1320 = vmatpush1.xpose.msra.mxu0 0.0
    %1321 = vmatprep.subr.mxu0 0.0
    %1322 = vmatpush1.xpose.msra.mxu0 0.0
    %1323 = vmatprep.subr.mxu0 0.0
    %1324 = vmatpush1.xpose.msra.mxu0 0.0
    %1325 = vmatprep.subr.mxu0 0.0
    %1326 = vmatpush1.xpose.msra.mxu0 0.0
    %1327 = vmatprep.subr.mxu0 0.0
    %1328 = vmatpush1.xpose.msra.mxu0 0.0
    %1329 = vmatprep.subr.mxu0 0.0
    %1330 = vmatpush1.xpose.msra.mxu0 0.0
    %1331 = vmatprep.subr.mxu0 0.0
    %1332 = vmatpush1.xpose.msra.mxu0 0.0
    %1333 = vmatprep.subr.mxu0 0.0
    %1334 = vmatpush1.xpose.msra.mxu0 0.0
    %1335 = vmatprep.subr.mxu0 0.0
    %1336 = vmatpush1.xpose.msra.mxu0 0.0
    %1337 = vmatprep.subr.mxu0 0.0
    %1338 = vmatpush1.xpose.msra.mxu0 0.0
    %1339 = vmatprep.subr.mxu0 0.0
    %1340 = vmatpush1.xpose.msra.mxu0 0.0
    %1341 = vmatprep.subr.mxu0 0.0
    %1342 = vmatpush1.xpose.msra.mxu0 0.0
    %1343 = vmatprep.subr.mxu0 0.0
    %1344 = vmatpush1.xpose.msra.mxu0 0.0
    %1345 = vmatprep.subr.mxu0 0.0
    %1346 = vmatpush1.xpose.msra.mxu0 0.0
    %1347 = vmatprep.subr.mxu0 0.0
    %1348 = vmatpush1.xpose.msra.mxu0 0.0
    %1349 = vmatprep.subr.mxu0 0.0
    %1350 = vmatpush1.xpose.msra.mxu0 0.0
    %1351 = vmatprep.subr.mxu0 0.0
    %1352 = vmatpush1.xpose.msra.mxu0 0.0
    %1353 = vmatprep.subr.mxu0 0.0
    %1354 = vmatpush1.xpose.msra.mxu0 0.0
    %1355 = vmatprep.subr.mxu0 0.0
    %1356 = vmatpush1.xpose.msra.mxu0 0.0
    %1357 = vmatprep.subr.mxu0 0.0
    %1358 = vmatpush1.xpose.msra.mxu0 0.0
    %1359 = vmatprep.subr.mxu0 0.0
    %1360 = vmatpush1.xpose.msra.mxu0 0.0
    %1361 = vmatprep.subr.mxu0 0.0
    %1362 = vmatpush1.xpose.msra.mxu0 0.0
    %1363 = vmatprep.subr.mxu0 0.0
    %1364 = vmatpush1.xpose.msra.mxu0 0.0
    %1365 = vmatprep.subr.mxu0 0.0
    %1366 = vmatpush1.xpose.msra.mxu0 0.0
    %1367 = vmatprep.subr.mxu0 0.0
    %1368 = vmatpush1.xpose.msra.mxu0 0.0
    %1369 = vmatprep.mubr.f32.mxu0 0.0
    %1370 = vmatmul.mubr.f32.gmra.mrb[0].mxu0 %v1301
    %v1371 = vpop.f32.mrb[0].mxu0
    %v1372 = vadd.f32 0.0, %v1371
    %v1373 = vpop.f32.mrb[0].mxu0
    %1374 = vdwg.mxu0
    %v1375 = vsel %vm115, %v1372, -inf
    %1376 = vmax.xlane.f32.xlu0 %v1375
    %v1377 = vpop.xlane.xlu0 %1376
    %v1378 = vsub.f32 %v1372, %v1377
    %v1379 = vmul.f32 %v1378, 1.442695
    %v1380 = vpow.pop %v1379
    %v1381 = vsel %vm115, %v1380, 0.0
    %1382 = vadd.xlane.f32.xlu0 %v1381
    %v1383 = vpop.xlane.xlu0 %1382
    %v1384 = vrcp.pop %v1383
    %v1385 = vmul.f32 %v1380, %v1384
    %1386 = vrot.lane.b32.xlu0 %v109, 40
    %v1387 = vpop.permute.xlu0 %1386
    %v1390 = vsel %vm115, %v1385, 0
    %1392 = vmatprep.subr.mxu0 0.0
    %1393 = vmatpush1.msra.mxu0 %v1387
    %1394 = vmatprep.subr.mxu0 0.0
    %1395 = vmatpush1.msra.mxu0 0.0
    %1396 = vmatprep.subr.mxu0 0.0
    %1397 = vmatpush1.msra.mxu0 0.0
    %1398 = vmatprep.subr.mxu0 0.0
    %1399 = vmatpush1.msra.mxu0 0.0
    %1400 = vmatprep.subr.mxu0 0.0
    %1401 = vmatpush1.msra.mxu0 0.0
    %1402 = vmatprep.subr.mxu0 0.0
    %1403 = vmatpush1.msra.mxu0 0.0
    %1404 = vmatprep.subr.mxu0 0.0
    %1405 = vmatpush1.msra.mxu0 0.0
    %1406 = vmatprep.subr.mxu0 0.0
    %1407 = vmatpush1.msra.mxu0 0.0
    %1408 = vmatprep.subr.mxu0 0.0
    %1409 = vmatpush1.msra.mxu0 0.0
    %1410 = vmatprep.subr.mxu0 0.0
    %1411 = vmatpush1.msra.mxu0 0.0
    %1412 = vmatprep.subr.mxu0 0.0
    %1413 = vmatpush1.msra.mxu0 0.0
    %1414 = vmatprep.subr.mxu0 0.0
    %1415 = vmatpush1.msra.mxu0 0.0
    %1416 = vmatprep.subr.mxu0 0.0
    %1417 = vmatpush1.msra.mxu0 0.0
    %1418 = vmatprep.subr.mxu0 0.0
    %1419 = vmatpush1.msra.mxu0 0.0
    %1420 = vmatprep.subr.mxu0 0.0
    %1421 = vmatpush1.msra.mxu0 0.0
    %1422 = vmatprep.subr.mxu0 0.0
    %1423 = vmatpush1.msra.mxu0 0.0
    %1424 = vmatprep.subr.mxu0 0.0
    %1425 = vmatpush1.msra.mxu0 0.0
    %1426 = vmatprep.subr.mxu0 0.0
    %1427 = vmatpush1.msra.mxu0 0.0
    %1428 = vmatprep.subr.mxu0 0.0
    %1429 = vmatpush1.msra.mxu0 0.0
    %1430 = vmatprep.subr.mxu0 0.0
    %1431 = vmatpush1.msra.mxu0 0.0
    %1432 = vmatprep.subr.mxu0 0.0
    %1433 = vmatpush1.msra.mxu0 0.0
    %1434 = vmatprep.subr.mxu0 0.0
    %1435 = vmatpush1.msra.mxu0 0.0
    %1436 = vmatprep.subr.mxu0 0.0
    %1437 = vmatpush1.msra.mxu0 0.0
    %1438 = vmatprep.subr.mxu0 0.0
    %1439 = vmatpush1.msra.mxu0 0.0
    %1440 = vmatprep.subr.mxu0 0.0
    %1441 = vmatpush1.msra.mxu0 0.0
    %1442 = vmatprep.subr.mxu0 0.0
    %1443 = vmatpush1.msra.mxu0 0.0
    %1444 = vmatprep.subr.mxu0 0.0
    %1445 = vmatpush1.msra.mxu0 0.0
    %1446 = vmatprep.subr.mxu0 0.0
    %1447 = vmatpush1.msra.mxu0 0.0
    %1448 = vmatprep.subr.mxu0 0.0
    %1449 = vmatpush1.msra.mxu0 0.0
    %1450 = vmatprep.subr.mxu0 0.0
    %1451 = vmatpush1.msra.mxu0 0.0
    %1452 = vmatprep.subr.mxu0 0.0
    %1453 = vmatpush1.msra.mxu0 0.0
    %1454 = vmatprep.subr.mxu0 0.0
    %1455 = vmatpush1.msra.mxu0 0.0
    %1456 = vmatprep.mubr.f32.mxu0 0.0
    %1457 = vmatmul.mubr.f32.gmra.mrb[0].mxu0 %v1390
    %v1458 = vpop.f32.mrb[0].mxu0
    %v1459 = vadd.f32 0.0, %v1458
    %v1460 = vpop.f32.mrb[0].mxu0
    %1461 = vdwg.mxu0
    %1463 = vrot.lane.b32.xlu0 %v1459, 24
    %v1464 = vpop.permute.xlu0 %1463
    %1466 = vst.msk [vmem:[%s955] sm:$0xff] %vm789, %v1464
    %v1467 = vld [vmem:[#allocation2] sm:$0xff]
    %v1468 = vld [vmem:[#allocation2 + $0x8] sm:$0xff]
    %v1469 = vld [vmem:[%s2] sm:$0xff]
    %v1470 = vld [vmem:[%s2 + $0x8] sm:$0xff]
    %v1471 = vld [vmem:[%s2 + $0x10] sm:$0xff]
    %v1472 = vld [vmem:[%s2 + $0x18] sm:$0xff]
    %v1473 = vld [vmem:[%s3] sm:$0x1]
    %v1475 = vlaneseq
    %v1476 = vshrl.u32 %v1475, 7
    %v1477 = vsub.s32 0, %v1476
    %v1478 = vrot.slane %v1473, %v1477
    %v1481 = vsel %vm30, %v1467, 0
    %v1484 = vsel %vm30, %v1468, 0
    %1486 = vmatprep.subr.mxu0 0.0
    %1487 = vmatpush1.msra.mxu0 %v1469
    %1488 = vmatprep.subr.mxu0 0.0
    %1489 = vmatpush1.msra.mxu0 %v1470
    %1490 = vmatprep.subr.mxu0 0.0
    %1491 = vmatpush1.msra.mxu0 %v1471
    %1492 = vmatprep.subr.mxu0 0.0
    %1493 = vmatpush1.msra.mxu0 %v1472
    %1494 = vmatprep.subr.mxu0 0.0
    %1495 = vmatpush1.msra.mxu0 0.0
    %1496 = vmatprep.subr.mxu0 0.0
    %1497 = vmatpush1.msra.mxu0 0.0
    %1498 = vmatprep.subr.mxu0 0.0
    %1499 = vmatpush1.msra.mxu0 0.0
    %1500 = vmatprep.subr.mxu0 0.0
    %1501 = vmatpush1.msra.mxu0 0.0
    %1502 = vmatprep.subr.mxu0 0.0
    %1503 = vmatpush1.msra.mxu0 0.0
    %1504 = vmatprep.subr.mxu0 0.0
    %1505 = vmatpush1.msra.mxu0 0.0
    %1506 = vmatprep.subr.mxu0 0.0
    %1507 = vmatpush1.msra.mxu0 0.0
    %1508 = vmatprep.subr.mxu0 0.0
    %1509 = vmatpush1.msra.mxu0 0.0
    %1510 = vmatprep.subr.mxu0 0.0
    %1511 = vmatpush1.msra.mxu0 0.0
    %1512 = vmatprep.subr.mxu0 0.0
    %1513 = vmatpush1.msra.mxu0 0.0
    %1514 = vmatprep.subr.mxu0 0.0
    %1515 = vmatpush1.msra.mxu0 0.0
    %1516 = vmatprep.subr.mxu0 0.0
    %1517 = vmatpush1.msra.mxu0 0.0
    %1518 = vmatprep.subr.mxu0 0.0
    %1519 = vmatpush1.msra.mxu0 0.0
    %1520 = vmatprep.subr.mxu0 0.0
    %1521 = vmatpush1.msra.mxu0 0.0
    %1522 = vmatprep.subr.mxu0 0.0
    %1523 = vmatpush1.msra.mxu0 0.0
    %1524 = vmatprep.subr.mxu0 0.0
    %1525 = vmatpush1.msra.mxu0 0.0
    %1526 = vmatprep.subr.mxu0 0.0
    %1527 = vmatpush1.msra.mxu0 0.0
    %1528 = vmatprep.subr.mxu0 0.0
    %1529 = vmatpush1.msra.mxu0 0.0
    %1530 = vmatprep.subr.mxu0 0.0
    %1531 = vmatpush1.msra.mxu0 0.0
    %1532 = vmatprep.subr.mxu0 0.0
    %1533 = vmatpush1.msra.mxu0 0.0
    %1534 = vmatprep.subr.mxu0 0.0
    %1535 = vmatpush1.msra.mxu0 0.0
    %1536 = vmatprep.subr.mxu0 0.0
    %1537 = vmatpush1.msra.mxu0 0.0
    %1538 = vmatprep.subr.mxu0 0.0
    %1539 = vmatpush1.msra.mxu0 0.0
    %1540 = vmatprep.subr.mxu0 0.0
    %1541 = vmatpush1.msra.mxu0 0.0
    %1542 = vmatprep.subr.mxu0 0.0
    %1543 = vmatpush1.msra.mxu0 0.0
    %1544 = vmatprep.subr.mxu0 0.0
    %1545 = vmatpush1.msra.mxu0 0.0
    %1546 = vmatprep.subr.mxu0 0.0
    %1547 = vmatpush1.msra.mxu0 0.0
    %1548 = vmatprep.subr.mxu0 0.0
    %1549 = vmatpush1.msra.mxu0 0.0
    %1550 = vmatprep.mubr.f32.mxu0 0.0
    %1551 = vmatmul.mubr.f32.gmra.mrb[0].mxu0 %v1481
    %v1552 = vpop.f32.mrb[0].mxu0
    %v1553 = vadd.f32 %v1478, %v1552
    %v1554 = vpop.f32.mrb[0].mxu0
    %1555 = vmatprep.mubr.f32.mxu0 0.0
    %1556 = vmatmul.mubr.f32.gmra.mrb[0].mxu0 %v1484
    %v1557 = vpop.f32.mrb[0].mxu0
    %v1558 = vadd.f32 %v1478, %v1557
    %v1559 = vpop.f32.mrb[0].mxu0
    %1560 = vdwg.mxu0
    %v1561 = vmul.f32 %v1553, 1.702
    %v1562 = vmul.f32 %v1558, 1.702
    %v1563 = vxor.u32 %v1561, 2147483648
    %v1564 = vxor.u32 %v1562, 2147483648
    %v1565 = vmul.f32 %v1563, 1.442695
    %v1566 = vpow.pop %v1565
    %v1567 = vmul.f32 %v1564, 1.442695
    %v1568 = vpow.pop %v1567
    %v1569 = vadd.f32 %v1566, 1.0
    %v1570 = vadd.f32 %v1568, 1.0
    %v1571 = vrcp.pop %v1569
    %v1572 = vmul.f32 1.0, %v1571
    %v1573 = vrcp.pop %v1570
    %v1574 = vmul.f32 1.0, %v1573
    %v1575 = vmul.f32 %v1553, %v1572
    %v1576 = vmul.f32 %v1558, %v1574
    %v1577 = vld [vmem:[%s4] sm:$0xff]
    %v1578 = vld [vmem:[%s4 + $0x8] sm:$0xff]
    %v1579 = vld [vmem:[%s4 + $0x10] sm:$0xff]
    %v1580 = vld [vmem:[%s4 + $0x18] sm:$0xff]
    %v1581 = vld [vmem:[%s4 + $0x20] sm:$0xff]
    %v1582 = vld [vmem:[%s4 + $0x28] sm:$0xff]
    %v1583 = vld [vmem:[%s4 + $0x30] sm:$0xff]
    %v1584 = vld [vmem:[%s4 + $0x38] sm:$0xff]
    %v1585 = vld [vmem:[%s4 + $0x40] sm:$0xff]
    %v1586 = vld [vmem:[%s4 + $0x48] sm:$0xff]
    %v1587 = vld [vmem:[%s4 + $0x50] sm:$0xff]
    %v1588 = vld [vmem:[%s4 + $0x58] sm:$0xff]
    %v1589 = vld [vmem:[%s5] sm:$0x1]
    %v1591 = vlaneseq
    %v1592 = vshrl.u32 %v1591, 7
    %v1593 = vsub.s32 0, %v1592
    %v1594 = vrot.slane %v1589, %v1593
    %vm1596 = vcmask 785408
    %v1598 = vsel %vm1596, %v1575, 0
    %v1601 = vsel %vm1596, %v1576, 0
    %1603 = vmatprep.subr.mxu0 0.0
    %1604 = vmatpush1.msra.mxu0 %v1577
    %1605 = vmatprep.subr.mxu0 0.0
    %1606 = vmatpush1.msra.mxu0 %v1578
    %1607 = vmatprep.subr.mxu0 0.0
    %1608 = vmatpush1.msra.mxu0 %v1579
    %1609 = vmatprep.subr.mxu0 0.0
    %1610 = vmatpush1.msra.mxu0 %v1580
    %1611 = vmatprep.subr.mxu0 0.0
    %1612 = vmatpush1.msra.mxu0 %v1581
    %1613 = vmatprep.subr.mxu0 0.0
    %1614 = vmatpush1.msra.mxu0 %v1582
    %1615 = vmatprep.subr.mxu0 0.0
    %1616 = vmatpush1.msra.mxu0 %v1583
    %1617 = vmatprep.subr.mxu0 0.0
    %1618 = vmatpush1.msra.mxu0 %v1584
    %1619 = vmatprep.subr.mxu0 0.0
    %1620 = vmatpush1.msra.mxu0 %v1585
    %1621 = vmatprep.subr.mxu0 0.0
    %1622 = vmatpush1.msra.mxu0 %v1586
    %1623 = vmatprep.subr.mxu0 0.0
    %1624 = vmatpush1.msra.mxu0 %v1587
    %1625 = vmatprep.subr.mxu0 0.0
    %1626 = vmatpush1.msra.mxu0 %v1588
    %1627 = vmatprep.subr.mxu0 0.0
    %1628 = vmatpush1.msra.mxu0 0.0
    %1629 = vmatprep.subr.mxu0 0.0
    %1630 = vmatpush1.msra.mxu0 0.0
    %1631 = vmatprep.subr.mxu0 0.0
    %1632 = vmatpush1.msra.mxu0 0.0
    %1633 = vmatprep.subr.mxu0 0.0
    %1634 = vmatpush1.msra.mxu0 0.0
    %1635 = vmatprep.subr.mxu0 0.0
    %1636 = vmatpush1.msra.mxu0 0.0
    %1637 = vmatprep.subr.mxu0 0.0
    %1638 = vmatpush1.msra.mxu0 0.0
    %1639 = vmatprep.subr.mxu0 0.0
    %1640 = vmatpush1.msra.mxu0 0.0
    %1641 = vmatprep.subr.mxu0 0.0
    %1642 = vmatpush1.msra.mxu0 0.0
    %1643 = vmatprep.subr.mxu0 0.0
    %1644 = vmatpush1.msra.mxu0 0.0
    %1645 = vmatprep.subr.mxu0 0.0
    %1646 = vmatpush1.msra.mxu0 0.0
    %1647 = vmatprep.subr.mxu0 0.0
    %1648 = vmatpush1.msra.mxu0 0.0
    %1649 = vmatprep.subr.mxu0 0.0
    %1650 = vmatpush1.msra.mxu0 0.0
    %1651 = vmatprep.subr.mxu0 0.0
    %1652 = vmatpush1.msra.mxu0 0.0
    %1653 = vmatprep.subr.mxu0 0.0
    %1654 = vmatpush1.msra.mxu0 0.0
    %1655 = vmatprep.subr.mxu0 0.0
    %1656 = vmatpush1.msra.mxu0 0.0
    %1657 = vmatprep.subr.mxu0 0.0
    %1658 = vmatpush1.msra.mxu0 0.0
    %1659 = vmatprep.subr.mxu0 0.0
    %1660 = vmatpush1.msra.mxu0 0.0
    %1661 = vmatprep.subr.mxu0 0.0
    %1662 = vmatpush1.msra.mxu0 0.0
    %1663 = vmatprep.subr.mxu0 0.0
    %1664 = vmatpush1.msra.mxu0 0.0
    %1665 = vmatprep.subr.mxu0 0.0
    %1666 = vmatpush1.msra.mxu0 0.0
    %1667 = vmatprep.mubr.f32.mxu0 0.0
    %1668 = vmatmul.mubr.f32.gmra.mrb[0].mxu0 %v1598
    %v1669 = vpop.f32.mrb[0].mxu0
    %v1670 = vadd.f32 %v1594, %v1669
    %v1671 = vpop.f32.mrb[0].mxu0
    %1672 = vmatprep.mubr.f32.mxu0 0.0
    %1673 = vmatmul.mubr.f32.gmra.mrb[0].mxu0 %v1601
    %v1674 = vpop.f32.mrb[0].mxu0
    %v1675 = vadd.f32 %v1594, %v1674
    %v1676 = vpop.f32.mrb[0].mxu0
    %1677 = vdwg.mxu0
    %v1678 = vadd.f32 %v24, %v1670
    %v1679 = vadd.f32 %v25, %v1675
    %1680 = vst.msk [vmem:[#allocation3] sm:$0xff] %vm30, %v1678
    %1681 = vst.msk [vmem:[#allocation3 + $0x8] sm:$0xff] %vm30, %v1679
    // Predicated region
    $region26: #{tpu_custom_call.1} parent=1 // pred_check
      _
    $region27: #{tpu_custom_call.1} parent=1 // pred_check_branch
      %1683 = sbr.rel (0) target = $region29
    $region28: #{tpu_custom_call.1} parent=1 // pred_region
      %s1685 = ssub.s32 256, 256
      %1686 = vsyncadd [#allocation4], %s1685
      %s1687 = sshll.u32 [#allocation3], 4
      %s1688 = int_to_ptr.vmem [resolvable:$true] %s1687
      %1693 = dma.vmem_to_hbm [thread:$0]  %s1688, 256, %s6, [#allocation4], 128, 128, 8
    $region29: #{tpu_custom_call.1} parent=1 // pred_fallthru
      _
    // Predicated region
    $region30: #{tpu_custom_call.1} parent=1 // pred_check
      _
    $region31: #{tpu_custom_call.1} parent=1 // pred_check_branch
      %1695 = sbr.rel (0) target = $region33
    $region32: #{tpu_custom_call.1} parent=1 // pred_region
      %1696 = dma.done [#allocation4], 256
    $region33: #{tpu_custom_call.1} parent=1 // pred_fallthru
      _
    %1697 = vsyncpa [#allocation4], 1

// kernel: tpu_custom_call.1
$region0: #{tpu_custom_call.1}
  #allocation0 [shape = 'u32[]', space=smem, size = 0x4, offset = 0x4, fixed_abs, tag = 'smem constant byte address 0x4 - core index']
  #allocation1 [shape = 'u32[144,128]{1,0:T(1,128)}', space=vmem, size = 0x12000, scoped, tag = 'internal scratch']
  #allocation2 [shape = 'f32[2,8,32]{2,1,0:T(8,128)}', space=vmem, size = 0x2000, scoped, tag = 'scratch operand']
  %s0 = inlined_call_operand.vmem [shape: f32[2,8,32], index: 0, kind: input, shape index: {}]
  %s1 = inlined_call_operand.vmem [shape: f32[32,96], index: 1, kind: input, shape index: {}]
  %s2 = inlined_call_operand.vmem [shape: f32[32,96], index: 2, kind: input, shape index: {}]
  %s3 = inlined_call_operand.vmem [shape: f32[1,96], index: 3, kind: input, shape index: {}]
  %s4 = inlined_call_operand.vmem [shape: f32[96,32], index: 4, kind: input, shape index: {}]
  %s5 = inlined_call_operand.vmem [shape: f32[1,32], index: 5, kind: input, shape index: {}]
  %s6 = inlined_call_operand.hbm [shape: f32[2,8,32], index: 6, kind: output, shape index: {}]
  %s7 = sld [smem:[#allocation0]]
  $region34: #{tpu_custom_call.1} parent=0
    _
  %s9 = ssub.s32 1, %s7
  %s10 = scalar_select 0, %s9, %s7
  $region1: #{tpu_custom_call.1} parent=0
    #allocation3 [shape = 'u8[8192]{0}', space=vmem, size = 0x2000, scoped, tag = 'output window, operand 0, single buffered']
    #allocation4 [shape = 's32[1]{0}', space=sflag, size = 0x4, scoped, tag = 'scoped memory for tpu_custom_call.1']
    %11 = vsyncpa [#allocation4], 0
    // Predicated region
    $region2: #{tpu_custom_call.1} parent=1 // pred_check
      _
    $region3: #{tpu_custom_call.1} parent=1 // pred_check_branch
      %13 = sbr.rel (0) target = $region5
    $region4: #{tpu_custom_call.1} parent=1 // pred_region
      _
    $region5: #{tpu_custom_call.1} parent=1 // pred_fallthru
      _
    // Predicated region
    $region6: #{tpu_custom_call.1} parent=1 // pred_check
      _
    $region7: #{tpu_custom_call.1} parent=1 // pred_check_branch
      %15 = sbr.rel (0) target = $region9
    $region8: #{tpu_custom_call.1} parent=1 // pred_region
      _
    $region9: #{tpu_custom_call.1} parent=1 // pred_fallthru
      _
    // Predicated region
    $region10: #{tpu_custom_call.1} parent=1 // pred_check
      _
    $region11: #{tpu_custom_call.1} parent=1 // pred_check_branch
      %17 = sbr.rel (0) target = $region13
    $region12: #{tpu_custom_call.1} parent=1 // pred_region
      _
    $region13: #{tpu_custom_call.1} parent=1 // pred_fallthru
      _
    // Predicated region
    $region14: #{tpu_custom_call.1} parent=1 // pred_check
      _
    $region15: #{tpu_custom_call.1} parent=1 // pred_check_branch
      %19 = sbr.rel (0) target = $region17
    $region16: #{tpu_custom_call.1} parent=1 // pred_region
      _
    $region17: #{tpu_custom_call.1} parent=1 // pred_fallthru
      _
    // Predicated region
    $region18: #{tpu_custom_call.1} parent=1 // pred_check
      _
    $region19: #{tpu_custom_call.1} parent=1 // pred_check_branch
      %21 = sbr.rel (0) target = $region21
    $region20: #{tpu_custom_call.1} parent=1 // pred_region
      _
    $region21: #{tpu_custom_call.1} parent=1 // pred_fallthru
      _
    // Predicated region
    $region22: #{tpu_custom_call.1} parent=1 // pred_check
      _
    $region23: #{tpu_custom_call.1} parent=1 // pred_check_branch
      %23 = sbr.rel (0) target = $region25
    $region24: #{tpu_custom_call.1} parent=1 // pred_region
      _
    $region25: #{tpu_custom_call.1} parent=1 // pred_fallthru
      _
    %v24 = vld [vmem:[%s0] sm:$0xff]
    %v25 = vld [vmem:[%s0 + $0x8] sm:$0xff]
    %v26 = vld [vmem:[%s1] sm:$0xff]
    %v27 = vld [vmem:[%s1 + $0x8] sm:$0xff]
    %v28 = vld [vmem:[%s1 + $0x10] sm:$0xff]
    %v29 = vld [vmem:[%s1 + $0x18] sm:$0xff]
    %vm30 = vcmask 261120
    %v32 = vsel %vm30, %v24, 0
    %v35 = vsel %vm30, %v25, 0
    %37 = vmatprep.subr.mxu0 0.0
    %38 = vmatpush1.msra.mxu0 %v26
    %39 = vmatprep.subr.mxu0 0.0
    %40 = vmatpush1.msra.mxu0 %v27
    %41 = vmatprep.subr.mxu0 0.0
    %42 = vmatpush1.msra.mxu0 %v28
    %43 = vmatprep.subr.mxu0 0.0
    %44 = vmatpush1.msra.mxu0 %v29
    %45 = vmatprep.subr.mxu0 0.0
    %46 = vmatpush1.msra.mxu0 0.0
    %47 = vmatprep.subr.mxu0 0.0
    %48 = vmatpush1.msra.mxu0 0.0
    %49 = vmatprep.subr.mxu0 0.0
    %50 = vmatpush1.msra.mxu0 0.0
    %51 = vmatprep.subr.mxu0 0.0
    %52 = vmatpush1.msra.mxu0 0.0
    %53 = vmatprep.subr.mxu0 0.0
    %54 = vmatpush1.msra.mxu0 0.0
    %55 = vmatprep.subr.mxu0 0.0
    %56 = vmatpush1.msra.mxu0 0.0
    %57 = vmatprep.subr.mxu0 0.0
    %58 = vmatpush1.msra.mxu0 0.0
    %59 = vmatprep.subr.mxu0 0.0
    %60 = vmatpush1.msra.mxu0 0.0
    %61 = vmatprep.subr.mxu0 0.0
    %62 = vmatpush1.msra.mxu0 0.0
    %63 = vmatprep.subr.mxu0 0.0
    %64 = vmatpush1.msra.mxu0 0.0
    %65 = vmatprep.subr.mxu0 0.0
    %66 = vmatpush1.msra.mxu0 0.0
    %67 = vmatprep.subr.mxu0 0.0
    %68 = vmatpush1.msra.mxu0 0.0
    %69 = vmatprep.subr.mxu0 0.0
    %70 = vmatpush1.msra.mxu0 0.0
    %71 = vmatprep.subr.mxu0 0.0
    %72 = vmatpush1.msra.mxu0 0.0
    %73 = vmatprep.subr.mxu0 0.0
    %74 = vmatpush1.msra.mxu0 0.0
    %75 = vmatprep.subr.mxu0 0.0
    %76 = vmatpush1.msra.mxu0 0.0
    %77 = vmatprep.subr.mxu0 0.0
    %78 = vmatpush1.msra.mxu0 0.0
    %79 = vmatprep.subr.mxu0 0.0
    %80 = vmatpush1.msra.mxu0 0.0
    %81 = vmatprep.subr.mxu0 0.0
    %82 = vmatpush1.msra.mxu0 0.0
    %83 = vmatprep.subr.mxu0 0.0
    %84 = vmatpush1.msra.mxu0 0.0
    %85 = vmatprep.subr.mxu0 0.0
    %86 = vmatpush1.msra.mxu0 0.0
    %87 = vmatprep.subr.mxu0 0.0
    %88 = vmatpush1.msra.mxu0 0.0
    %89 = vmatprep.subr.mxu0 0.0
    %90 = vmatpush1.msra.mxu0 0.0
    %91 = vmatprep.subr.mxu0 0.0
    %92 = vmatpush1.msra.mxu0 0.0
    %93 = vmatprep.subr.mxu0 0.0
    %94 = vmatpush1.msra.mxu0 0.0
    %95 = vmatprep.subr.mxu0 0.0
    %96 = vmatpush1.msra.mxu0 0.0
    %97 = vmatprep.subr.mxu0 0.0
    %98 = vmatpush1.msra.mxu0 0.0
    %99 = vmatprep.subr.mxu0 0.0
    %100 = vmatpush1.msra.mxu0 0.0
    %101 = vmatprep.mubr.f32.mxu0 0.0
    %102 = vmatmul.mubr.f32.gmra.mrb[0].mxu0 %v32
    %v103 = vpop.f32.mrb[0].mxu0
    %v104 = vadd.f32 0.0, %v103
    %v105 = vpop.f32.mrb[0].mxu0
    %106 = vmatprep.mubr.f32.mxu0 0.0
    %107 = vmatmul.mubr.f32.gmra.mrb[0].mxu0 %v35
    %v108 = vpop.f32.mrb[0].mxu0
    %v109 = vadd.f32 0.0, %v108
    %v110 = vpop.f32.mrb[0].mxu0
    %111 = vdwg.mxu0
    %113 = vrot.lane.b32.xlu0 %v104, 96
    %v114 = vpop.permute.xlu0 %113
    %vm115 = vcmask 64512
    %v116 = vsel %vm115, %v104, 0
    %v118 = vsel %vm115, %v114, 0
    %120 = vmatprep.subr.mxu0 0.0
    %121 = vmatpush1.xpose.msra.mxu0 %v118
    %122 = vmatprep.subr.mxu0 0.0
    %123 = vmatpush1.xpose.msra.mxu0 0.0
    %124 = vmatprep.subr.mxu0 0.0
    %125 = vmatpush1.xpose.msra.mxu0 0.0
    %126 = vmatprep.subr.mxu0 0.0
    %127 = vmatpush1.xpose.msra.mxu0 0.0
    %128 = vmatprep.subr.mxu0 0.0
    %129 = vmatpush1.xpose.msra.mxu0 0.0
    %130 = vmatprep.subr.mxu0 0.0
    %131 = vmatpush1.xpose.msra.mxu0 0.0
    %132 = vmatprep.subr.mxu0 0.0
    %133 = vmatpush1.xpose.msra.mxu0 0.0
    %134 = vmatprep.subr.mxu0 0.0
    %135 = vmatpush1.xpose.msra.mxu0 0.0
    %136 = vmatprep.subr.mxu0 0.0
    %137 = vmatpush1.xpose.msra.mxu0 0.0
    %138 = vmatprep.subr.mxu0 0.0
    %139 = vmatpush1.xpose.msra.mxu0 0.0
    %140 = vmatprep.subr.mxu0 0.0
    %141 = vmatpush1.xpose.msra.mxu0 0.0
    %142 = vmatprep.subr.mxu0 0.0
    %143 = vmatpush1.xpose.msra.mxu0 0.0
    %144 = vmatprep.subr.mxu0 0.0
    %145 = vmatpush1.xpose.msra.mxu0 0.0
    %146 = vmatprep.subr.mxu0 0.0
    %147 = vmatpush1.xpose.msra.mxu0 0.0
    %148 = vmatprep.subr.mxu0 0.0
    %149 = vmatpush1.xpose.msra.mxu0 0.0
    %150 = vmatprep.subr.mxu0 0.0
    %151 = vmatpush1.xpose.msra.mxu0 0.0
    %152 = vmatprep.subr.mxu0 0.0
    %153 = vmatpush1.xpose.msra.mxu0 0.0
    %154 = vmatprep.subr.mxu0 0.0
    %155 = vmatpush1.xpose.msra.mxu0 0.0
    %156 = vmatprep.subr.mxu0 0.0
    %157 = vmatpush1.xpose.msra.mxu0 0.0
    %158 = vmatprep.subr.mxu0 0.0
    %159 = vmatpush1.xpose.msra.mxu0 0.0
    %160 = vmatprep.subr.mxu0 0.0
    %161 = vmatpush1.xpose.msra.mxu0 0.0
    %162 = vmatprep.subr.mxu0 0.0
    %163 = vmatpush1.xpose.msra.mxu0 0.0
    %164 = vmatprep.subr.mxu0 0.0
    %165 = vmatpush1.xpose.msra.mxu0 0.0
    %166 = vmatprep.subr.mxu0 0.0
    %167 = vmatpush1.xpose.msra.mxu0 0.0
    %168 = vmatprep.subr.mxu0 0.0
    %169 = vmatpush1.xpose.msra.mxu0 0.0
    %170 = vmatprep.subr.mxu0 0.0
    %171 = vmatpush1.xpose.msra.mxu0 0.0
    %172 = vmatprep.subr.mxu0 0.0
    %173 = vmatpush1.xpose.msra.mxu0 0.0
    %174 = vmatprep.subr.mxu0 0.0
    %175 = vmatpush1.xpose.msra.mxu0 0.0
    %176 = vmatprep.subr.mxu0 0.0
    %177 = vmatpush1.xpose.msra.mxu0 0.0
    %178 = vmatprep.subr.mxu0 0.0
    %179 = vmatpush1.xpose.msra.mxu0 0.0
    %180 = vmatprep.subr.mxu0 0.0
    %181 = vmatpush1.xpose.msra.mxu0 0.0
    %182 = vmatprep.subr.mxu0 0.0
    %183 = vmatpush1.xpose.msra.mxu0 0.0
    %184 = vmatprep.mubr.f32.mxu0 0.0
    %185 = vmatmul.mubr.f32.gmra.mrb[0].mxu0 %v116
    %v186 = vpop.f32.mrb[0].mxu0
    %v187 = vadd.f32 0.0, %v186
    %v188 = vpop.f32.mrb[0].mxu0
    %189 = vdwg.mxu0
    %v190 = vsel %vm115, %v187, -inf
    %191 = vmax.xlane.f32.xlu0 %v190
    %v192 = vpop.xlane.xlu0 %191
    %v193 = vsub.f32 %v187, %v192
    %v194 = vmul.f32 %v193, 1.442695
    %v195 = vpow.pop %v194
    %v196 = vsel %vm115, %v195, 0.0
    %197 = vadd.xlane.f32.xlu0 %v196
    %v198 = vpop.xlane.xlu0 %197
    %v199 = vrcp.pop %v198
    %v200 = vmul.f32 %v195, %v199
    %201 = vrot.lane.b32.xlu0 %v104, 64
    %v202 = vpop.permute.xlu0 %201
    %v205 = vsel %vm115, %v200, 0
    %207 = vmatprep.subr.mxu0 0.0
    %208 = vmatpush1.msra.mxu0 %v202
    %209 = vmatprep.subr.mxu0 0.0
    %210 = vmatpush1.msra.mxu0 0.0
    %211 = vmatprep.subr.mxu0 0.0
    %212 = vmatpush1.msra.mxu0 0.0
    %213 = vmatprep.subr.mxu0 0.0
    %214 = vmatpush1.msra.mxu0 0.0
    %215 = vmatprep.subr.mxu0 0.0
    %216 = vmatpush1.msra.mxu0 0.0
    %217 = vmatprep.subr.mxu0 0.0
    %218 = vmatpush1.msra.mxu0 0.0
    %219 = vmatprep.subr.mxu0 0.0
    %220 = vmatpush1.msra.mxu0 0.0
    %221 = vmatprep.subr.mxu0 0.0
    %222 = vmatpush1.msra.mxu0 0.0
    %223 = vmatprep.subr.mxu0 0.0
    %224 = vmatpush1.msra.mxu0 0.0
    %225 = vmatprep.subr.mxu0 0.0
    %226 = vmatpush1.msra.mxu0 0.0
    %227 = vmatprep.subr.mxu0 0.0
    %228 = vmatpush1.msra.mxu0 0.0
    %229 = vmatprep.subr.mxu0 0.0
    %230 = vmatpush1.msra.mxu0 0.0
    %231 = vmatprep.subr.mxu0 0.0
    %232 = vmatpush1.msra.mxu0 0.0
    %233 = vmatprep.subr.mxu0 0.0
    %234 = vmatpush1.msra.mxu0 0.0
    %235 = vmatprep.subr.mxu0 0.0
    %236 = vmatpush1.msra.mxu0 0.0
    %237 = vmatprep.subr.mxu0 0.0
    %238 = vmatpush1.msra.mxu0 0.0
    %239 = vmatprep.subr.mxu0 0.0
    %240 = vmatpush1.msra.mxu0 0.0
    %241 = vmatprep.subr.mxu0 0.0
    %242 = vmatpush1.msra.mxu0 0.0
    %243 = vmatprep.subr.mxu0 0.0
    %244 = vmatpush1.msra.mxu0 0.0
    %245 = vmatprep.subr.mxu0 0.0
    %246 = vmatpush1.msra.mxu0 0.0
    %247 = vmatprep.subr.mxu0 0.0
    %248 = vmatpush1.msra.mxu0 0.0
    %249 = vmatprep.subr.mxu0 0.0
    %250 = vmatpush1.msra.mxu0 0.0
    %251 = vmatprep.subr.mxu0 0.0
    %252 = vmatpush1.msra.mxu0 0.0
    %253 = vmatprep.subr.mxu0 0.0
    %254 = vmatpush1.msra.mxu0 0.0
    %255 = vmatprep.subr.mxu0 0.0
    %256 = vmatpush1.msra.mxu0 0.0
    %257 = vmatprep.subr.mxu0 0.0
    %258 = vmatpush1.msra.mxu0 0.0
    %259 = vmatprep.subr.mxu0 0.0
    %260 = vmatpush1.msra.mxu0 0.0
    %261 = vmatprep.subr.mxu0 0.0
    %262 = vmatpush1.msra.mxu0 0.0
    %263 = vmatprep.subr.mxu0 0.0
    %264 = vmatpush1.msra.mxu0 0.0
    %265 = vmatprep.subr.mxu0 0.0
    %266 = vmatpush1.msra.mxu0 0.0
    %267 = vmatprep.subr.mxu0 0.0
    %268 = vmatpush1.msra.mxu0 0.0
    %269 = vmatprep.subr.mxu0 0.0
    %270 = vmatpush1.msra.mxu0 0.0
    %271 = vmatprep.mubr.f32.mxu0 0.0
    %272 = vmatmul.mubr.f32.gmra.mrb[0].mxu0 %v205
    %v273 = vpop.f32.mrb[0].mxu0
    %v274 = vadd.f32 0.0, %v273
    %v275 = vpop.f32.mrb[0].mxu0
    %276 = vdwg.mxu0
    %277 = vst.msk [vmem:[#allocation2] sm:$0xff] %vm115, %v274
    %278 = vrot.lane.b32.xlu0 %v104, 120
    %v279 = vpop.permute.xlu0 %278
    %280 = vrot.lane.b32.xlu0 %v104, 88
    %v281 = vpop.permute.xlu0 %280
    %v282 = vsel %vm115, %v279, 0
    %v284 = vsel %vm115, %v281, 0
    %286 = vmatprep.subr.mxu0 0.0
    %287 = vmatpush1.xpose.msra.mxu0 %v284
    %288 = vmatprep.subr.mxu0 0.0
    %289 = vmatpush1.xpose.msra.mxu0 0.0
    %290 = vmatprep.subr.mxu0 0.0
    %291 = vmatpush1.xpose.msra.mxu0 0.0
    %292 = vmatprep.subr.mxu0 0.0
    %293 = vmatpush1.xpose.msra.mxu0 0.0
    %294 = vmatprep.subr.mxu0 0.0
    %295 = vmatpush1.xpose.msra.mxu0 0.0
    %296 = vmatprep.subr.mxu0 0.0
    %297 = vmatpush1.xpose.msra.mxu0 0.0
    %298 = vmatprep.subr.mxu0 0.0
    %299 = vmatpush1.xpose.msra.mxu0 0.0
    %300 = vmatprep.subr.mxu0 0.0
    %301 = vmatpush1.xpose.msra.mxu0 0.0
    %302 = vmatprep.subr.mxu0 0.0
    %303 = vmatpush1.xpose.msra.mxu0 0.0
    %304 = vmatprep.subr.mxu0 0.0
    %305 = vmatpush1.xpose.msra.mxu0 0.0
    %306 = vmatprep.subr.mxu0 0.0
    %307 = vmatpush1.xpose.msra.mxu0 0.0
    %308 = vmatprep.subr.mxu0 0.0
    %309 = vmatpush1.xpose.msra.mxu0 0.0
    %310 = vmatprep.subr.mxu0 0.0
    %311 = vmatpush1.xpose.msra.mxu0 0.0
    %312 = vmatprep.subr.mxu0 0.0
    %313 = vmatpush1.xpose.msra.mxu0 0.0
    %314 = vmatprep.subr.mxu0 0.0
    %315 = vmatpush1.xpose.msra.mxu0 0.0
    %316 = vmatprep.subr.mxu0 0.0
    %317 = vmatpush1.xpose.msra.mxu0 0.0
    %318 = vmatprep.subr.mxu0 0.0
    %319 = vmatpush1.xpose.msra.mxu0 0.0
    %320 = vmatprep.subr.mxu0 0.0
    %321 = vmatpush1.xpose.msra.mxu0 0.0
    %322 = vmatprep.subr.mxu0 0.0
    %323 = vmatpush1.xpose.msra.mxu0 0.0
    %324 = vmatprep.subr.mxu0 0.0
    %325 = vmatpush1.xpose.msra.mxu0 0.0
    %326 = vmatprep.subr.mxu0 0.0
    %327 = vmatpush1.xpose.msra.mxu0 0.0
    %328 = vmatprep.subr.mxu0 0.0
    %329 = vmatpush1.xpose.msra.mxu0 0.0
    %330 = vmatprep.subr.mxu0 0.0
    %331 = vmatpush1.xpose.msra.mxu0 0.0
    %332 = vmatprep.subr.mxu0 0.0
    %333 = vmatpush1.xpose.msra.mxu0 0.0
    %334 = vmatprep.subr.mxu0 0.0
    %335 = vmatpush1.xpose.msra.mxu0 0.0
    %336 = vmatprep.subr.mxu0 0.0
    %337 = vmatpush1.xpose.msra.mxu0 0.0
    %338 = vmatprep.subr.mxu0 0.0
    %339 = vmatpush1.xpose.msra.mxu0 0.0
    %340 = vmatprep.subr.mxu0 0.0
    %341 = vmatpush1.xpose.msra.mxu0 0.0
    %342 = vmatprep.subr.mxu0 0.0
    %343 = vmatpush1.xpose.msra.mxu0 0.0
    %344 = vmatprep.subr.mxu0 0.0
    %345 = vmatpush1.xpose.msra.mxu0 0.0
    %346 = vmatprep.subr.mxu0 0.0
    %347 = vmatpush1.xpose.msra.mxu0 0.0
    %348 = vmatprep.subr.mxu0 0.0
    %349 = vmatpush1.xpose.msra.mxu0 0.0
    %350 = vmatprep.mubr.f32.mxu0 0.0
    %351 = vmatmul.mubr.f32.gmra.mrb[0].mxu0 %v282
    %v352 = vpop.f32.mrb[0].mxu0
    %v353 = vadd.f32 0.0, %v352
    %v354 = vpop.f32.mrb[0].mxu0
    %355 = vdwg.mxu0
    %v356 = vsel %vm115, %v353, -inf
    %357 = vmax.xlane.f32.xlu0 %v356
    %v358 = vpop.xlane.xlu0 %357
    %v359 = vsub.f32 %v353, %v358
    %v360 = vmul.f32 %v359, 1.442695
    %v361 = vpow.pop %v360
    %v362 = vsel %vm115, %v361, 0.0
    %363 = vadd.xlane.f32.xlu0 %v362
    %v364 = vpop.xlane.xlu0 %363
    %v365 = vrcp.pop %v364
    %v366 = vmul.f32 %v361, %v365
    %367 = vrot.lane.b32.xlu0 %v104, 56
    %v368 = vpop.permute.xlu0 %367
    %v371 = vsel %vm115, %v366, 0
    %373 = vmatprep.subr.mxu0 0.0
    %374 = vmatpush1.msra.mxu0 %v368
    %375 = vmatprep.subr.mxu0 0.0
    %376 = vmatpush1.msra.mxu0 0.0
    %377 = vmatprep.subr.mxu0 0.0
    %378 = vmatpush1.msra.mxu0 0.0
    %379 = vmatprep.subr.mxu0 0.0
    %380 = vmatpush1.msra.mxu0 0.0
    %381 = vmatprep.subr.mxu0 0.0
    %382 = vmatpush1.msra.mxu0 0.0
    %383 = vmatprep.subr.mxu0 0.0
    %384 = vmatpush1.msra.mxu0 0.0
    %385 = vmatprep.subr.mxu0 0.0
    %386 = vmatpush1.msra.mxu0 0.0
    %387 = vmatprep.subr.mxu0 0.0
    %388 = vmatpush1.msra.mxu0 0.0
    %389 = vmatprep.subr.mxu0 0.0
    %390 = vmatpush1.msra.mxu0 0.0
    %391 = vmatprep.subr.mxu0 0.0
    %392 = vmatpush1.msra.mxu0 0.0
    %393 = vmatprep.subr.mxu0 0.0
    %394 = vmatpush1.msra.mxu0 0.0
    %395 = vmatprep.subr.mxu0 0.0
    %396 = vmatpush1.msra.mxu0 0.0
    %397 = vmatprep.subr.mxu0 0.0
    %398 = vmatpush1.msra.mxu0 0.0
    %399 = vmatprep.subr.mxu0 0.0
    %400 = vmatpush1.msra.mxu0 0.0
    %401 = vmatprep.subr.mxu0 0.0
    %402 = vmatpush1.msra.mxu0 0.0
    %403 = vmatprep.subr.mxu0 0.0
    %404 = vmatpush1.msra.mxu0 0.0
    %405 = vmatprep.subr.mxu0 0.0
    %406 = vmatpush1.msra.mxu0 0.0
    %407 = vmatprep.subr.mxu0 0.0
    %408 = vmatpush1.msra.mxu0 0.0
    %409 = vmatprep.subr.mxu0 0.0
    %410 = vmatpush1.msra.mxu0 0.0
    %411 = vmatprep.subr.mxu0 0.0
    %412 = vmatpush1.msra.mxu0 0.0
    %413 = vmatprep.subr.mxu0 0.0
    %414 = vmatpush1.msra.mxu0 0.0
    %415 = vmatprep.subr.mxu0 0.0
    %416 = vmatpush1.msra.mxu0 0.0
    %417 = vmatprep.subr.mxu0 0.0
    %418 = vmatpush1.msra.mxu0 0.0
    %419 = vmatprep.subr.mxu0 0.0
    %420 = vmatpush1.msra.mxu0 0.0
    %421 = vmatprep.subr.mxu0 0.0
    %422 = vmatpush1.msra.mxu0 0.0
    %423 = vmatprep.subr.mxu0 0.0
    %424 = vmatpush1.msra.mxu0 0.0
    %425 = vmatprep.subr.mxu0 0.0
    %426 = vmatpush1.msra.mxu0 0.0
    %427 = vmatprep.subr.mxu0 0.0
    %428 = vmatpush1.msra.mxu0 0.0
    %429 = vmatprep.subr.mxu0 0.0
    %430 = vmatpush1.msra.mxu0 0.0
    %431 = vmatprep.subr.mxu0 0.0
    %432 = vmatpush1.msra.mxu0 0.0
    %433 = vmatprep.subr.mxu0 0.0
    %434 = vmatpush1.msra.mxu0 0.0
    %435 = vmatprep.subr.mxu0 0.0
    %436 = vmatpush1.msra.mxu0 0.0
    %437 = vmatprep.mubr.f32.mxu0 0.0
    %438 = vmatmul.mubr.f32.gmra.mrb[0].mxu0 %v371
    %v439 = vpop.f32.mrb[0].mxu0
    %v440 = vadd.f32 0.0, %v439
    %v441 = vpop.f32.mrb[0].mxu0
    %442 = vdwg.mxu0
    %444 = vrot.lane.b32.xlu0 %v440, 8
    %v445 = vpop.permute.xlu0 %444
    %vm447 = vcmask 130112
    %448 = vst.msk [vmem:[#allocation2] sm:$0xff] %vm447, %v445
    %449 = vrot.lane.b32.xlu0 %v104, 112
    %v450 = vpop.permute.xlu0 %449
    %451 = vrot.lane.b32.xlu0 %v104, 80
    %v452 = vpop.permute.xlu0 %451
    %v453 = vsel %vm115, %v450, 0
    %v455 = vsel %vm115, %v452, 0
    %457 = vmatprep.subr.mxu0 0.0
    %458 = vmatpush1.xpose.msra.mxu0 %v455
    %459 = vmatprep.subr.mxu0 0.0
    %460 = vmatpush1.xpose.msra.mxu0 0.0
    %461 = vmatprep.subr.mxu0 0.0
    %462 = vmatpush1.xpose.msra.mxu0 0.0
    %463 = vmatprep.subr.mxu0 0.0
    %464 = vmatpush1.xpose.msra.mxu0 0.0
    %465 = vmatprep.subr.mxu0 0.0
    %466 = vmatpush1.xpose.msra.mxu0 0.0
    %467 = vmatprep.subr.mxu0 0.0
    %468 = vmatpush1.xpose.msra.mxu0 0.0
    %469 = vmatprep.subr.mxu0 0.0
    %470 = vmatpush1.xpose.msra.mxu0 0.0
    %471 = vmatprep.subr.mxu0 0.0
    %472 = vmatpush1.xpose.msra.mxu0 0.0
    %473 = vmatprep.subr.mxu0 0.0
    %474 = vmatpush1.xpose.msra.mxu0 0.0
    %475 = vmatprep.subr.mxu0 0.0
    %476 = vmatpush1.xpose.msra.mxu0 0.0
    %477 = vmatprep.subr.mxu0 0.0
    %478 = vmatpush1.xpose.msra.mxu0 0.0
    %479 = vmatprep.subr.mxu0 0.0
    %480 = vmatpush1.xpose.msra.mxu0 0.0
    %481 = vmatprep.subr.mxu0 0.0
    %482 = vmatpush1.xpose.msra.mxu0 0.0
    %483 = vmatprep.subr.mxu0 0.0
    %484 = vmatpush1.xpose.msra.mxu0 0.0
    %485 = vmatprep.subr.mxu0 0.0
    %486 = vmatpush1.xpose.msra.mxu0 0.0
    %487 = vmatprep.subr.mxu0 0.0
    %488 = vmatpush1.xpose.msra.mxu0 0.0
    %489 = vmatprep.subr.mxu0 0.0
    %490 = vmatpush1.xpose.msra.mxu0 0.0
    %491 = vmatprep.subr.mxu0 0.0
    %492 = vmatpush1.xpose.msra.mxu0 0.0
    %493 = vmatprep.subr.mxu0 0.0
    %494 = vmatpush1.xpose.msra.mxu0 0.0
    %495 = vmatprep.subr.mxu0 0.0
    %496 = vmatpush1.xpose.msra.mxu0 0.0
    %497 = vmatprep.subr.mxu0 0.0
    %498 = vmatpush1.xpose.msra.mxu0 0.0
    %499 = vmatprep.subr.mxu0 0.0
    %500 = vmatpush1.xpose.msra.mxu0 0.0
    %501 = vmatprep.subr.mxu0 0.0
    %502 = vmatpush1.xpose.msra.mxu0 0.0
    %503 = vmatprep.subr.mxu0 0.0
    %504 = vmatpush1.xpose.msra.mxu0 0.0
    %505 = vmatprep.subr.mxu0 0.0
    %506 = vmatpush1.xpose.msra.mxu0 0.0
    %507 = vmatprep.subr.mxu0 0.0
    %508 = vmatpush1.xpose.msra.mxu0 0.0
    %509 = vmatprep.subr.mxu0 0.0
    %510 = vmatpush1.xpose.msra.mxu0 0.0
    %511 = vmatprep.subr.mxu0 0.0
    %512 = vmatpush1.xpose.msra.mxu0 0.0
    %513 = vmatprep.subr.mxu0 0.0
    %514 = vmatpush1.xpose.msra.mxu0 0.0
    %515 = vmatprep.subr.mxu0 0.0
    %516 = vmatpush1.xpose.msra.mxu0 0.0
    %517 = vmatprep.subr.mxu0 0.0
    %518 = vmatpush1.xpose.msra.mxu0 0.0
    %519 = vmatprep.subr.mxu0 0.0
    %520 = vmatpush1.xpose.msra.mxu0 0.0
    %521 = vmatprep.mubr.f32.mxu0 0.0
    %522 = vmatmul.mubr.f32.gmra.mrb[0].mxu0 %v453
    %v523 = vpop.f32.mrb[0].mxu0
    %v524 = vadd.f32 0.0, %v523
    %v525 = vpop.f32.mrb[0].mxu0
    %526 = vdwg.mxu0
    %v527 = vsel %vm115, %v524, -inf
    %528 = vmax.xlane.f32.xlu0 %v527
    %v529 = vpop.xlane.xlu0 %528
    %v530 = vsub.f32 %v524, %v529
    %v531 = vmul.f32 %v530, 1.442695
    %v532 = vpow.pop %v531
    %v533 = vsel %vm115, %v532, 0.0
    %534 = vadd.xlane.f32.xlu0 %v533
    %v535 = vpop.xlane.xlu0 %534
    %v536 = vrcp.pop %v535
    %v537 = vmul.f32 %v532, %v536
    %538 = vrot.lane.b32.xlu0 %v104, 48
    %v539 = vpop.permute.xlu0 %538
    %v542 = vsel %vm115, %v537, 0
    %544 = vmatprep.subr.mxu0 0.0
    %545 = vmatpush1.msra.mxu0 %v539
    %546 = vmatprep.subr.mxu0 0.0
    %547 = vmatpush1.msra.mxu0 0.0
    %548 = vmatprep.subr.mxu0 0.0
    %549 = vmatpush1.msra.mxu0 0.0
    %550 = vmatprep.subr.mxu0 0.0
    %551 = vmatpush1.msra.mxu0 0.0
    %552 = vmatprep.subr.mxu0 0.0
    %553 = vmatpush1.msra.mxu0 0.0
    %554 = vmatprep.subr.mxu0 0.0
    %555 = vmatpush1.msra.mxu0 0.0
    %556 = vmatprep.subr.mxu0 0.0
    %557 = vmatpush1.msra.mxu0 0.0
    %558 = vmatprep.subr.mxu0 0.0
    %559 = vmatpush1.msra.mxu0 0.0
    %560 = vmatprep.subr.mxu0 0.0
    %561 = vmatpush1.msra.mxu0 0.0
    %562 = vmatprep.subr.mxu0 0.0
    %563 = vmatpush1.msra.mxu0 0.0
    %564 = vmatprep.subr.mxu0 0.0
    %565 = vmatpush1.msra.mxu0 0.0
    %566 = vmatprep.subr.mxu0 0.0
    %567 = vmatpush1.msra.mxu0 0.0
    %568 = vmatprep.subr.mxu0 0.0
    %569 = vmatpush1.msra.mxu0 0.0
    %570 = vmatprep.subr.mxu0 0.0
    %571 = vmatpush1.msra.mxu0 0.0
    %572 = vmatprep.subr.mxu0 0.0
    %573 = vmatpush1.msra.mxu0 0.0
    %574 = vmatprep.subr.mxu0 0.0
    %575 = vmatpush1.msra.mxu0 0.0
    %576 = vmatprep.subr.mxu0 0.0
    %577 = vmatpush1.msra.mxu0 0.0
    %578 = vmatprep.subr.mxu0 0.0
    %579 = vmatpush1.msra.mxu0 0.0
    %580 = vmatprep.subr.mxu0 0.0
    %581 = vmatpush1.msra.mxu0 0.0
    %582 = vmatprep.subr.mxu0 0.0
    %583 = vmatpush1.msra.mxu0 0.0
    %584 = vmatprep.subr.mxu0 0.0
    %585 = vmatpush1.msra.mxu0 0.0
    %586 = vmatprep.subr.mxu0 0.0
    %587 = vmatpush1.msra.mxu0 0.0
    %588 = vmatprep.subr.mxu0 0.0
    %589 = vmatpush1.msra.mxu0 0.0
    %590 = vmatprep.subr.mxu0 0.0
    %591 = vmatpush1.msra.mxu0 0.0
    %592 = vmatprep.subr.mxu0 0.0
    %593 = vmatpush1.msra.mxu0 0.0
    %594 = vmatprep.subr.mxu0 0.0
    %595 = vmatpush1.msra.mxu0 0.0
    %596 = vmatprep.subr.mxu0 0.0
    %597 = vmatpush1.msra.mxu0 0.0
    %598 = vmatprep.subr.mxu0 0.0
    %599 = vmatpush1.msra.mxu0 0.0
    %600 = vmatprep.subr.mxu0 0.0
    %601 = vmatpush1.msra.mxu0 0.0
    %602 = vmatprep.subr.mxu0 0.0
    %603 = vmatpush1.msra.mxu0 0.0
    %604 = vmatprep.subr.mxu0 0.0
    %605 = vmatpush1.msra.mxu0 0.0
    %606 = vmatprep.subr.mxu0 0.0
    %607 = vmatpush1.msra.mxu0 0.0
    %608 = vmatprep.mubr.f32.mxu0 0.0
    %609 = vmatmul.mubr.f32.gmra.mrb[0].mxu0 %v542
    %v610 = vpop.f32.mrb[0].mxu0
    %v611 = vadd.f32 0.0, %v610
    %v612 = vpop.f32.mrb[0].mxu0
    %613 = vdwg.mxu0
    %615 = vrot.lane.b32.xlu0 %v611, 16
    %v616 = vpop.permute.xlu0 %615
    %vm618 = vcmask 195712
    %619 = vst.msk [vmem:[#allocation2] sm:$0xff] %vm618, %v616
    %620 = vrot.lane.b32.xlu0 %v104, 104
    %v621 = vpop.permute.xlu0 %620
    %622 = vrot.lane.b32.xlu0 %v104, 72
    %v623 = vpop.permute.xlu0 %622
    %v624 = vsel %vm115, %v621, 0
    %v626 = vsel %vm115, %v623, 0
    %628 = vmatprep.subr.mxu0 0.0
    %629 = vmatpush1.xpose.msra.mxu0 %v626
    %630 = vmatprep.subr.mxu0 0.0
    %631 = vmatpush1.xpose.msra.mxu0 0.0
    %632 = vmatprep.subr.mxu0 0.0
    %633 = vmatpush1.xpose.msra.mxu0 0.0
    %634 = vmatprep.subr.mxu0 0.0
    %635 = vmatpush1.xpose.msra.mxu0 0.0
    %636 = vmatprep.subr.mxu0 0.0
    %637 = vmatpush1.xpose.msra.mxu0 0.0
    %638 = vmatprep.subr.mxu0 0.0
    %639 = vmatpush1.xpose.msra.mxu0 0.0
    %640 = vmatprep.subr.mxu0 0.0
    %641 = vmatpush1.xpose.msra.mxu0 0.0
    %642 = vmatprep.subr.mxu0 0.0
    %643 = vmatpush1.xpose.msra.mxu0 0.0
    %644 = vmatprep.subr.mxu0 0.0
    %645 = vmatpush1.xpose.msra.mxu0 0.0
    %646 = vmatprep.subr.mxu0 0.0
    %647 = vmatpush1.xpose.msra.mxu0 0.0
    %648 = vmatprep.subr.mxu0 0.0
    %649 = vmatpush1.xpose.msra.mxu0 0.0
    %650 = vmatprep.subr.mxu0 0.0
    %651 = vmatpush1.xpose.msra.mxu0 0.0
    %652 = vmatprep.subr.mxu0 0.0
    %653 = vmatpush1.xpose.msra.mxu0 0.0
    %654 = vmatprep.subr.mxu0 0.0
    %655 = vmatpush1.xpose.msra.mxu0 0.0
    %656 = vmatprep.subr.mxu0 0.0
    %657 = vmatpush1.xpose.msra.mxu0 0.0
    %658 = vmatprep.subr.mxu0 0.0
    %659 = vmatpush1.xpose.msra.mxu0 0.0
    %660 = vmatprep.subr.mxu0 0.0
    %661 = vmatpush1.xpose.msra.mxu0 0.0
    %662 = vmatprep.subr.mxu0 0.0
    %663 = vmatpush1.xpose.msra.mxu0 0.0
    %664 = vmatprep.subr.mxu0 0.0
    %665 = vmatpush1.xpose.msra.mxu0 0.0
    %666 = vmatprep.subr.mxu0 0.0
    %667 = vmatpush1.xpose.msra.mxu0 0.0
    %668 = vmatprep.subr.mxu0 0.0
    %669 = vmatpush1.xpose.msra.mxu0 0.0
    %670 = vmatprep.subr.mxu0 0.0
    %671 = vmatpush1.xpose.msra.mxu0 0.0
    %672 = vmatprep.subr.mxu0 0.0
    %673 = vmatpush1.xpose.msra.mxu0 0.0
    %674 = vmatprep.subr.mxu0 0.0
    %675 = vmatpush1.xpose.msra.mxu0 0.0
    %676 = vmatprep.subr.mxu0 0.0
    %677 = vmatpush1.xpose.msra.mxu0 0.0
    %678 = vmatprep.subr.mxu0 0.0
    %679 = vmatpush1.xpose.msra.mxu0 0.0
    %680 = vmatprep.subr.mxu0 0.0
    %681 = vmatpush1.xpose.msra.mxu0 0.0
    %682 = vmatprep.subr.mxu0 0.0
    %683 = vmatpush1.xpose.msra.mxu0 0.0
    %684 = vmatprep.subr.mxu0 0.0
    %685 = vmatpush1.xpose.msra.mxu0 0.0
    %686 = vmatprep.subr.mxu0 0.0
    %687 = vmatpush1.xpose.msra.mxu0 0.0
    %688 = vmatprep.subr.mxu0 0.0
    %689 = vmatpush1.xpose.msra.mxu0 0.0
    %690 = vmatprep.subr.mxu0 0.0
    %691 = vmatpush1.xpose.msra.mxu0 0.0
    %692 = vmatprep.mubr.f32.mxu0 0.0
    %693 = vmatmul.mubr.f32.gmra.mrb[0].mxu0 %v624
    %v694 = vpop.f32.mrb[0].mxu0
    %v695 = vadd.f32 0.0, %v694
    %v696 = vpop.f32.mrb[0].mxu0
    %697 = vdwg.mxu0
    %v698 = vsel %vm115, %v695, -inf
    %699 = vmax.xlane.f32.xlu0 %v698
    %v700 = vpop.xlane.xlu0 %699
    %v701 = vsub.f32 %v695, %v700
    %v702 = vmul.f32 %v701, 1.442695
    %v703 = vpow.pop %v702
    %v704 = vsel %vm115, %v703, 0.0
    %705 = vadd.xlane.f32.xlu0 %v704
    %v706 = vpop.xlane.xlu0 %705
    %v707 = vrcp.pop %v706
    %v708 = vmul.f32 %v703, %v707
    %709 = vrot.lane.b32.xlu0 %v104, 40
    %v710 = vpop.permute.xlu0 %709
    %v713 = vsel %vm115, %v708, 0
    %715 = vmatprep.subr.mxu0 0.0
    %716 = vmatpush1.msra.mxu0 %v710
    %717 = vmatprep.subr.mxu0 0.0
    %718 = vmatpush1.msra.mxu0 0.0
    %719 = vmatprep.subr.mxu0 0.0
    %720 = vmatpush1.msra.mxu0 0.0
    %721 = vmatprep.subr.mxu0 0.0
    %722 = vmatpush1.msra.mxu0 0.0
    %723 = vmatprep.subr.mxu0 0.0
    %724 = vmatpush1.msra.mxu0 0.0
    %725 = vmatprep.subr.mxu0 0.0
    %726 = vmatpush1.msra.mxu0 0.0
    %727 = vmatprep.subr.mxu0 0.0
    %728 = vmatpush1.msra.mxu0 0.0
    %729 = vmatprep.subr.mxu0 0.0
    %730 = vmatpush1.msra.mxu0 0.0
    %731 = vmatprep.subr.mxu0 0.0
    %732 = vmatpush1.msra.mxu0 0.0
    %733 = vmatprep.subr.mxu0 0.0
    %734 = vmatpush1.msra.mxu0 0.0
    %735 = vmatprep.subr.mxu0 0.0
    %736 = vmatpush1.msra.mxu0 0.0
    %737 = vmatprep.subr.mxu0 0.0
    %738 = vmatpush1.msra.mxu0 0.0
    %739 = vmatprep.subr.mxu0 0.0
    %740 = vmatpush1.msra.mxu0 0.0
    %741 = vmatprep.subr.mxu0 0.0
    %742 = vmatpush1.msra.mxu0 0.0
    %743 = vmatprep.subr.mxu0 0.0
    %744 = vmatpush1.msra.mxu0 0.0
    %745 = vmatprep.subr.mxu0 0.0
    %746 = vmatpush1.msra.mxu0 0.0
    %747 = vmatprep.subr.mxu0 0.0
    %748 = vmatpush1.msra.mxu0 0.0
    %749 = vmatprep.subr.mxu0 0.0
    %750 = vmatpush1.msra.mxu0 0.0
    %751 = vmatprep.subr.mxu0 0.0
    %752 = vmatpush1.msra.mxu0 0.0
    %753 = vmatprep.subr.mxu0 0.0
    %754 = vmatpush1.msra.mxu0 0.0
    %755 = vmatprep.subr.mxu0 0.0
    %756 = vmatpush1.msra.mxu0 0.0
    %757 = vmatprep.subr.mxu0 0.0
    %758 = vmatpush1.msra.mxu0 0.0
    %759 = vmatprep.subr.mxu0 0.0
    %760 = vmatpush1.msra.mxu0 0.0
    %761 = vmatprep.subr.mxu0 0.0
    %762 = vmatpush1.msra.mxu0 0.0
    %763 = vmatprep.subr.mxu0 0.0
    %764 = vmatpush1.msra.mxu0 0.0
    %765 = vmatprep.subr.mxu0 0.0
    %766 = vmatpush1.msra.mxu0 0.0
    %767 = vmatprep.subr.mxu0 0.0
    %768 = vmatpush1.msra.mxu0 0.0
    %769 = vmatprep.subr.mxu0 0.0
    %770 = vmatpush1.msra.mxu0 0.0
    %771 = vmatprep.subr.mxu0 0.0
    %772 = vmatpush1.msra.mxu0 0.0
    %773 = vmatprep.subr.mxu0 0.0
    %774 = vmatpush1.msra.mxu0 0.0
    %775 = vmatprep.subr.mxu0 0.0
    %776 = vmatpush1.msra.mxu0 0.0
    %777 = vmatprep.subr.mxu0 0.0
    %778 = vmatpush1.msra.mxu0 0.0
    %779 = vmatprep.mubr.f32.mxu0 0.0
    %780 = vmatmul.mubr.f32.gmra.mrb[0].mxu0 %v713
    %v781 = vpop.f32.mrb[0].mxu0
    %v782 = vadd.f32 0.0, %v781
    %v783 = vpop.f32.mrb[0].mxu0
    %784 = vdwg.mxu0
    %786 = vrot.lane.b32.xlu0 %v782, 24
    %v787 = vpop.permute.xlu0 %786
    %vm789 = vcmask 261312
    %790 = vst.msk [vmem:[#allocation2] sm:$0xff] %vm789, %v787
    %792 = vrot.lane.b32.xlu0 %v109, 96
    %v793 = vpop.permute.xlu0 %792
    %v794 = vsel %vm115, %v109, 0
    %v796 = vsel %vm115, %v793, 0
    %798 = vmatprep.subr.mxu0 0.0
    %799 = vmatpush1.xpose.msra.mxu0 %v796
    %800 = vmatprep.subr.mxu0 0.0
    %801 = vmatpush1.xpose.msra.mxu0 0.0
    %802 = vmatprep.subr.mxu0 0.0
    %803 = vmatpush1.xpose.msra.mxu0 0.0
    %804 = vmatprep.subr.mxu0 0.0
    %805 = vmatpush1.xpose.msra.mxu0 0.0
    %806 = vmatprep.subr.mxu0 0.0
    %807 = vmatpush1.xpose.msra.mxu0 0.0
    %808 = vmatprep.subr.mxu0 0.0
    %809 = vmatpush1.xpose.msra.mxu0 0.0
    %810 = vmatprep.subr.mxu0 0.0
    %811 = vmatpush1.xpose.msra.mxu0 0.0
    %812 = vmatprep.subr.mxu0 0.0
    %813 = vmatpush1.xpose.msra.mxu0 0.0
    %814 = vmatprep.subr.mxu0 0.0
    %815 = vmatpush1.xpose.msra.mxu0 0.0
    %816 = vmatprep.subr.mxu0 0.0
    %817 = vmatpush1.xpose.msra.mxu0 0.0
    %818 = vmatprep.subr.mxu0 0.0
    %819 = vmatpush1.xpose.msra.mxu0 0.0
    %820 = vmatprep.subr.mxu0 0.0
    %821 = vmatpush1.xpose.msra.mxu0 0.0
    %822 = vmatprep.subr.mxu0 0.0
    %823 = vmatpush1.xpose.msra.mxu0 0.0
    %824 = vmatprep.subr.mxu0 0.0
    %825 = vmatpush1.xpose.msra.mxu0 0.0
    %826 = vmatprep.subr.mxu0 0.0
    %827 = vmatpush1.xpose.msra.mxu0 0.0
    %828 = vmatprep.subr.mxu0 0.0
    %829 = vmatpush1.xpose.msra.mxu0 0.0
    %830 = vmatprep.subr.mxu0 0.0
    %831 = vmatpush1.xpose.msra.mxu0 0.0
    %832 = vmatprep.subr.mxu0 0.0
    %833 = vmatpush1.xpose.msra.mxu0 0.0
    %834 = vmatprep.subr.mxu0 0.0
    %835 = vmatpush1.xpose.msra.mxu0 0.0
    %836 = vmatprep.subr.mxu0 0.0
    %837 = vmatpush1.xpose.msra.mxu0 0.0
    %838 = vmatprep.subr.mxu0 0.0
    %839 = vmatpush1.xpose.msra.mxu0 0.0
    %840 = vmatprep.subr.mxu0 0.0
    %841 = vmatpush1.xpose.msra.mxu0 0.0
    %842 = vmatprep.subr.mxu0 0.0
    %843 = vmatpush1.xpose.msra.mxu0 0.0
    %844 = vmatprep.subr.mxu0 0.0
    %845 = vmatpush1.xpose.msra.mxu0 0.0
    %846 = vmatprep.subr.mxu0 0.0
    %847 = vmatpush1.xpose.msra.mxu0 0.0
    %848 = vmatprep.subr.mxu0 0.0
    %849 = vmatpush1.xpose.msra.mxu0 0.0
    %850 = vmatprep.subr.mxu0 0.0
    %851 = vmatpush1.xpose.msra.mxu0 0.0
    %852 = vmatprep.subr.mxu0 0.0
    %853 = vmatpush1.xpose.msra.mxu0 0.0
    %854 = vmatprep.subr.mxu0 0.0
    %855 = vmatpush1.xpose.msra.mxu0 0.0
    %856 = vmatprep.subr.mxu0 0.0
    %857 = vmatpush1.xpose.msra.mxu0 0.0
    %858 = vmatprep.subr.mxu0 0.0
    %859 = vmatpush1.xpose.msra.mxu0 0.0
    %860 = vmatprep.subr.mxu0 0.0
    %861 = vmatpush1.xpose.msra.mxu0 0.0
    %862 = vmatprep.mubr.f32.mxu0 0.0
    %863 = vmatmul.mubr.f32.gmra.mrb[0].mxu0 %v794
    %v864 = vpop.f32.mrb[0].mxu0
    %v865 = vadd.f32 0.0, %v864
    %v866 = vpop.f32.mrb[0].mxu0
    %867 = vdwg.mxu0
    %v868 = vsel %vm115, %v865, -inf
    %869 = vmax.xlane.f32.xlu0 %v868
    %v870 = vpop.xlane.xlu0 %869
    %v871 = vsub.f32 %v865, %v870
    %v872 = vmul.f32 %v871, 1.442695
    %v873 = vpow.pop %v872
    %v874 = vsel %vm115, %v873, 0.0
    %875 = vadd.xlane.f32.xlu0 %v874
    %v876 = vpop.xlane.xlu0 %875
    %v877 = vrcp.pop %v876
    %v878 = vmul.f32 %v873, %v877
    %879 = vrot.lane.b32.xlu0 %v109, 64
    %v880 = vpop.permute.xlu0 %879
    %v883 = vsel %vm115, %v878, 0
    %885 = vmatprep.subr.mxu0 0.0
    %886 = vmatpush1.msra.mxu0 %v880
    %887 = vmatprep.subr.mxu0 0.0
    %888 = vmatpush1.msra.mxu0 0.0
    %889 = vmatprep.subr.mxu0 0.0
    %890 = vmatpush1.msra.mxu0 0.0
    %891 = vmatprep.subr.mxu0 0.0
    %892 = vmatpush1.msra.mxu0 0.0
    %893 = vmatprep.subr.mxu0 0.0
    %894 = vmatpush1.msra.mxu0 0.0
    %895 = vmatprep.subr.mxu0 0.0
    %896 = vmatpush1.msra.mxu0 0.0
    %897 = vmatprep.subr.mxu0 0.0
    %898 = vmatpush1.msra.mxu0 0.0
    %899 = vmatprep.subr.mxu0 0.0
    %900 = vmatpush1.msra.mxu0 0.0
    %901 = vmatprep.subr.mxu0 0.0
    %902 = vmatpush1.msra.mxu0 0.0
    %903 = vmatprep.subr.mxu0 0.0
    %904 = vmatpush1.msra.mxu0 0.0
    %905 = vmatprep.subr.mxu0 0.0
    %906 = vmatpush1.msra.mxu0 0.0
    %907 = vmatprep.subr.mxu0 0.0
    %908 = vmatpush1.msra.mxu0 0.0
    %909 = vmatprep.subr.mxu0 0.0
    %910 = vmatpush1.msra.mxu0 0.0
    %911 = vmatprep.subr.mxu0 0.0
    %912 = vmatpush1.msra.mxu0 0.0
    %913 = vmatprep.subr.mxu0 0.0
    %914 = vmatpush1.msra.mxu0 0.0
    %915 = vmatprep.subr.mxu0 0.0
    %916 = vmatpush1.msra.mxu0 0.0
    %917 = vmatprep.subr.mxu0 0.0
    %918 = vmatpush1.msra.mxu0 0.0
    %919 = vmatprep.subr.mxu0 0.0
    %920 = vmatpush1.msra.mxu0 0.0
    %921 = vmatprep.subr.mxu0 0.0
    %922 = vmatpush1.msra.mxu0 0.0
    %923 = vmatprep.subr.mxu0 0.0
    %924 = vmatpush1.msra.mxu0 0.0
    %925 = vmatprep.subr.mxu0 0.0
    %926 = vmatpush1.msra.mxu0 0.0
    %927 = vmatprep.subr.mxu0 0.0
    %928 = vmatpush1.msra.mxu0 0.0
    %929 = vmatprep.subr.mxu0 0.0
    %930 = vmatpush1.msra.mxu0 0.0
    %931 = vmatprep.subr.mxu0 0.0
    %932 = vmatpush1.msra.mxu0 0.0
    %933 = vmatprep.subr.mxu0 0.0
    %934 = vmatpush1.msra.mxu0 0.0
    %935 = vmatprep.subr.mxu0 0.0
    %936 = vmatpush1.msra.mxu0 0.0
    %937 = vmatprep.subr.mxu0 0.0
    %938 = vmatpush1.msra.mxu0 0.0
    %939 = vmatprep.subr.mxu0 0.0
    %940 = vmatpush1.msra.mxu0 0.0
    %941 = vmatprep.subr.mxu0 0.0
    %942 = vmatpush1.msra.mxu0 0.0
    %943 = vmatprep.subr.mxu0 0.0
    %944 = vmatpush1.msra.mxu0 0.0
    %945 = vmatprep.subr.mxu0 0.0
    %946 = vmatpush1.msra.mxu0 0.0
    %947 = vmatprep.subr.mxu0 0.0
    %948 = vmatpush1.msra.mxu0 0.0
    %949 = vmatprep.mubr.f32.mxu0 0.0
    %950 = vmatmul.mubr.f32.gmra.mrb[0].mxu0 %v883
    %v951 = vpop.f32.mrb[0].mxu0
    %v952 = vadd.f32 0.0, %v951
    %v953 = vpop.f32.mrb[0].mxu0
    %954 = vdwg.mxu0
    %s955 = scalar_lea.vmem [#allocation2], 8
    %956 = vst.msk [vmem:[%s955] sm:$0xff] %vm115, %v952
    %957 = vrot.lane.b32.xlu0 %v109, 120
    %v958 = vpop.permute.xlu0 %957
    %959 = vrot.lane.b32.xlu0 %v109, 88
    %v960 = vpop.permute.xlu0 %959
    %v961 = vsel %vm115, %v958, 0
    %v963 = vsel %vm115, %v960, 0
    %965 = vmatprep.subr.mxu0 0.0
    %966 = vmatpush1.xpose.msra.mxu0 %v963
    %967 = vmatprep.subr.mxu0 0.0
    %968 = vmatpush1.xpose.msra.mxu0 0.0
    %969 = vmatprep.subr.mxu0 0.0
    %970 = vmatpush1.xpose.msra.mxu0 0.0
    %971 = vmatprep.subr.mxu0 0.0
    %972 = vmatpush1.xpose.msra.mxu0 0.0
    %973 = vmatprep.subr.mxu0 0.0
    %974 = vmatpush1.xpose.msra.mxu0 0.0
    %975 = vmatprep.subr.mxu0 0.0
    %976 = vmatpush1.xpose.msra.mxu0 0.0
    %977 = vmatprep.subr.mxu0 0.0
    %978 = vmatpush1.xpose.msra.mxu0 0.0
    %979 = vmatprep.subr.mxu0 0.0
    %980 = vmatpush1.xpose.msra.mxu0 0.0
    %981 = vmatprep.subr.mxu0 0.0
    %982 = vmatpush1.xpose.msra.mxu0 0.0
    %983 = vmatprep.subr.mxu0 0.0
    %984 = vmatpush1.xpose.msra.mxu0 0.0
    %985 = vmatprep.subr.mxu0 0.0
    %986 = vmatpush1.xpose.msra.mxu0 0.0
    %987 = vmatprep.subr.mxu0 0.0
    %988 = vmatpush1.xpose.msra.mxu0 0.0
    %989 = vmatprep.subr.mxu0 0.0
    %990 = vmatpush1.xpose.msra.mxu0 0.0
    %991 = vmatprep.subr.mxu0 0.0
    %992 = vmatpush1.xpose.msra.mxu0 0.0
    %993 = vmatprep.subr.mxu0 0.0
    %994 = vmatpush1.xpose.msra.mxu0 0.0
    %995 = vmatprep.subr.mxu0 0.0
    %996 = vmatpush1.xpose.msra.mxu0 0.0
    %997 = vmatprep.subr.mxu0 0.0
    %998 = vmatpush1.xpose.msra.mxu0 0.0
    %999 = vmatprep.subr.mxu0 0.0
    %1000 = vmatpush1.xpose.msra.mxu0 0.0
    %1001 = vmatprep.subr.mxu0 0.0
    %1002 = vmatpush1.xpose.msra.mxu0 0.0
    %1003 = vmatprep.subr.mxu0 0.0
    %1004 = vmatpush1.xpose.msra.mxu0 0.0
    %1005 = vmatprep.subr.mxu0 0.0
    %1006 = vmatpush1.xpose.msra.mxu0 0.0
    %1007 = vmatprep.subr.mxu0 0.0
    %1008 = vmatpush1.xpose.msra.mxu0 0.0
    %1009 = vmatprep.subr.mxu0 0.0
    %1010 = vmatpush1.xpose.msra.mxu0 0.0
    %1011 = vmatprep.subr.mxu0 0.0
    %1012 = vmatpush1.xpose.msra.mxu0 0.0
    %1013 = vmatprep.subr.mxu0 0.0
    %1014 = vmatpush1.xpose.msra.mxu0 0.0
    %1015 = vmatprep.subr.mxu0 0.0
    %1016 = vmatpush1.xpose.msra.mxu0 0.0
    %1017 = vmatprep.subr.mxu0 0.0
    %1018 = vmatpush1.xpose.msra.mxu0 0.0
    %1019 = vmatprep.subr.mxu0 0.0
    %1020 = vmatpush1.xpose.msra.mxu0 0.0
    %1021 = vmatprep.subr.mxu0 0.0
    %1022 = vmatpush1.xpose.msra.mxu0 0.0
    %1023 = vmatprep.subr.mxu0 0.0
    %1024 = vmatpush1.xpose.msra.mxu0 0.0
    %1025 = vmatprep.subr.mxu0 0.0
    %1026 = vmatpush1.xpose.msra.mxu0 0.0
    %1027 = vmatprep.subr.mxu0 0.0
    %1028 = vmatpush1.xpose.msra.mxu0 0.0
    %1029 = vmatprep.mubr.f32.mxu0 0.0
    %1030 = vmatmul.mubr.f32.gmra.mrb[0].mxu0 %v961
    %v1031 = vpop.f32.mrb[0].mxu0
    %v1032 = vadd.f32 0.0, %v1031
    %v1033 = vpop.f32.mrb[0].mxu0
    %1034 = vdwg.mxu0
    %v1035 = vsel %vm115, %v1032, -inf
    %1036 = vmax.xlane.f32.xlu0 %v1035
    %v1037 = vpop.xlane.xlu0 %1036
    %v1038 = vsub.f32 %v1032, %v1037
    %v1039 = vmul.f32 %v1038, 1.442695
    %v1040 = vpow.pop %v1039
    %v1041 = vsel %vm115, %v1040, 0.0
    %1042 = vadd.xlane.f32.xlu0 %v1041
    %v1043 = vpop.xlane.xlu0 %1042
    %v1044 = vrcp.pop %v1043
    %v1045 = vmul.f32 %v1040, %v1044
    %1046 = vrot.lane.b32.xlu0 %v109, 56
    %v1047 = vpop.permute.xlu0 %1046
    %v1050 = vsel %vm115, %v1045, 0
    %1052 = vmatprep.subr.mxu0 0.0
    %1053 = vmatpush1.msra.mxu0 %v1047
    %1054 = vmatprep.subr.mxu0 0.0
    %1055 = vmatpush1.msra.mxu0 0.0
    %1056 = vmatprep.subr.mxu0 0.0
    %1057 = vmatpush1.msra.mxu0 0.0
    %1058 = vmatprep.subr.mxu0 0.0
    %1059 = vmatpush1.msra.mxu0 0.0
    %1060 = vmatprep.subr.mxu0 0.0
    %1061 = vmatpush1.msra.mxu0 0.0
    %1062 = vmatprep.subr.mxu0 0.0
    %1063 = vmatpush1.msra.mxu0 0.0
    %1064 = vmatprep.subr.mxu0 0.0
    %1065 = vmatpush1.msra.mxu0 0.0
    %1066 = vmatprep.subr.mxu0 0.0
    %1067 = vmatpush1.msra.mxu0 0.0
    %1068 = vmatprep.subr.mxu0 0.0
    %1069 = vmatpush1.msra.mxu0 0.0
    %1070 = vmatprep.subr.mxu0 0.0
    %1071 = vmatpush1.msra.mxu0 0.0
    %1072 = vmatprep.subr.mxu0 0.0
    %1073 = vmatpush1.msra.mxu0 0.0
    %1074 = vmatprep.subr.mxu0 0.0
    %1075 = vmatpush1.msra.mxu0 0.0
    %1076 = vmatprep.subr.mxu0 0.0
    %1077 = vmatpush1.msra.mxu0 0.0
    %1078 = vmatprep.subr.mxu0 0.0
    %1079 = vmatpush1.msra.mxu0 0.0
    %1080 = vmatprep.subr.mxu0 0.0
    %1081 = vmatpush1.msra.mxu0 0.0
    %1082 = vmatprep.subr.mxu0 0.0
    %1083 = vmatpush1.msra.mxu0 0.0
    %1084 = vmatprep.subr.mxu0 0.0
    %1085 = vmatpush1.msra.mxu0 0.0
    %1086 = vmatprep.subr.mxu0 0.0
    %1087 = vmatpush1.msra.mxu0 0.0
    %1088 = vmatprep.subr.mxu0 0.0
    %1089 = vmatpush1.msra.mxu0 0.0
    %1090 = vmatprep.subr.mxu0 0.0
    %1091 = vmatpush1.msra.mxu0 0.0
    %1092 = vmatprep.subr.mxu0 0.0
    %1093 = vmatpush1.msra.mxu0 0.0
    %1094 = vmatprep.subr.mxu0 0.0
    %1095 = vmatpush1.msra.mxu0 0.0
    %1096 = vmatprep.subr.mxu0 0.0
    %1097 = vmatpush1.msra.mxu0 0.0
    %1098 = vmatprep.subr.mxu0 0.0
    %1099 = vmatpush1.msra.mxu0 0.0
    %1100 = vmatprep.subr.mxu0 0.0
    %1101 = vmatpush1.msra.mxu0 0.0
    %1102 = vmatprep.subr.mxu0 0.0
    %1103 = vmatpush1.msra.mxu0 0.0
    %1104 = vmatprep.subr.mxu0 0.0
    %1105 = vmatpush1.msra.mxu0 0.0
    %1106 = vmatprep.subr.mxu0 0.0
    %1107 = vmatpush1.msra.mxu0 0.0
    %1108 = vmatprep.subr.mxu0 0.0
    %1109 = vmatpush1.msra.mxu0 0.0
    %1110 = vmatprep.subr.mxu0 0.0
    %1111 = vmatpush1.msra.mxu0 0.0
    %1112 = vmatprep.subr.mxu0 0.0
    %1113 = vmatpush1.msra.mxu0 0.0
    %1114 = vmatprep.subr.mxu0 0.0
    %1115 = vmatpush1.msra.mxu0 0.0
    %1116 = vmatprep.mubr.f32.mxu0 0.0
    %1117 = vmatmul.mubr.f32.gmra.mrb[0].mxu0 %v1050
    %v1118 = vpop.f32.mrb[0].mxu0
    %v1119 = vadd.f32 0.0, %v1118
    %v1120 = vpop.f32.mrb[0].mxu0
    %1121 = vdwg.mxu0
    %1123 = vrot.lane.b32.xlu0 %v1119, 8
    %v1124 = vpop.permute.xlu0 %1123
    %1126 = vst.msk [vmem:[%s955] sm:$0xff] %vm447, %v1124
    %1127 = vrot.lane.b32.xlu0 %v109, 112
    %v1128 = vpop.permute.xlu0 %1127
    %1129 = vrot.lane.b32.xlu0 %v109, 80
    %v1130 = vpop.permute.xlu0 %1129
    %v1131 = vsel %vm115, %v1128, 0
    %v1133 = vsel %vm115, %v1130, 0
    %1135 = vmatprep.subr.mxu0 0.0
    %1136 = vmatpush1.xpose.msra.mxu0 %v1133
    %1137 = vmatprep.subr.mxu0 0.0
    %1138 = vmatpush1.xpose.msra.mxu0 0.0
    %1139 = vmatprep.subr.mxu0 0.0
    %1140 = vmatpush1.xpose.msra.mxu0 0.0
    %1141 = vmatprep.subr.mxu0 0.0
    %1142 = vmatpush1.xpose.msra.mxu0 0.0
    %1143 = vmatprep.subr.mxu0 0.0
    %1144 = vmatpush1.xpose.msra.mxu0 0.0
    %1145 = vmatprep.subr.mxu0 0.0
    %1146 = vmatpush1.xpose.msra.mxu0 0.0
    %1147 = vmatprep.subr.mxu0 0.0
    %1148 = vmatpush1.xpose.msra.mxu0 0.0
    %1149 = vmatprep.subr.mxu0 0.0
    %1150 = vmatpush1.xpose.msra.mxu0 0.0
    %1151 = vmatprep.subr.mxu0 0.0
    %1152 = vmatpush1.xpose.msra.mxu0 0.0
    %1153 = vmatprep.subr.mxu0 0.0
    %1154 = vmatpush1.xpose.msra.mxu0 0.0
    %1155 = vmatprep.subr.mxu0 0.0
    %1156 = vmatpush1.xpose.msra.mxu0 0.0
    %1157 = vmatprep.subr.mxu0 0.0
    %1158 = vmatpush1.xpose.msra.mxu0 0.0
    %1159 = vmatprep.subr.mxu0 0.0
    %1160 = vmatpush1.xpose.msra.mxu0 0.0
    %1161 = vmatprep.subr.mxu0 0.0
    %1162 = vmatpush1.xpose.msra.mxu0 0.0
    %1163 = vmatprep.subr.mxu0 0.0
    %1164 = vmatpush1.xpose.msra.mxu0 0.0
    %1165 = vmatprep.subr.mxu0 0.0
    %1166 = vmatpush1.xpose.msra.mxu0 0.0
    %1167 = vmatprep.subr.mxu0 0.0
    %1168 = vmatpush1.xpose.msra.mxu0 0.0
    %1169 = vmatprep.subr.mxu0 0.0
    %1170 = vmatpush1.xpose.msra.mxu0 0.0
    %1171 = vmatprep.subr.mxu0 0.0
    %1172 = vmatpush1.xpose.msra.mxu0 0.0
    %1173 = vmatprep.subr.mxu0 0.0
    %1174 = vmatpush1.xpose.msra.mxu0 0.0
    %1175 = vmatprep.subr.mxu0 0.0
    %1176 = vmatpush1.xpose.msra.mxu0 0.0
    %1177 = vmatprep.subr.mxu0 0.0
    %1178 = vmatpush1.xpose.msra.mxu0 0.0
    %1179 = vmatprep.subr.mxu0 0.0
    %1180 = vmatpush1.xpose.msra.mxu0 0.0
    %1181 = vmatprep.subr.mxu0 0.0
    %1182 = vmatpush1.xpose.msra.mxu0 0.0
    %1183 = vmatprep.subr.mxu0 0.0
    %1184 = vmatpush1.xpose.msra.mxu0 0.0
    %1185 = vmatprep.subr.mxu0 0.0
    %1186 = vmatpush1.xpose.msra.mxu0 0.0
    %1187 = vmatprep.subr.mxu0 0.0
    %1188 = vmatpush1.xpose.msra.mxu0 0.0
    %1189 = vmatprep.subr.mxu0 0.0
    %1190 = vmatpush1.xpose.msra.mxu0 0.0
    %1191 = vmatprep.subr.mxu0 0.0
    %1192 = vmatpush1.xpose.msra.mxu0 0.0
    %1193 = vmatprep.subr.mxu0 0.0
    %1194 = vmatpush1.xpose.msra.mxu0 0.0
    %1195 = vmatprep.subr.mxu0 0.0
    %1196 = vmatpush1.xpose.msra.mxu0 0.0
    %1197 = vmatprep.subr.mxu0 0.0
    %1198 = vmatpush1.xpose.msra.mxu0 0.0
    %1199 = vmatprep.mubr.f32.mxu0 0.0
    %1200 = vmatmul.mubr.f32.gmra.mrb[0].mxu0 %v1131
    %v1201 = vpop.f32.mrb[0].mxu0
    %v1202 = vadd.f32 0.0, %v1201
    %v1203 = vpop.f32.mrb[0].mxu0
    %1204 = vdwg.mxu0
    %v1205 = vsel %vm115, %v1202, -inf
    %1206 = vmax.xlane.f32.xlu0 %v1205
    %v1207 = vpop.xlane.xlu0 %1206
    %v1208 = vsub.f32 %v1202, %v1207
    %v1209 = vmul.f32 %v1208, 1.442695
    %v1210 = vpow.pop %v1209
    %v1211 = vsel %vm115, %v1210, 0.0
    %1212 = vadd.xlane.f32.xlu0 %v1211
    %v1213 = vpop.xlane.xlu0 %1212
    %v1214 = vrcp.pop %v1213
    %v1215 = vmul.f32 %v1210, %v1214
    %1216 = vrot.lane.b32.xlu0 %v109, 48
    %v1217 = vpop.permute.xlu0 %1216
    %v1220 = vsel %vm115, %v1215, 0
    %1222 = vmatprep.subr.mxu0 0.0
    %1223 = vmatpush1.msra.mxu0 %v1217
    %1224 = vmatprep.subr.mxu0 0.0
    %1225 = vmatpush1.msra.mxu0 0.0
    %1226 = vmatprep.subr.mxu0 0.0
    %1227 = vmatpush1.msra.mxu0 0.0
    %1228 = vmatprep.subr.mxu0 0.0
    %1229 = vmatpush1.msra.mxu0 0.0
    %1230 = vmatprep.subr.mxu0 0.0
    %1231 = vmatpush1.msra.mxu0 0.0
    %1232 = vmatprep.subr.mxu0 0.0
    %1233 = vmatpush1.msra.mxu0 0.0
    %1234 = vmatprep.subr.mxu0 0.0
    %1235 = vmatpush1.msra.mxu0 0.0
    %1236 = vmatprep.subr.mxu0 0.0
    %1237 = vmatpush1.msra.mxu0 0.0
    %1238 = vmatprep.subr.mxu0 0.0
    %1239 = vmatpush1.msra.mxu0 0.0
    %1240 = vmatprep.subr.mxu0 0.0
    %1241 = vmatpush1.msra.mxu0 0.0
    %1242 = vmatprep.subr.mxu0 0.0
    %1243 = vmatpush1.msra.mxu0 0.0
    %1244 = vmatprep.subr.mxu0 0.0
    %1245 = vmatpush1.msra.mxu0 0.0
    %1246 = vmatprep.subr.mxu0 0.0
    %1247 = vmatpush1.msra.mxu0 0.0
    %1248 = vmatprep.subr.mxu0 0.0
    %1249 = vmatpush1.msra.mxu0 0.0
    %1250 = vmatprep.subr.mxu0 0.0
    %1251 = vmatpush1.msra.mxu0 0.0
    %1252 = vmatprep.subr.mxu0 0.0
    %1253 = vmatpush1.msra.mxu0 0.0
    %1254 = vmatprep.subr.mxu0 0.0
    %1255 = vmatpush1.msra.mxu0 0.0
    %1256 = vmatprep.subr.mxu0 0.0
    %1257 = vmatpush1.msra.mxu0 0.0
    %1258 = vmatprep.subr.mxu0 0.0
    %1259 = vmatpush1.msra.mxu0 0.0
    %1260 = vmatprep.subr.mxu0 0.0
    %1261 = vmatpush1.msra.mxu0 0.0
    %1262 = vmatprep.subr.mxu0 0.0
    %1263 = vmatpush1.msra.mxu0 0.0
    %1264 = vmatprep.subr.mxu0 0.0
    %1265 = vmatpush1.msra.mxu0 0.0
    %1266 = vmatprep.subr.mxu0 0.0
    %1267 = vmatpush1.msra.mxu0 0.0
    %1268 = vmatprep.subr.mxu0 0.0
    %1269 = vmatpush1.msra.mxu0 0.0
    %1270 = vmatprep.subr.mxu0 0.0
    %1271 = vmatpush1.msra.mxu0 0.0
    %1272 = vmatprep.subr.mxu0 0.0
    %1273 = vmatpush1.msra.mxu0 0.0
    %1274 = vmatprep.subr.mxu0 0.0
    %1275 = vmatpush1.msra.mxu0 0.0
    %1276 = vmatprep.subr.mxu0 0.0
    %1277 = vmatpush1.msra.mxu0 0.0
    %1278 = vmatprep.subr.mxu0 0.0
    %1279 = vmatpush1.msra.mxu0 0.0
    %1280 = vmatprep.subr.mxu0 0.0
    %1281 = vmatpush1.msra.mxu0 0.0
    %1282 = vmatprep.subr.mxu0 0.0
    %1283 = vmatpush1.msra.mxu0 0.0
    %1284 = vmatprep.subr.mxu0 0.0
    %1285 = vmatpush1.msra.mxu0 0.0
    %1286 = vmatprep.mubr.f32.mxu0 0.0
    %1287 = vmatmul.mubr.f32.gmra.mrb[0].mxu0 %v1220
    %v1288 = vpop.f32.mrb[0].mxu0
    %v1289 = vadd.f32 0.0, %v1288
    %v1290 = vpop.f32.mrb[0].mxu0
    %1291 = vdwg.mxu0
    %1293 = vrot.lane.b32.xlu0 %v1289, 16
    %v1294 = vpop.permute.xlu0 %1293
    %1296 = vst.msk [vmem:[%s955] sm:$0xff] %vm618, %v1294
    %1297 = vrot.lane.b32.xlu0 %v109, 104
    %v1298 = vpop.permute.xlu0 %1297
    %1299 = vrot.lane.b32.xlu0 %v109, 72
    %v1300 = vpop.permute.xlu0 %1299
    %v1301 = vsel %vm115, %v1298, 0
    %v1303 = vsel %vm115, %v1300, 0
    %1305 = vmatprep.subr.mxu0 0.0
    %1306 = vmatpush1.xpose.msra.mxu0 %v1303
    %1307 = vmatprep.subr.mxu0 0.0
    %1308 = vmatpush1.xpose.msra.mxu0 0.0
    %1309 = vmatprep.subr.mxu0 0.0
    %1310 = vmatpush1.xpose.msra.mxu0 0.0
    %1311 = vmatprep.subr.mxu0 0.0
    %1312 = vmatpush1.xpose.msra.mxu0 0.0
    %1313 = vmatprep.subr.mxu0 0.0
    %1314 = vmatpush1.xpose.msra.mxu0 0.0
    %1315 = vmatprep.subr.mxu0 0.0
    %1316 = vmatpush1.xpose.msra.mxu0 0.0
    %1317 = vmatprep.subr.mxu0 0.0
    %1318 = vmatpush1.xpose.msra.mxu0 0.0
    %1319 = vmatprep.subr.mxu0 0.0
    %1320 = vmatpush1.xpose.msra.mxu0 0.0
    %1321 = vmatprep.subr.mxu0 0.0
    %1322 = vmatpush1.xpose.msra.mxu0 0.0
    %1323 = vmatprep.subr.mxu0 0.0
    %1324 = vmatpush1.xpose.msra.mxu0 0.0
    %1325 = vmatprep.subr.mxu0 0.0
    %1326 = vmatpush1.xpose.msra.mxu0 0.0
    %1327 = vmatprep.subr.mxu0 0.0
    %1328 = vmatpush1.xpose.msra.mxu0 0.0
    %1329 = vmatprep.subr.mxu0 0.0
    %1330 = vmatpush1.xpose.msra.mxu0 0.0
    %1331 = vmatprep.subr.mxu0 0.0
    %1332 = vmatpush1.xpose.msra.mxu0 0.0
    %1333 = vmatprep.subr.mxu0 0.0
    %1334 = vmatpush1.xpose.msra.mxu0 0.0
    %1335 = vmatprep.subr.mxu0 0.0
    %1336 = vmatpush1.xpose.msra.mxu0 0.0
    %1337 = vmatprep.subr.mxu0 0.0
    %1338 = vmatpush1.xpose.msra.mxu0 0.0
    %1339 = vmatprep.subr.mxu0 0.0
    %1340 = vmatpush1.xpose.msra.mxu0 0.0
    %1341 = vmatprep.subr.mxu0 0.0
    %1342 = vmatpush1.xpose.msra.mxu0 0.0
    %1343 = vmatprep.subr.mxu0 0.0
    %1344 = vmatpush1.xpose.msra.mxu0 0.0
    %1345 = vmatprep.subr.mxu0 0.0
    %1346 = vmatpush1.xpose.msra.mxu0 0.0
    %1347 = vmatprep.subr.mxu0 0.0
    %1348 = vmatpush1.xpose.msra.mxu0 0.0
    %1349 = vmatprep.subr.mxu0 0.0
    %1350 = vmatpush1.xpose.msra.mxu0 0.0
    %1351 = vmatprep.subr.mxu0 0.0
    %1352 = vmatpush1.xpose.msra.mxu0 0.0
    %1353 = vmatprep.subr.mxu0 0.0
    %1354 = vmatpush1.xpose.msra.mxu0 0.0
    %1355 = vmatprep.subr.mxu0 0.0
    %1356 = vmatpush1.xpose.msra.mxu0 0.0
    %1357 = vmatprep.subr.mxu0 0.0
    %1358 = vmatpush1.xpose.msra.mxu0 0.0
    %1359 = vmatprep.subr.mxu0 0.0
    %1360 = vmatpush1.xpose.msra.mxu0 0.0
    %1361 = vmatprep.subr.mxu0 0.0
    %1362 = vmatpush1.xpose.msra.mxu0 0.0
    %1363 = vmatprep.subr.mxu0 0.0
    %1364 = vmatpush1.xpose.msra.mxu0 0.0
    %1365 = vmatprep.subr.mxu0 0.0
    %1366 = vmatpush1.xpose.msra.mxu0 0.0
    %1367 = vmatprep.subr.mxu0 0.0
    %1368 = vmatpush1.xpose.msra.mxu0 0.0
    %1369 = vmatprep.mubr.f32.mxu0 0.0
    %1370 = vmatmul.mubr.f32.gmra.mrb[0].mxu0 %v1301
    %v1371 = vpop.f32.mrb[0].mxu0
    %v1372 = vadd.f32 0.0, %v1371
    %v1373 = vpop.f32.mrb[0].mxu0
    %1374 = vdwg.mxu0
    %v1375 = vsel %vm115, %v1372, -inf
    %1376 = vmax.xlane.f32.xlu0 %v1375
    %v1377 = vpop.xlane.xlu0 %1376
    %v1378 = vsub.f32 %v1372, %v1377
    %v1379 = vmul.f32 %v1378, 1.442695
    %v1380 = vpow.pop %v1379
    %v1381 = vsel %vm115, %v1380, 0.0
    %1382 = vadd.xlane.f32.xlu0 %v1381
    %v1383 = vpop.xlane.xlu0 %1382
    %v1384 = vrcp.pop %v1383
    %v1385 = vmul.f32 %v1380, %v1384
    %1386 = vrot.lane.b32.xlu0 %v109, 40
    %v1387 = vpop.permute.xlu0 %1386
    %v1390 = vsel %vm115, %v1385, 0
    %1392 = vmatprep.subr.mxu0 0.0
    %1393 = vmatpush1.msra.mxu0 %v1387
    %1394 = vmatprep.subr.mxu0 0.0
    %1395 = vmatpush1.msra.mxu0 0.0
    %1396 = vmatprep.subr.mxu0 0.0
    %1397 = vmatpush1.msra.mxu0 0.0
    %1398 = vmatprep.subr.mxu0 0.0
    %1399 = vmatpush1.msra.mxu0 0.0
    %1400 = vmatprep.subr.mxu0 0.0
    %1401 = vmatpush1.msra.mxu0 0.0
    %1402 = vmatprep.subr.mxu0 0.0
    %1403 = vmatpush1.msra.mxu0 0.0
    %1404 = vmatprep.subr.mxu0 0.0
    %1405 = vmatpush1.msra.mxu0 0.0
    %1406 = vmatprep.subr.mxu0 0.0
    %1407 = vmatpush1.msra.mxu0 0.0
    %1408 = vmatprep.subr.mxu0 0.0
    %1409 = vmatpush1.msra.mxu0 0.0
    %1410 = vmatprep.subr.mxu0 0.0
    %1411 = vmatpush1.msra.mxu0 0.0
    %1412 = vmatprep.subr.mxu0 0.0
    %1413 = vmatpush1.msra.mxu0 0.0
    %1414 = vmatprep.subr.mxu0 0.0
    %1415 = vmatpush1.msra.mxu0 0.0
    %1416 = vmatprep.subr.mxu0 0.0
    %1417 = vmatpush1.msra.mxu0 0.0
    %1418 = vmatprep.subr.mxu0 0.0
    %1419 = vmatpush1.msra.mxu0 0.0
    %1420 = vmatprep.subr.mxu0 0.0
    %1421 = vmatpush1.msra.mxu0 0.0
    %1422 = vmatprep.subr.mxu0 0.0
    %1423 = vmatpush1.msra.mxu0 0.0
    %1424 = vmatprep.subr.mxu0 0.0
    %1425 = vmatpush1.msra.mxu0 0.0
    %1426 = vmatprep.subr.mxu0 0.0
    %1427 = vmatpush1.msra.mxu0 0.0
    %1428 = vmatprep.subr.mxu0 0.0
    %1429 = vmatpush1.msra.mxu0 0.0
    %1430 = vmatprep.subr.mxu0 0.0
    %1431 = vmatpush1.msra.mxu0 0.0
    %1432 = vmatprep.subr.mxu0 0.0
    %1433 = vmatpush1.msra.mxu0 0.0
    %1434 = vmatprep.subr.mxu0 0.0
    %1435 = vmatpush1.msra.mxu0 0.0
    %1436 = vmatprep.subr.mxu0 0.0
    %1437 = vmatpush1.msra.mxu0 0.0
    %1438 = vmatprep.subr.mxu0 0.0
    %1439 = vmatpush1.msra.mxu0 0.0
    %1440 = vmatprep.subr.mxu0 0.0
    %1441 = vmatpush1.msra.mxu0 0.0
    %1442 = vmatprep.subr.mxu0 0.0
    %1443 = vmatpush1.msra.mxu0 0.0
    %1444 = vmatprep.subr.mxu0 0.0
    %1445 = vmatpush1.msra.mxu0 0.0
    %1446 = vmatprep.subr.mxu0 0.0
    %1447 = vmatpush1.msra.mxu0 0.0
    %1448 = vmatprep.subr.mxu0 0.0
    %1449 = vmatpush1.msra.mxu0 0.0
    %1450 = vmatprep.subr.mxu0 0.0
    %1451 = vmatpush1.msra.mxu0 0.0
    %1452 = vmatprep.subr.mxu0 0.0
    %1453 = vmatpush1.msra.mxu0 0.0
    %1454 = vmatprep.subr.mxu0 0.0
    %1455 = vmatpush1.msra.mxu0 0.0
    %1456 = vmatprep.mubr.f32.mxu0 0.0
    %1457 = vmatmul.mubr.f32.gmra.mrb[0].mxu0 %v1390
    %v1458 = vpop.f32.mrb[0].mxu0
    %v1459 = vadd.f32 0.0, %v1458
    %v1460 = vpop.f32.mrb[0].mxu0
    %1461 = vdwg.mxu0
    %1463 = vrot.lane.b32.xlu0 %v1459, 24
    %v1464 = vpop.permute.xlu0 %1463
    %1466 = vst.msk [vmem:[%s955] sm:$0xff] %vm789, %v1464
    %v1467 = vld [vmem:[#allocation2] sm:$0xff]
    %v1468 = vld [vmem:[#allocation2 + $0x8] sm:$0xff]
    %v1469 = vld [vmem:[%s2] sm:$0xff]
    %v1470 = vld [vmem:[%s2 + $0x8] sm:$0xff]
    %v1471 = vld [vmem:[%s2 + $0x10] sm:$0xff]
    %v1472 = vld [vmem:[%s2 + $0x18] sm:$0xff]
    %v1473 = vld [vmem:[%s3] sm:$0x1]
    %v1475 = vlaneseq
    %v1476 = vshrl.u32 %v1475, 7
    %v1477 = vsub.s32 0, %v1476
    %v1478 = vrot.slane %v1473, %v1477
    %v1481 = vsel %vm30, %v1467, 0
    %v1484 = vsel %vm30, %v1468, 0
    %1486 = vmatprep.subr.mxu0 0.0
    %1487 = vmatpush1.msra.mxu0 %v1469
    %1488 = vmatprep.subr.mxu0 0.0
    %1489 = vmatpush1.msra.mxu0 %v1470
    %1490 = vmatprep.subr.mxu0 0.0
    %1491 = vmatpush1.msra.mxu0 %v1471
    %1492 = vmatprep.subr.mxu0 0.0
    %1493 = vmatpush1.msra.mxu0 %v1472
    %1494 = vmatprep.subr.mxu0 0.0
    %1495 = vmatpush1.msra.mxu0 0.0
    %1496 = vmatprep.subr.mxu0 0.0
    %1497 = vmatpush1.msra.mxu0 0.0
    %1498 = vmatprep.subr.mxu0 0.0
    %1499 = vmatpush1.msra.mxu0 0.0
    %1500 = vmatprep.subr.mxu0 0.0
    %1501 = vmatpush1.msra.mxu0 0.0
    %1502 = vmatprep.subr.mxu0 0.0
    %1503 = vmatpush1.msra.mxu0 0.0
    %1504 = vmatprep.subr.mxu0 0.0
    %1505 = vmatpush1.msra.mxu0 0.0
    %1506 = vmatprep.subr.mxu0 0.0
    %1507 = vmatpush1.msra.mxu0 0.0
    %1508 = vmatprep.subr.mxu0 0.0
    %1509 = vmatpush1.msra.mxu0 0.0
    %1510 = vmatprep.subr.mxu0 0.0
    %1511 = vmatpush1.msra.mxu0 0.0
    %1512 = vmatprep.subr.mxu0 0.0
    %1513 = vmatpush1.msra.mxu0 0.0
    %1514 = vmatprep.subr.mxu0 0.0
    %1515 = vmatpush1.msra.mxu0 0.0
    %1516 = vmatprep.subr.mxu0 0.0
    %1517 = vmatpush1.msra.mxu0 0.0
    %1518 = vmatprep.subr.mxu0 0.0
    %1519 = vmatpush1.msra.mxu0 0.0
    %1520 = vmatprep.subr.mxu0 0.0
    %1521 = vmatpush1.msra.mxu0 0.0
    %1522 = vmatprep.subr.mxu0 0.0
    %1523 = vmatpush1.msra.mxu0 0.0
    %1524 = vmatprep.subr.mxu0 0.0
    %1525 = vmatpush1.msra.mxu0 0.0
    %1526 = vmatprep.subr.mxu0 0.0
    %1527 = vmatpush1.msra.mxu0 0.0
    %1528 = vmatprep.subr.mxu0 0.0
    %1529 = vmatpush1.msra.mxu0 0.0
    %1530 = vmatprep.subr.mxu0 0.0
    %1531 = vmatpush1.msra.mxu0 0.0
    %1532 = vmatprep.subr.mxu0 0.0
    %1533 = vmatpush1.msra.mxu0 0.0
    %1534 = vmatprep.subr.mxu0 0.0
    %1535 = vmatpush1.msra.mxu0 0.0
    %1536 = vmatprep.subr.mxu0 0.0
    %1537 = vmatpush1.msra.mxu0 0.0
    %1538 = vmatprep.subr.mxu0 0.0
    %1539 = vmatpush1.msra.mxu0 0.0
    %1540 = vmatprep.subr.mxu0 0.0
    %1541 = vmatpush1.msra.mxu0 0.0
    %1542 = vmatprep.subr.mxu0 0.0
    %1543 = vmatpush1.msra.mxu0 0.0
    %1544 = vmatprep.subr.mxu0 0.0
    %1545 = vmatpush1.msra.mxu0 0.0
    %1546 = vmatprep.subr.mxu0 0.0
    %1547 = vmatpush1.msra.mxu0 0.0
    %1548 = vmatprep.subr.mxu0 0.0
    %1549 = vmatpush1.msra.mxu0 0.0
    %1550 = vmatprep.mubr.f32.mxu0 0.0
    %1551 = vmatmul.mubr.f32.gmra.mrb[0].mxu0 %v1481
    %v1552 = vpop.f32.mrb[0].mxu0
    %v1553 = vadd.f32 %v1478, %v1552
    %v1554 = vpop.f32.mrb[0].mxu0
    %1555 = vmatprep.mubr.f32.mxu0 0.0
    %1556 = vmatmul.mubr.f32.gmra.mrb[0].mxu0 %v1484
    %v1557 = vpop.f32.mrb[0].mxu0
    %v1558 = vadd.f32 %v1478, %v1557
    %v1559 = vpop.f32.mrb[0].mxu0
    %1560 = vdwg.mxu0
    %v1561 = vmul.f32 %v1553, 1.702
    %v1562 = vmul.f32 %v1558, 1.702
    %v1563 = vxor.u32 %v1561, 2147483648
    %v1564 = vxor.u32 %v1562, 2147483648
    %v1565 = vmul.f32 %v1563, 1.442695
    %v1566 = vpow.pop %v1565
    %v1567 = vmul.f32 %v1564, 1.442695
    %v1568 = vpow.pop %v1567
    %v1569 = vadd.f32 %v1566, 1.0
    %v1570 = vadd.f32 %v1568, 1.0
    %v1571 = vrcp.pop %v1569
    %v1572 = vmul.f32 1.0, %v1571
    %v1573 = vrcp.pop %v1570
    %v1574 = vmul.f32 1.0, %v1573
    %v1575 = vmul.f32 %v1553, %v1572
    %v1576 = vmul.f32 %v1558, %v1574
    %v1577 = vld [vmem:[%s4] sm:$0xff]
    %v1578 = vld [vmem:[%s4 + $0x8] sm:$0xff]
    %v1579 = vld [vmem:[%s4 + $0x10] sm:$0xff]
    %v1580 = vld [vmem:[%s4 + $0x18] sm:$0xff]
    %v1581 = vld [vmem:[%s4 + $0x20] sm:$0xff]
    %v1582 = vld [vmem:[%s4 + $0x28] sm:$0xff]
    %v1583 = vld [vmem:[%s4 + $0x30] sm:$0xff]
    %v1584 = vld [vmem:[%s4 + $0x38] sm:$0xff]
    %v1585 = vld [vmem:[%s4 + $0x40] sm:$0xff]
    %v1586 = vld [vmem:[%s4 + $0x48] sm:$0xff]
    %v1587 = vld [vmem:[%s4 + $0x50] sm:$0xff]
    %v1588 = vld [vmem:[%s4 + $0x58] sm:$0xff]
    %v1589 = vld [vmem:[%s5] sm:$0x1]
    %v1591 = vlaneseq
    %v1592 = vshrl.u32 %v1591, 7
    %v1593 = vsub.s32 0, %v1592
    %v1594 = vrot.slane %v1589, %v1593
    %vm1596 = vcmask 785408
    %v1598 = vsel %vm1596, %v1575, 0
    %v1601 = vsel %vm1596, %v1576, 0
    %1603 = vmatprep.subr.mxu0 0.0
    %1604 = vmatpush1.msra.mxu0 %v1577
    %1605 = vmatprep.subr.mxu0 0.0
    %1606 = vmatpush1.msra.mxu0 %v1578
    %1607 = vmatprep.subr.mxu0 0.0
    %1608 = vmatpush1.msra.mxu0 %v1579
    %1609 = vmatprep.subr.mxu0 0.0
    %1610 = vmatpush1.msra.mxu0 %v1580
    %1611 = vmatprep.subr.mxu0 0.0
    %1612 = vmatpush1.msra.mxu0 %v1581
    %1613 = vmatprep.subr.mxu0 0.0
    %1614 = vmatpush1.msra.mxu0 %v1582
    %1615 = vmatprep.subr.mxu0 0.0
    %1616 = vmatpush1.msra.mxu0 %v1583
    %1617 = vmatprep.subr.mxu0 0.0
    %1618 = vmatpush1.msra.mxu0 %v1584
    %1619 = vmatprep.subr.mxu0 0.0
    %1620 = vmatpush1.msra.mxu0 %v1585
    %1621 = vmatprep.subr.mxu0 0.0
    %1622 = vmatpush1.msra.mxu0 %v1586
    %1623 = vmatprep.subr.mxu0 0.0
    %1624 = vmatpush1.msra.mxu0 %v1587
    %1625 = vmatprep.subr.mxu0 0.0
    %1626 = vmatpush1.msra.mxu0 %v1588
    %1627 = vmatprep.subr.mxu0 0.0
    %1628 = vmatpush1.msra.mxu0 0.0
    %1629 = vmatprep.subr.mxu0 0.0
    %1630 = vmatpush1.msra.mxu0 0.0
    %1631 = vmatprep.subr.mxu0 0.0
    %1632 = vmatpush1.msra.mxu0 0.0
    %1633 = vmatprep.subr.mxu0 0.0
    %1634 = vmatpush1.msra.mxu0 0.0
    %1635 = vmatprep.subr.mxu0 0.0
    %1636 = vmatpush1.msra.mxu0 0.0
    %1637 = vmatprep.subr.mxu0 0.0
    %1638 = vmatpush1.msra.mxu0 0.0
    %1639 = vmatprep.subr.mxu0 0.0
    %1640 = vmatpush1.msra.mxu0 0.0
    %1641 = vmatprep.subr.mxu0 0.0
    %1642 = vmatpush1.msra.mxu0 0.0
    %1643 = vmatprep.subr.mxu0 0.0
    %1644 = vmatpush1.msra.mxu0 0.0
    %1645 = vmatprep.subr.mxu0 0.0
    %1646 = vmatpush1.msra.mxu0 0.0
    %1647 = vmatprep.subr.mxu0 0.0
    %1648 = vmatpush1.msra.mxu0 0.0
    %1649 = vmatprep.subr.mxu0 0.0
    %1650 = vmatpush1.msra.mxu0 0.0
    %1651 = vmatprep.subr.mxu0 0.0
    %1652 = vmatpush1.msra.mxu0 0.0
    %1653 = vmatprep.subr.mxu0 0.0
    %1654 = vmatpush1.msra.mxu0 0.0
    %1655 = vmatprep.subr.mxu0 0.0
    %1656 = vmatpush1.msra.mxu0 0.0
    %1657 = vmatprep.subr.mxu0 0.0
    %1658 = vmatpush1.msra.mxu0 0.0
    %1659 = vmatprep.subr.mxu0 0.0
    %1660 = vmatpush1.msra.mxu0 0.0
    %1661 = vmatprep.subr.mxu0 0.0
    %1662 = vmatpush1.msra.mxu0 0.0
    %1663 = vmatprep.subr.mxu0 0.0
    %1664 = vmatpush1.msra.mxu0 0.0
    %1665 = vmatprep.subr.mxu0 0.0
    %1666 = vmatpush1.msra.mxu0 0.0
    %1667 = vmatprep.mubr.f32.mxu0 0.0
    %1668 = vmatmul.mubr.f32.gmra.mrb[0].mxu0 %v1598
    %v1669 = vpop.f32.mrb[0].mxu0
    %v1670 = vadd.f32 %v1594, %v1669
    %v1671 = vpop.f32.mrb[0].mxu0
    %1672 = vmatprep.mubr.f32.mxu0 0.0
    %1673 = vmatmul.mubr.f32.gmra.mrb[0].mxu0 %v1601
    %v1674 = vpop.f32.mrb[0].mxu0
    %v1675 = vadd.f32 %v1594, %v1674
    %v1676 = vpop.f32.mrb[0].mxu0
    %1677 = vdwg.mxu0
    %v1678 = vadd.f32 %v24, %v1670
    %v1679 = vadd.f32 %v25, %v1675
    %1680 = vst.msk [vmem:[#allocation3] sm:$0xff] %vm30, %v1678
    %1681 = vst.msk [vmem:[#allocation3 + $0x8] sm:$0xff] %vm30, %v1679
    // Predicated region
    $region26: #{tpu_custom_call.1} parent=1 // pred_check
      _
    $region27: #{tpu_custom_call.1} parent=1 // pred_check_branch
      %1683 = sbr.rel (0) target = $region29
    $region28: #{tpu_custom_call.1} parent=1 // pred_region
      %s1685 = ssub.s32 256, 256
      %1686 = vsyncadd [#allocation4], %s1685
      %s1687 = sshll.u32 [#allocation3], 4
      %s1688 = int_to_ptr.vmem [resolvable:$true] %s1687
      %1693 = dma.vmem_to_hbm [thread:$0]  %s1688, 256, %s6, [#allocation4], 128, 128, 8
    $region29: #{tpu_custom_call.1} parent=1 // pred_fallthru
      _
    // Predicated region
    $region30: #{tpu_custom_call.1} parent=1 // pred_check
      _
    $region31: #{tpu_custom_call.1} parent=1 // pred_check_branch
      %1695 = sbr.rel (0) target = $region33
    $region32: #{tpu_custom_call.1} parent=1 // pred_region
      %1696 = dma.done [#allocation4], 256
    $region33: #{tpu_custom_call.1} parent=1 // pred_fallthru
      _
    %1697 = vsyncpa [#allocation4], 1

</llo_original>
